<compile_context>
chip_gen: v7x
topology: tpu7x:2x2x1
jax: 0.10.0
libtpu: 0.0.40
codegen_flags: <defaults>
</compile_context>

<pallas_src>
import jax
import jax.numpy as jnp
from jax import lax
from jax.experimental import pallas as pl
from jax.experimental.pallas import tpu as pltpu

B, S, T = 2, 8, 8       # batch, src length, trg length
E = 32                  # emb_dim (encoder & decoder)
H = 32                  # hid_dim (encoder.hid_dim == decoder.hid_dim)
V_SRC = 48              # encoder input vocab
V_TRG = 48              # decoder.output_dim
N_LAYERS = 1

LANES = 128             # one full vreg lane span per gate / per padded vocab
G3 = 3 * LANES          # padded (r|z|n) gate axis
G4 = 4 * LANES          # padded (r|z|n|fc) fused axis
NEG = -1e30             # pad-logit value so greedy argmax never selects a pad token


def seq2seq_kernel(srclen_ref, trg0_ref, src_emb_ref,
                   enc_wih_ref, enc_bi_ref, enc_whh_ref, enc_bhn_ref,
                   wx_ref, bx_ref, whf_ref, bhf_ref,
                   out_ref):
    lane_iota = lax.broadcasted_iota(jnp.int32, (B, LANES), 1)
    lengths = srclen_ref[...]                                    # [B, 1] int32

    # ---------------- encoder (pack_padded semantics via masked freeze) ------
    # Hoisted input projection (off the h-critical path): [S*B, E] x [E, 3*128],
    # rows are step-major (row = t*B + b). r/z biases folded, n input bias folded.
    gi_all = jnp.dot(src_emb_ref[...], enc_wih_ref[...],
                     preferred_element_type=jnp.float32) + enc_bi_ref[...]   # [S*B, G3]

    h = jnp.zeros((B, LANES), jnp.float32)
    for t in range(S):                                  # static -> fully unrolled
        gi = gi_all[t * B:(t + 1) * B, :]                                    # [B, G3]
        gh = jnp.dot(h, enc_whh_ref[...], preferred_element_type=jnp.float32)
        r = jax.nn.sigmoid(gi[:, 0:LANES] + gh[:, 0:LANES])
        z = jax.nn.sigmoid(gi[:, LANES:2 * LANES] + gh[:, LANES:2 * LANES])
        n = jnp.tanh(gi[:, 2 * LANES:] + r * (gh[:, 2 * LANES:] + enc_bhn_ref[...]))
        h_new = (1.0 - z) * n + z * h
        h = jnp.where(t < lengths, h_new, h)            # freeze hidden past src_len

    # ---------------- decoder (greedy autoregressive) ------------------------
    # Fused h-projection: h @ [W_hr | W_hz | W_hn | fc_w] + [0 | 0 | b_hn | fc_b]
    # -> next-step hidden gate pre-activations AND logits in one matmul.
    hf = jnp.dot(h, whf_ref[...], preferred_element_type=jnp.float32) + bhf_ref[...]
    gh = hf[:, :G3]
    onehot = (lane_iota == trg0_ref[...]).astype(jnp.float32)    # trg[:, 0] one-hot [B, LANES]

    outs = [jnp.zeros((B, LANES), jnp.float32)]         # row t=0 is never written -> zeros
    for t in range(1, T):                               # static -> fully unrolled
        # only this small matmul (K=128) depends on the previous argmax
        gx = jnp.dot(onehot, wx_ref[...], preferred_element_type=jnp.float32) + bx_ref[...]
        r = jax.nn.sigmoid(gx[:, 0:LANES] + gh[:, 0:LANES])
        z = jax.nn.sigmoid(gx[:, LANES:2 * LANES] + gh[:, LANES:2 * LANES])
        n = jnp.tanh(gx[:, 2 * LANES:] + r * gh[:, 2 * LANES:])   # gh n-span carries b_hn
        h = (1.0 - z) * n + z * h
        hf = jnp.dot(h, whf_ref[...], preferred_element_type=jnp.float32) + bhf_ref[...]
        gh = hf[:, :G3]
        logits = hf[:, G3:]                                       # [B, LANES], pad lanes = NEG
        outs.append(logits)
        idx = jnp.argmax(logits, axis=1, keepdims=True)           # [B, 1]
        onehot = (lane_iota == idx).astype(jnp.float32)

    # single dense store of the whole [B, T, 128] tile
    out_ref[...] = jnp.stack(outs, axis=1)


# ----------------------------- wrapper --------------------------------------
def _pad_gates(w):
    """[in, 3H] -> [in, 3*LANES]; each gate (r, z, n) in its own 128-lane span."""
    out = jnp.zeros((w.shape[0], G3), jnp.float32)
    for g in range(3):
        out = out.at[:, g * LANES:g * LANES + H].set(w[:, g * H:(g + 1) * H])
    return out


def prepare_operands(params, src, trg, src_len):
    src_emb = params["enc_emb"][src].astype(jnp.float32)                  # [B, S, E]
    src_emb_sm = jnp.transpose(src_emb, (1, 0, 2)).reshape(S * B, E)      # step-major rows

    src_len_v = src_len.astype(jnp.int32).reshape(B, 1)
    trg0_v = trg[:, 0].astype(jnp.int32).reshape(B, 1)

    # ---- encoder weights (gate-lane aligned) ----
    enc_wih_p = _pad_gates(params["enc_wih"])                             # [E, G3]
    bih, bhh = params["enc_bih"], params["enc_bhh"]
    enc_bi_p = _pad_gates(jnp.concatenate(
        [bih[:, :2 * H] + bhh[:, :2 * H], bih[:, 2 * H:]], axis=1))       # [1, G3]
    enc_whh_p = jnp.zeros((LANES, G3), jnp.float32).at[:H].set(
        _pad_gates(params["enc_whh"]))                                    # [LANES, G3]
    enc_bhn_p = jnp.zeros((1, LANES), jnp.float32).at[:, :H].set(
        bhh[:, 2 * H:])                                                   # [1, LANES]

    # ---- decoder: embedding fused into input proj (argmax-dependent part) ----
    w_dec = jnp.dot(params["dec_emb"], params["dec_wih"],
                    preferred_element_type=jnp.float32)                   # [V_TRG, 3H]
    wx = jnp.zeros((LANES, G3), jnp.float32)
    for g in range(3):
        wx = wx.at[:V_TRG, g * LANES:g * LANES + H].set(w_dec[:, g * H:(g + 1) * H])

    dbih, dbhh = params["dec_bih"], params["dec_bhh"]
    bx = jnp.zeros((1, G3), jnp.float32)
    bx = bx.at[:, 0 * LANES:0 * LANES + H].set(dbih[:, :H] + dbhh[:, :H])
    bx = bx.at[:, 1 * LANES:1 * LANES + H].set(dbih[:, H:2 * H] + dbhh[:, H:2 * H])
    bx = bx.at[:, 2 * LANES:2 * LANES + H].set(dbih[:, 2 * H:])

    # ---- decoder: h-part of gates fused with classifier fc ----
    whh_d = params["dec_whh"]                                             # [H, 3H]
    whf = jnp.zeros((LANES, G4), jnp.float32)
    for g in range(3):
        whf = whf.at[:H, g * LANES:g * LANES + H].set(whh_d[:, g * H:(g + 1) * H])
    whf = whf.at[:H, 3 * LANES:3 * LANES + V_TRG].set(params["fc_w"])

    bhf = jnp.zeros((1, G4), jnp.float32)
    bhf = bhf.at[:, 2 * LANES:2 * LANES + H].set(dbhh[:, 2 * H:])         # b_hn (inside r*(.))
    fc_b_pad = jnp.full((1, LANES), NEG, jnp.float32).at[:, :V_TRG].set(params["fc_b"])
    bhf = bhf.at[:, 3 * LANES:].set(fc_b_pad)                             # fc_b + pad logits

    return (src_len_v, trg0_v, src_emb_sm, enc_wih_p, enc_bi_p, enc_whh_p,
            enc_bhn_p, wx, bx, whf, bhf)


def rnn_seq2seq_forward(params, src, trg, src_len):
    args = prepare_operands(params, src, trg, src_len)

    def full(shape):
        nd = len(shape)
        return pl.BlockSpec(shape, lambda i, _nd=nd: (0,) * _nd)

    in_specs = [
        full((B, 1)),            # src_len (int32)
        full((B, 1)),            # trg[:, 0] (int32)
        full((S * B, E)),        # src_emb (step-major)
        full((E, G3)),           # enc_wih (gate-aligned, r/z+n-input biases folded via enc_bi)
        full((1, G3)),           # enc_bi
        full((LANES, G3)),       # enc_whh (rows >= H zero)
        full((1, LANES)),        # enc b_hn
        full((LANES, G3)),       # wx  = dec_emb @ dec_wih (gate-aligned)
        full((1, G3)),           # bx
        full((LANES, G4)),       # whf = [W_hr|W_hz|W_hn|fc_w]
        full((1, G4)),           # bhf = [0|0|b_hn|fc_b(+NEG pad)]
    ]

    out_pad = pl.pallas_call(
        seq2seq_kernel,
        out_shape=jax.ShapeDtypeStruct((B, T, LANES), jnp.float32),
        grid=(1,),                                       # single program: whole batch together
        in_specs=in_specs,
        out_specs=pl.BlockSpec((B, T, LANES), lambda i: (0, 0, 0)),
        compiler_params=pltpu.CompilerParams(
            dimension_semantics=("arbitrary",)),
    )(*args)
    return out_pad[:, :, :V_TRG]                         # [B, T, V_TRG]


# ----------------------------- pure-JAX reference ----------------------------
def _gru_cell(x, h, w_ih, w_hh, b_ih, b_hh):
    gi = jnp.dot(x, w_ih, preferred_element_type=jnp.float32) + b_ih
    gh = jnp.dot(h, w_hh, preferred_element_type=jnp.float32) + b_hh
    r = jax.nn.sigmoid(gi[:, 0:H] + gh[:, 0:H])
    z = jax.nn.sigmoid(gi[:, H:2 * H] + gh[:, H:2 * H])
    n = jnp.tanh(gi[:, 2 * H:] + r * gh[:, 2 * H:])
    return (1.0 - z) * n + z * h


def reference_forward(params, src, trg, src_len):
    h = jnp.zeros((B, H), jnp.float32)
    x_seq = params["enc_emb"][src]                                        # [B,S,E]
    for t in range(S):
        h_new = _gru_cell(x_seq[:, t], h,
                          params["enc_wih"], params["enc_whh"],
                          params["enc_bih"], params["enc_bhh"])
        h = jnp.where((t < src_len)[:, None], h_new, h)
    outs = [jnp.zeros((B, V_TRG), jnp.float32)]
    inp = trg[:, 0]
    for t in range(1, T):
        x = params["dec_emb"][inp]
        h = _gru_cell(x, h,
                      params["dec_wih"], params["dec_whh"],
                      params["dec_bih"], params["dec_bhh"])
        logits = jnp.dot(h, params["fc_w"]) + params["fc_b"]
        outs.append(logits)
        inp = jnp.argmax(logits, axis=1)
    return jnp.stack(outs, axis=1)                                        # [B,T,V_TRG]


def init_params(key):
    """Matches RNNSeq2Seq.init_weights: uniform(-0.1, 0.1) for every parameter."""
    shapes = {
        "enc_emb": (V_SRC, E),
        "enc_wih": (E, 3 * H), "enc_whh": (H, 3 * H),
        "enc_bih": (1, 3 * H), "enc_bhh": (1, 3 * H),
        "dec_emb": (V_TRG, E),
        "dec_wih": (E, 3 * H), "dec_whh": (H, 3 * H),
        "dec_bih": (1, 3 * H), "dec_bhh": (1, 3 * H),
        "fc_w": (H, V_TRG), "fc_b": (1, V_TRG),
    }
    keys = jax.random.split(key, len(shapes))
    return {name: jax.random.uniform(k, shp, jnp.float32, -0.1, 0.1)
            for k, (name, shp) in zip(keys, shapes.items())}


if __name__ == "__main__":
    root = jax.random.PRNGKey(0)
    kp, ks, kt = jax.random.split(root, 3)
    params = init_params(kp)

    src = jax.random.randint(ks, (B, S), 0, V_SRC, dtype=jnp.int32)
    trg = jax.random.randint(kt, (B, T), 0, V_TRG, dtype=jnp.int32)
    src_len = jnp.array([S, S - 3], dtype=jnp.int32)

    out = rnn_seq2seq_forward(params, src, trg, src_len)
    out = jax.block_until_ready(out)
    assert out.shape == (B, T, V_TRG), out.shape

    ref = reference_forward(params, src, trg, src_len)
    if not jnp.allclose(out, ref, rtol=1e-3, atol=1e-3):
        raise AssertionError("Pallas output mismatch vs JAX reference")

    print("KERNEL_OK")
</pallas_src>

<mosaic_0001>
module attributes {stable_mosaic.version = 11 : i64} {
  func.func @seq2seq_kernel(%arg0: i32, %arg1: memref<2x1xi32, #tpu.memory_space<vmem>>, %arg2: memref<2x1xi32, #tpu.memory_space<vmem>>, %arg3: memref<16x32xf32, #tpu.memory_space<vmem>>, %arg4: memref<32x384xf32, #tpu.memory_space<vmem>>, %arg5: memref<1x384xf32, #tpu.memory_space<vmem>>, %arg6: memref<128x384xf32, #tpu.memory_space<vmem>>, %arg7: memref<1x128xf32, #tpu.memory_space<vmem>>, %arg8: memref<128x384xf32, #tpu.memory_space<vmem>>, %arg9: memref<1x384xf32, #tpu.memory_space<vmem>>, %arg10: memref<128x512xf32, #tpu.memory_space<vmem>>, %arg11: memref<1x512xf32, #tpu.memory_space<vmem>>, %arg12: memref<2x8x128xf32, #tpu.memory_space<vmem>>) attributes {dimension_semantics = [#tpu.dimension_semantics<arbitrary>], iteration_bounds = array<i64: 1>, scalar_prefetch = 0 : i64, scratch_operands = 0 : i64, tpu.core_type = #tpu.core_type<tc>, window_params = [{pipeline_mode = #tpu.pipeline_mode<synchronous>, transform_indices = @transform_0, window_bounds = array<i64: 2, 1>}, {pipeline_mode = #tpu.pipeline_mode<synchronous>, transform_indices = @transform_1, window_bounds = array<i64: 2, 1>}, {pipeline_mode = #tpu.pipeline_mode<synchronous>, transform_indices = @transform_2, window_bounds = array<i64: 16, 32>}, {pipeline_mode = #tpu.pipeline_mode<synchronous>, transform_indices = @transform_3, window_bounds = array<i64: 32, 384>}, {pipeline_mode = #tpu.pipeline_mode<synchronous>, transform_indices = @transform_4, window_bounds = array<i64: 1, 384>}, {pipeline_mode = #tpu.pipeline_mode<synchronous>, transform_indices = @transform_5, window_bounds = array<i64: 128, 384>}, {pipeline_mode = #tpu.pipeline_mode<synchronous>, transform_indices = @transform_6, window_bounds = array<i64: 1, 128>}, {pipeline_mode = #tpu.pipeline_mode<synchronous>, transform_indices = @transform_7, window_bounds = array<i64: 128, 384>}, {pipeline_mode = #tpu.pipeline_mode<synchronous>, transform_indices = @transform_8, window_bounds = array<i64: 1, 384>}, {pipeline_mode = #tpu.pipeline_mode<synchronous>, transform_indices = @transform_9, window_bounds = array<i64: 128, 512>}, {pipeline_mode = #tpu.pipeline_mode<synchronous>, transform_indices = @transform_10, window_bounds = array<i64: 1, 512>}, {pipeline_mode = #tpu.pipeline_mode<synchronous>, transform_indices = @transform_11, window_bounds = array<i64: 2, 8, 128>}]} {
    %0 = tpu.iota {dimensions = array<i32: 1>} : vector<2x128xi32>
    %c0 = arith.constant 0 : index
    %c0_0 = arith.constant 0 : index
    %1 = vector.load %arg1[%c0, %c0_0] : memref<2x1xi32, #tpu.memory_space<vmem>>, vector<2x1xi32>
    %c0_1 = arith.constant 0 : index
    %c0_2 = arith.constant 0 : index
    %2 = vector.load %arg3[%c0_1, %c0_2] : memref<16x32xf32, #tpu.memory_space<vmem>>, vector<16x32xf32>
    %c0_3 = arith.constant 0 : index
    %c0_4 = arith.constant 0 : index
    %3 = vector.load %arg4[%c0_3, %c0_4] : memref<32x384xf32, #tpu.memory_space<vmem>>, vector<32x384xf32>
    %cst = arith.constant dense<0.000000e+00> : vector<16x384xf32>
    %4 = tpu.matmul %2, %3, %cst {dimension_numbers = #tpu.dot_dimension_numbers<[1], [0], [0], [1], [0, 0, 1, 1], [], []>} : vector<16x32xf32>, vector<32x384xf32>, vector<16x384xf32> -> vector<16x384xf32>
    %c0_5 = arith.constant 0 : index
    %c0_6 = arith.constant 0 : index
    %5 = vector.load %arg5[%c0_5, %c0_6] : memref<1x384xf32, #tpu.memory_space<vmem>>, vector<1x384xf32>
    %6 = vector.broadcast %5 : vector<1x384xf32> to vector<16x384xf32>
    %7 = arith.addf %4, %6 : vector<16x384xf32>
    %cst_7 = arith.constant 0.000000e+00 : f32
    %8 = vector.broadcast %cst_7 : f32 to vector<2x128xf32>
    %9 = vector.extract_strided_slice %7 {offsets = [0, 0], sizes = [2, 384], strides = [1, 1]} : vector<16x384xf32> to vector<2x384xf32>
    %c0_8 = arith.constant 0 : index
    %c0_9 = arith.constant 0 : index
    %10 = vector.load %arg6[%c0_8, %c0_9] : memref<128x384xf32, #tpu.memory_space<vmem>>, vector<128x384xf32>
    %cst_10 = arith.constant dense<0.000000e+00> : vector<2x384xf32>
    %11 = tpu.matmul %8, %10, %cst_10 {dimension_numbers = #tpu.dot_dimension_numbers<[1], [0], [0], [1], [0, 0, 1, 1], [], []>} : vector<2x128xf32>, vector<128x384xf32>, vector<2x384xf32> -> vector<2x384xf32>
    %12 = vector.extract_strided_slice %9 {offsets = [0, 0], sizes = [2, 128], strides = [1, 1]} : vector<2x384xf32> to vector<2x128xf32>
    %13 = vector.extract_strided_slice %11 {offsets = [0, 0], sizes = [2, 128], strides = [1, 1]} : vector<2x384xf32> to vector<2x128xf32>
    %14 = arith.addf %12, %13 : vector<2x128xf32>
    %15 = arith.negf %14 : vector<2x128xf32>
    %16 = math.exp %15 : vector<2x128xf32>
    %cst_11 = arith.constant 1.000000e+00 : f32
    %17 = vector.broadcast %cst_11 : f32 to vector<2x128xf32>
    %18 = arith.addf %17, %16 : vector<2x128xf32>
    %19 = arith.divf %17, %18 : vector<2x128xf32>
    %20 = vector.extract_strided_slice %9 {offsets = [0, 128], sizes = [2, 128], strides = [1, 1]} : vector<2x384xf32> to vector<2x128xf32>
    %21 = vector.extract_strided_slice %11 {offsets = [0, 128], sizes = [2, 128], strides = [1, 1]} : vector<2x384xf32> to vector<2x128xf32>
    %22 = arith.addf %20, %21 : vector<2x128xf32>
    %23 = arith.negf %22 : vector<2x128xf32>
    %24 = math.exp %23 : vector<2x128xf32>
    %cst_12 = arith.constant 1.000000e+00 : f32
    %25 = vector.broadcast %cst_12 : f32 to vector<2x128xf32>
    %26 = arith.addf %25, %24 : vector<2x128xf32>
    %27 = arith.divf %25, %26 : vector<2x128xf32>
    %28 = vector.extract_strided_slice %9 {offsets = [0, 256], sizes = [2, 128], strides = [1, 1]} : vector<2x384xf32> to vector<2x128xf32>
    %29 = vector.extract_strided_slice %11 {offsets = [0, 256], sizes = [2, 128], strides = [1, 1]} : vector<2x384xf32> to vector<2x128xf32>
    %c0_13 = arith.constant 0 : index
    %c0_14 = arith.constant 0 : index
    %30 = vector.load %arg7[%c0_13, %c0_14] : memref<1x128xf32, #tpu.memory_space<vmem>>, vector<1x128xf32>
    %31 = vector.broadcast %30 : vector<1x128xf32> to vector<2x128xf32>
    %32 = arith.addf %29, %31 : vector<2x128xf32>
    %33 = arith.mulf %19, %32 : vector<2x128xf32>
    %34 = arith.addf %28, %33 : vector<2x128xf32>
    %35 = math.tanh %34 : vector<2x128xf32>
    %cst_15 = arith.constant 1.000000e+00 : f32
    %36 = vector.broadcast %cst_15 : f32 to vector<2x128xf32>
    %37 = arith.subf %36, %27 : vector<2x128xf32>
    %38 = arith.mulf %37, %35 : vector<2x128xf32>
    %39 = arith.mulf %27, %8 : vector<2x128xf32>
    %40 = arith.addf %38, %39 : vector<2x128xf32>
    %c0_i32 = arith.constant 0 : i32
    %41 = vector.broadcast %c0_i32 : i32 to vector<2x1xi32>
    %42 = arith.cmpi sgt, %1, %41 : vector<2x1xi32>
    %43 = vector.shape_cast %42 : vector<2x1xi1> to vector<2x1xi1>
    %44 = vector.broadcast %43 : vector<2x1xi1> to vector<2x128xi1>
    %45 = arith.select %44, %40, %8 : vector<2x128xi1>, vector<2x128xf32>
    %46 = vector.extract_strided_slice %7 {offsets = [2, 0], sizes = [2, 384], strides = [1, 1]} : vector<16x384xf32> to vector<2x384xf32>
    %c0_16 = arith.constant 0 : index
    %c0_17 = arith.constant 0 : index
    %47 = vector.load %arg6[%c0_16, %c0_17] : memref<128x384xf32, #tpu.memory_space<vmem>>, vector<128x384xf32>
    %cst_18 = arith.constant dense<0.000000e+00> : vector<2x384xf32>
    %48 = tpu.matmul %45, %47, %cst_18 {dimension_numbers = #tpu.dot_dimension_numbers<[1], [0], [0], [1], [0, 0, 1, 1], [], []>} : vector<2x128xf32>, vector<128x384xf32>, vector<2x384xf32> -> vector<2x384xf32>
    %49 = vector.extract_strided_slice %46 {offsets = [0, 0], sizes = [2, 128], strides = [1, 1]} : vector<2x384xf32> to vector<2x128xf32>
    %50 = vector.extract_strided_slice %48 {offsets = [0, 0], sizes = [2, 128], strides = [1, 1]} : vector<2x384xf32> to vector<2x128xf32>
    %51 = arith.addf %49, %50 : vector<2x128xf32>
    %52 = arith.negf %51 : vector<2x128xf32>
    %53 = math.exp %52 : vector<2x128xf32>
    %cst_19 = arith.constant 1.000000e+00 : f32
    %54 = vector.broadcast %cst_19 : f32 to vector<2x128xf32>
    %55 = arith.addf %54, %53 : vector<2x128xf32>
    %56 = arith.divf %54, %55 : vector<2x128xf32>
    %57 = vector.extract_strided_slice %46 {offsets = [0, 128], sizes = [2, 128], strides = [1, 1]} : vector<2x384xf32> to vector<2x128xf32>
    %58 = vector.extract_strided_slice %48 {offsets = [0, 128], sizes = [2, 128], strides = [1, 1]} : vector<2x384xf32> to vector<2x128xf32>
    %59 = arith.addf %57, %58 : vector<2x128xf32>
    %60 = arith.negf %59 : vector<2x128xf32>
    %61 = math.exp %60 : vector<2x128xf32>
    %cst_20 = arith.constant 1.000000e+00 : f32
    %62 = vector.broadcast %cst_20 : f32 to vector<2x128xf32>
    %63 = arith.addf %62, %61 : vector<2x128xf32>
    %64 = arith.divf %62, %63 : vector<2x128xf32>
    %65 = vector.extract_strided_slice %46 {offsets = [0, 256], sizes = [2, 128], strides = [1, 1]} : vector<2x384xf32> to vector<2x128xf32>
    %66 = vector.extract_strided_slice %48 {offsets = [0, 256], sizes = [2, 128], strides = [1, 1]} : vector<2x384xf32> to vector<2x128xf32>
    %c0_21 = arith.constant 0 : index
    %c0_22 = arith.constant 0 : index
    %67 = vector.load %arg7[%c0_21, %c0_22] : memref<1x128xf32, #tpu.memory_space<vmem>>, vector<1x128xf32>
    %68 = vector.broadcast %67 : vector<1x128xf32> to vector<2x128xf32>
    %69 = arith.addf %66, %68 : vector<2x128xf32>
    %70 = arith.mulf %56, %69 : vector<2x128xf32>
    %71 = arith.addf %65, %70 : vector<2x128xf32>
    %72 = math.tanh %71 : vector<2x128xf32>
    %cst_23 = arith.constant 1.000000e+00 : f32
    %73 = vector.broadcast %cst_23 : f32 to vector<2x128xf32>
    %74 = arith.subf %73, %64 : vector<2x128xf32>
    %75 = arith.mulf %74, %72 : vector<2x128xf32>
    %76 = arith.mulf %64, %45 : vector<2x128xf32>
    %77 = arith.addf %75, %76 : vector<2x128xf32>
    %c1_i32 = arith.constant 1 : i32
    %78 = vector.broadcast %c1_i32 : i32 to vector<2x1xi32>
    %79 = arith.cmpi sgt, %1, %78 : vector<2x1xi32>
    %80 = vector.shape_cast %79 : vector<2x1xi1> to vector<2x1xi1>
    %81 = vector.broadcast %80 : vector<2x1xi1> to vector<2x128xi1>
    %82 = arith.select %81, %77, %45 : vector<2x128xi1>, vector<2x128xf32>
    %83 = vector.extract_strided_slice %7 {offsets = [4, 0], sizes = [2, 384], strides = [1, 1]} : vector<16x384xf32> to vector<2x384xf32>
    %c0_24 = arith.constant 0 : index
    %c0_25 = arith.constant 0 : index
    %84 = vector.load %arg6[%c0_24, %c0_25] : memref<128x384xf32, #tpu.memory_space<vmem>>, vector<128x384xf32>
    %cst_26 = arith.constant dense<0.000000e+00> : vector<2x384xf32>
    %85 = tpu.matmul %82, %84, %cst_26 {dimension_numbers = #tpu.dot_dimension_numbers<[1], [0], [0], [1], [0, 0, 1, 1], [], []>} : vector<2x128xf32>, vector<128x384xf32>, vector<2x384xf32> -> vector<2x384xf32>
    %86 = vector.extract_strided_slice %83 {offsets = [0, 0], sizes = [2, 128], strides = [1, 1]} : vector<2x384xf32> to vector<2x128xf32>
    %87 = vector.extract_strided_slice %85 {offsets = [0, 0], sizes = [2, 128], strides = [1, 1]} : vector<2x384xf32> to vector<2x128xf32>
    %88 = arith.addf %86, %87 : vector<2x128xf32>
    %89 = arith.negf %88 : vector<2x128xf32>
    %90 = math.exp %89 : vector<2x128xf32>
    %cst_27 = arith.constant 1.000000e+00 : f32
    %91 = vector.broadcast %cst_27 : f32 to vector<2x128xf32>
    %92 = arith.addf %91, %90 : vector<2x128xf32>
    %93 = arith.divf %91, %92 : vector<2x128xf32>
    %94 = vector.extract_strided_slice %83 {offsets = [0, 128], sizes = [2, 128], strides = [1, 1]} : vector<2x384xf32> to vector<2x128xf32>
    %95 = vector.extract_strided_slice %85 {offsets = [0, 128], sizes = [2, 128], strides = [1, 1]} : vector<2x384xf32> to vector<2x128xf32>
    %96 = arith.addf %94, %95 : vector<2x128xf32>
    %97 = arith.negf %96 : vector<2x128xf32>
    %98 = math.exp %97 : vector<2x128xf32>
    %cst_28 = arith.constant 1.000000e+00 : f32
    %99 = vector.broadcast %cst_28 : f32 to vector<2x128xf32>
    %100 = arith.addf %99, %98 : vector<2x128xf32>
    %101 = arith.divf %99, %100 : vector<2x128xf32>
    %102 = vector.extract_strided_slice %83 {offsets = [0, 256], sizes = [2, 128], strides = [1, 1]} : vector<2x384xf32> to vector<2x128xf32>
    %103 = vector.extract_strided_slice %85 {offsets = [0, 256], sizes = [2, 128], strides = [1, 1]} : vector<2x384xf32> to vector<2x128xf32>
    %c0_29 = arith.constant 0 : index
    %c0_30 = arith.constant 0 : index
    %104 = vector.load %arg7[%c0_29, %c0_30] : memref<1x128xf32, #tpu.memory_space<vmem>>, vector<1x128xf32>
    %105 = vector.broadcast %104 : vector<1x128xf32> to vector<2x128xf32>
    %106 = arith.addf %103, %105 : vector<2x128xf32>
    %107 = arith.mulf %93, %106 : vector<2x128xf32>
    %108 = arith.addf %102, %107 : vector<2x128xf32>
    %109 = math.tanh %108 : vector<2x128xf32>
    %cst_31 = arith.constant 1.000000e+00 : f32
    %110 = vector.broadcast %cst_31 : f32 to vector<2x128xf32>
    %111 = arith.subf %110, %101 : vector<2x128xf32>
    %112 = arith.mulf %111, %109 : vector<2x128xf32>
    %113 = arith.mulf %101, %82 : vector<2x128xf32>
    %114 = arith.addf %112, %113 : vector<2x128xf32>
    %c2_i32 = arith.constant 2 : i32
    %115 = vector.broadcast %c2_i32 : i32 to vector<2x1xi32>
    %116 = arith.cmpi sgt, %1, %115 : vector<2x1xi32>
    %117 = vector.shape_cast %116 : vector<2x1xi1> to vector<2x1xi1>
    %118 = vector.broadcast %117 : vector<2x1xi1> to vector<2x128xi1>
    %119 = arith.select %118, %114, %82 : vector<2x128xi1>, vector<2x128xf32>
    %120 = vector.extract_strided_slice %7 {offsets = [6, 0], sizes = [2, 384], strides = [1, 1]} : vector<16x384xf32> to vector<2x384xf32>
    %c0_32 = arith.constant 0 : index
    %c0_33 = arith.constant 0 : index
    %121 = vector.load %arg6[%c0_32, %c0_33] : memref<128x384xf32, #tpu.memory_space<vmem>>, vector<128x384xf32>
    %cst_34 = arith.constant dense<0.000000e+00> : vector<2x384xf32>
    %122 = tpu.matmul %119, %121, %cst_34 {dimension_numbers = #tpu.dot_dimension_numbers<[1], [0], [0], [1], [0, 0, 1, 1], [], []>} : vector<2x128xf32>, vector<128x384xf32>, vector<2x384xf32> -> vector<2x384xf32>
    %123 = vector.extract_strided_slice %120 {offsets = [0, 0], sizes = [2, 128], strides = [1, 1]} : vector<2x384xf32> to vector<2x128xf32>
    %124 = vector.extract_strided_slice %122 {offsets = [0, 0], sizes = [2, 128], strides = [1, 1]} : vector<2x384xf32> to vector<2x128xf32>
    %125 = arith.addf %123, %124 : vector<2x128xf32>
    %126 = arith.negf %125 : vector<2x128xf32>
    %127 = math.exp %126 : vector<2x128xf32>
    %cst_35 = arith.constant 1.000000e+00 : f32
    %128 = vector.broadcast %cst_35 : f32 to vector<2x128xf32>
    %129 = arith.addf %128, %127 : vector<2x128xf32>
    %130 = arith.divf %128, %129 : vector<2x128xf32>
    %131 = vector.extract_strided_slice %120 {offsets = [0, 128], sizes = [2, 128], strides = [1, 1]} : vector<2x384xf32> to vector<2x128xf32>
    %132 = vector.extract_strided_slice %122 {offsets = [0, 128], sizes = [2, 128], strides = [1, 1]} : vector<2x384xf32> to vector<2x128xf32>
    %133 = arith.addf %131, %132 : vector<2x128xf32>
    %134 = arith.negf %133 : vector<2x128xf32>
    %135 = math.exp %134 : vector<2x128xf32>
    %cst_36 = arith.constant 1.000000e+00 : f32
    %136 = vector.broadcast %cst_36 : f32 to vector<2x128xf32>
    %137 = arith.addf %136, %135 : vector<2x128xf32>
    %138 = arith.divf %136, %137 : vector<2x128xf32>
    %139 = vector.extract_strided_slice %120 {offsets = [0, 256], sizes = [2, 128], strides = [1, 1]} : vector<2x384xf32> to vector<2x128xf32>
    %140 = vector.extract_strided_slice %122 {offsets = [0, 256], sizes = [2, 128], strides = [1, 1]} : vector<2x384xf32> to vector<2x128xf32>
    %c0_37 = arith.constant 0 : index
    %c0_38 = arith.constant 0 : index
    %141 = vector.load %arg7[%c0_37, %c0_38] : memref<1x128xf32, #tpu.memory_space<vmem>>, vector<1x128xf32>
    %142 = vector.broadcast %141 : vector<1x128xf32> to vector<2x128xf32>
    %143 = arith.addf %140, %142 : vector<2x128xf32>
    %144 = arith.mulf %130, %143 : vector<2x128xf32>
    %145 = arith.addf %139, %144 : vector<2x128xf32>
    %146 = math.tanh %145 : vector<2x128xf32>
    %cst_39 = arith.constant 1.000000e+00 : f32
    %147 = vector.broadcast %cst_39 : f32 to vector<2x128xf32>
    %148 = arith.subf %147, %138 : vector<2x128xf32>
    %149 = arith.mulf %148, %146 : vector<2x128xf32>
    %150 = arith.mulf %138, %119 : vector<2x128xf32>
    %151 = arith.addf %149, %150 : vector<2x128xf32>
    %c3_i32 = arith.constant 3 : i32
    %152 = vector.broadcast %c3_i32 : i32 to vector<2x1xi32>
    %153 = arith.cmpi sgt, %1, %152 : vector<2x1xi32>
    %154 = vector.shape_cast %153 : vector<2x1xi1> to vector<2x1xi1>
    %155 = vector.broadcast %154 : vector<2x1xi1> to vector<2x128xi1>
    %156 = arith.select %155, %151, %119 : vector<2x128xi1>, vector<2x128xf32>
    %157 = vector.extract_strided_slice %7 {offsets = [8, 0], sizes = [2, 384], strides = [1, 1]} : vector<16x384xf32> to vector<2x384xf32>
    %c0_40 = arith.constant 0 : index
    %c0_41 = arith.constant 0 : index
    %158 = vector.load %arg6[%c0_40, %c0_41] : memref<128x384xf32, #tpu.memory_space<vmem>>, vector<128x384xf32>
    %cst_42 = arith.constant dense<0.000000e+00> : vector<2x384xf32>
    %159 = tpu.matmul %156, %158, %cst_42 {dimension_numbers = #tpu.dot_dimension_numbers<[1], [0], [0], [1], [0, 0, 1, 1], [], []>} : vector<2x128xf32>, vector<128x384xf32>, vector<2x384xf32> -> vector<2x384xf32>
    %160 = vector.extract_strided_slice %157 {offsets = [0, 0], sizes = [2, 128], strides = [1, 1]} : vector<2x384xf32> to vector<2x128xf32>
    %161 = vector.extract_strided_slice %159 {offsets = [0, 0], sizes = [2, 128], strides = [1, 1]} : vector<2x384xf32> to vector<2x128xf32>
    %162 = arith.addf %160, %161 : vector<2x128xf32>
    %163 = arith.negf %162 : vector<2x128xf32>
    %164 = math.exp %163 : vector<2x128xf32>
    %cst_43 = arith.constant 1.000000e+00 : f32
    %165 = vector.broadcast %cst_43 : f32 to vector<2x128xf32>
    %166 = arith.addf %165, %164 : vector<2x128xf32>
    %167 = arith.divf %165, %166 : vector<2x128xf32>
    %168 = vector.extract_strided_slice %157 {offsets = [0, 128], sizes = [2, 128], strides = [1, 1]} : vector<2x384xf32> to vector<2x128xf32>
    %169 = vector.extract_strided_slice %159 {offsets = [0, 128], sizes = [2, 128], strides = [1, 1]} : vector<2x384xf32> to vector<2x128xf32>
    %170 = arith.addf %168, %169 : vector<2x128xf32>
    %171 = arith.negf %170 : vector<2x128xf32>
    %172 = math.exp %171 : vector<2x128xf32>
    %cst_44 = arith.constant 1.000000e+00 : f32
    %173 = vector.broadcast %cst_44 : f32 to vector<2x128xf32>
    %174 = arith.addf %173, %172 : vector<2x128xf32>
    %175 = arith.divf %173, %174 : vector<2x128xf32>
    %176 = vector.extract_strided_slice %157 {offsets = [0, 256], sizes = [2, 128], strides = [1, 1]} : vector<2x384xf32> to vector<2x128xf32>
    %177 = vector.extract_strided_slice %159 {offsets = [0, 256], sizes = [2, 128], strides = [1, 1]} : vector<2x384xf32> to vector<2x128xf32>
    %c0_45 = arith.constant 0 : index
    %c0_46 = arith.constant 0 : index
    %178 = vector.load %arg7[%c0_45, %c0_46] : memref<1x128xf32, #tpu.memory_space<vmem>>, vector<1x128xf32>
    %179 = vector.broadcast %178 : vector<1x128xf32> to vector<2x128xf32>
    %180 = arith.addf %177, %179 : vector<2x128xf32>
    %181 = arith.mulf %167, %180 : vector<2x128xf32>
    %182 = arith.addf %176, %181 : vector<2x128xf32>
    %183 = math.tanh %182 : vector<2x128xf32>
    %cst_47 = arith.constant 1.000000e+00 : f32
    %184 = vector.broadcast %cst_47 : f32 to vector<2x128xf32>
    %185 = arith.subf %184, %175 : vector<2x128xf32>
    %186 = arith.mulf %185, %183 : vector<2x128xf32>
    %187 = arith.mulf %175, %156 : vector<2x128xf32>
    %188 = arith.addf %186, %187 : vector<2x128xf32>
    %c4_i32 = arith.constant 4 : i32
    %189 = vector.broadcast %c4_i32 : i32 to vector<2x1xi32>
    %190 = arith.cmpi sgt, %1, %189 : vector<2x1xi32>
    %191 = vector.shape_cast %190 : vector<2x1xi1> to vector<2x1xi1>
    %192 = vector.broadcast %191 : vector<2x1xi1> to vector<2x128xi1>
    %193 = arith.select %192, %188, %156 : vector<2x128xi1>, vector<2x128xf32>
    %194 = vector.extract_strided_slice %7 {offsets = [10, 0], sizes = [2, 384], strides = [1, 1]} : vector<16x384xf32> to vector<2x384xf32>
    %c0_48 = arith.constant 0 : index
    %c0_49 = arith.constant 0 : index
    %195 = vector.load %arg6[%c0_48, %c0_49] : memref<128x384xf32, #tpu.memory_space<vmem>>, vector<128x384xf32>
    %cst_50 = arith.constant dense<0.000000e+00> : vector<2x384xf32>
    %196 = tpu.matmul %193, %195, %cst_50 {dimension_numbers = #tpu.dot_dimension_numbers<[1], [0], [0], [1], [0, 0, 1, 1], [], []>} : vector<2x128xf32>, vector<128x384xf32>, vector<2x384xf32> -> vector<2x384xf32>
    %197 = vector.extract_strided_slice %194 {offsets = [0, 0], sizes = [2, 128], strides = [1, 1]} : vector<2x384xf32> to vector<2x128xf32>
    %198 = vector.extract_strided_slice %196 {offsets = [0, 0], sizes = [2, 128], strides = [1, 1]} : vector<2x384xf32> to vector<2x128xf32>
    %199 = arith.addf %197, %198 : vector<2x128xf32>
    %200 = arith.negf %199 : vector<2x128xf32>
    %201 = math.exp %200 : vector<2x128xf32>
    %cst_51 = arith.constant 1.000000e+00 : f32
    %202 = vector.broadcast %cst_51 : f32 to vector<2x128xf32>
    %203 = arith.addf %202, %201 : vector<2x128xf32>
    %204 = arith.divf %202, %203 : vector<2x128xf32>
    %205 = vector.extract_strided_slice %194 {offsets = [0, 128], sizes = [2, 128], strides = [1, 1]} : vector<2x384xf32> to vector<2x128xf32>
    %206 = vector.extract_strided_slice %196 {offsets = [0, 128], sizes = [2, 128], strides = [1, 1]} : vector<2x384xf32> to vector<2x128xf32>
    %207 = arith.addf %205, %206 : vector<2x128xf32>
    %208 = arith.negf %207 : vector<2x128xf32>
    %209 = math.exp %208 : vector<2x128xf32>
    %cst_52 = arith.constant 1.000000e+00 : f32
    %210 = vector.broadcast %cst_52 : f32 to vector<2x128xf32>
    %211 = arith.addf %210, %209 : vector<2x128xf32>
    %212 = arith.divf %210, %211 : vector<2x128xf32>
    %213 = vector.extract_strided_slice %194 {offsets = [0, 256], sizes = [2, 128], strides = [1, 1]} : vector<2x384xf32> to vector<2x128xf32>
    %214 = vector.extract_strided_slice %196 {offsets = [0, 256], sizes = [2, 128], strides = [1, 1]} : vector<2x384xf32> to vector<2x128xf32>
    %c0_53 = arith.constant 0 : index
    %c0_54 = arith.constant 0 : index
    %215 = vector.load %arg7[%c0_53, %c0_54] : memref<1x128xf32, #tpu.memory_space<vmem>>, vector<1x128xf32>
    %216 = vector.broadcast %215 : vector<1x128xf32> to vector<2x128xf32>
    %217 = arith.addf %214, %216 : vector<2x128xf32>
    %218 = arith.mulf %204, %217 : vector<2x128xf32>
    %219 = arith.addf %213, %218 : vector<2x128xf32>
    %220 = math.tanh %219 : vector<2x128xf32>
    %cst_55 = arith.constant 1.000000e+00 : f32
    %221 = vector.broadcast %cst_55 : f32 to vector<2x128xf32>
    %222 = arith.subf %221, %212 : vector<2x128xf32>
    %223 = arith.mulf %222, %220 : vector<2x128xf32>
    %224 = arith.mulf %212, %193 : vector<2x128xf32>
    %225 = arith.addf %223, %224 : vector<2x128xf32>
    %c5_i32 = arith.constant 5 : i32
    %226 = vector.broadcast %c5_i32 : i32 to vector<2x1xi32>
    %227 = arith.cmpi sgt, %1, %226 : vector<2x1xi32>
    %228 = vector.shape_cast %227 : vector<2x1xi1> to vector<2x1xi1>
    %229 = vector.broadcast %228 : vector<2x1xi1> to vector<2x128xi1>
    %230 = arith.select %229, %225, %193 : vector<2x128xi1>, vector<2x128xf32>
    %231 = vector.extract_strided_slice %7 {offsets = [12, 0], sizes = [2, 384], strides = [1, 1]} : vector<16x384xf32> to vector<2x384xf32>
    %c0_56 = arith.constant 0 : index
    %c0_57 = arith.constant 0 : index
    %232 = vector.load %arg6[%c0_56, %c0_57] : memref<128x384xf32, #tpu.memory_space<vmem>>, vector<128x384xf32>
    %cst_58 = arith.constant dense<0.000000e+00> : vector<2x384xf32>
    %233 = tpu.matmul %230, %232, %cst_58 {dimension_numbers = #tpu.dot_dimension_numbers<[1], [0], [0], [1], [0, 0, 1, 1], [], []>} : vector<2x128xf32>, vector<128x384xf32>, vector<2x384xf32> -> vector<2x384xf32>
    %234 = vector.extract_strided_slice %231 {offsets = [0, 0], sizes = [2, 128], strides = [1, 1]} : vector<2x384xf32> to vector<2x128xf32>
    %235 = vector.extract_strided_slice %233 {offsets = [0, 0], sizes = [2, 128], strides = [1, 1]} : vector<2x384xf32> to vector<2x128xf32>
    %236 = arith.addf %234, %235 : vector<2x128xf32>
    %237 = arith.negf %236 : vector<2x128xf32>
    %238 = math.exp %237 : vector<2x128xf32>
    %cst_59 = arith.constant 1.000000e+00 : f32
    %239 = vector.broadcast %cst_59 : f32 to vector<2x128xf32>
    %240 = arith.addf %239, %238 : vector<2x128xf32>
    %241 = arith.divf %239, %240 : vector<2x128xf32>
    %242 = vector.extract_strided_slice %231 {offsets = [0, 128], sizes = [2, 128], strides = [1, 1]} : vector<2x384xf32> to vector<2x128xf32>
    %243 = vector.extract_strided_slice %233 {offsets = [0, 128], sizes = [2, 128], strides = [1, 1]} : vector<2x384xf32> to vector<2x128xf32>
    %244 = arith.addf %242, %243 : vector<2x128xf32>
    %245 = arith.negf %244 : vector<2x128xf32>
    %246 = math.exp %245 : vector<2x128xf32>
    %cst_60 = arith.constant 1.000000e+00 : f32
    %247 = vector.broadcast %cst_60 : f32 to vector<2x128xf32>
    %248 = arith.addf %247, %246 : vector<2x128xf32>
    %249 = arith.divf %247, %248 : vector<2x128xf32>
    %250 = vector.extract_strided_slice %231 {offsets = [0, 256], sizes = [2, 128], strides = [1, 1]} : vector<2x384xf32> to vector<2x128xf32>
    %251 = vector.extract_strided_slice %233 {offsets = [0, 256], sizes = [2, 128], strides = [1, 1]} : vector<2x384xf32> to vector<2x128xf32>
    %c0_61 = arith.constant 0 : index
    %c0_62 = arith.constant 0 : index
    %252 = vector.load %arg7[%c0_61, %c0_62] : memref<1x128xf32, #tpu.memory_space<vmem>>, vector<1x128xf32>
    %253 = vector.broadcast %252 : vector<1x128xf32> to vector<2x128xf32>
    %254 = arith.addf %251, %253 : vector<2x128xf32>
    %255 = arith.mulf %241, %254 : vector<2x128xf32>
    %256 = arith.addf %250, %255 : vector<2x128xf32>
    %257 = math.tanh %256 : vector<2x128xf32>
    %cst_63 = arith.constant 1.000000e+00 : f32
    %258 = vector.broadcast %cst_63 : f32 to vector<2x128xf32>
    %259 = arith.subf %258, %249 : vector<2x128xf32>
    %260 = arith.mulf %259, %257 : vector<2x128xf32>
    %261 = arith.mulf %249, %230 : vector<2x128xf32>
    %262 = arith.addf %260, %261 : vector<2x128xf32>
    %c6_i32 = arith.constant 6 : i32
    %263 = vector.broadcast %c6_i32 : i32 to vector<2x1xi32>
    %264 = arith.cmpi sgt, %1, %263 : vector<2x1xi32>
    %265 = vector.shape_cast %264 : vector<2x1xi1> to vector<2x1xi1>
    %266 = vector.broadcast %265 : vector<2x1xi1> to vector<2x128xi1>
    %267 = arith.select %266, %262, %230 : vector<2x128xi1>, vector<2x128xf32>
    %268 = vector.extract_strided_slice %7 {offsets = [14, 0], sizes = [2, 384], strides = [1, 1]} : vector<16x384xf32> to vector<2x384xf32>
    %c0_64 = arith.constant 0 : index
    %c0_65 = arith.constant 0 : index
    %269 = vector.load %arg6[%c0_64, %c0_65] : memref<128x384xf32, #tpu.memory_space<vmem>>, vector<128x384xf32>
    %cst_66 = arith.constant dense<0.000000e+00> : vector<2x384xf32>
    %270 = tpu.matmul %267, %269, %cst_66 {dimension_numbers = #tpu.dot_dimension_numbers<[1], [0], [0], [1], [0, 0, 1, 1], [], []>} : vector<2x128xf32>, vector<128x384xf32>, vector<2x384xf32> -> vector<2x384xf32>
    %271 = vector.extract_strided_slice %268 {offsets = [0, 0], sizes = [2, 128], strides = [1, 1]} : vector<2x384xf32> to vector<2x128xf32>
    %272 = vector.extract_strided_slice %270 {offsets = [0, 0], sizes = [2, 128], strides = [1, 1]} : vector<2x384xf32> to vector<2x128xf32>
    %273 = arith.addf %271, %272 : vector<2x128xf32>
    %274 = arith.negf %273 : vector<2x128xf32>
    %275 = math.exp %274 : vector<2x128xf32>
    %cst_67 = arith.constant 1.000000e+00 : f32
    %276 = vector.broadcast %cst_67 : f32 to vector<2x128xf32>
    %277 = arith.addf %276, %275 : vector<2x128xf32>
    %278 = arith.divf %276, %277 : vector<2x128xf32>
    %279 = vector.extract_strided_slice %268 {offsets = [0, 128], sizes = [2, 128], strides = [1, 1]} : vector<2x384xf32> to vector<2x128xf32>
    %280 = vector.extract_strided_slice %270 {offsets = [0, 128], sizes = [2, 128], strides = [1, 1]} : vector<2x384xf32> to vector<2x128xf32>
    %281 = arith.addf %279, %280 : vector<2x128xf32>
    %282 = arith.negf %281 : vector<2x128xf32>
    %283 = math.exp %282 : vector<2x128xf32>
    %cst_68 = arith.constant 1.000000e+00 : f32
    %284 = vector.broadcast %cst_68 : f32 to vector<2x128xf32>
    %285 = arith.addf %284, %283 : vector<2x128xf32>
    %286 = arith.divf %284, %285 : vector<2x128xf32>
    %287 = vector.extract_strided_slice %268 {offsets = [0, 256], sizes = [2, 128], strides = [1, 1]} : vector<2x384xf32> to vector<2x128xf32>
    %288 = vector.extract_strided_slice %270 {offsets = [0, 256], sizes = [2, 128], strides = [1, 1]} : vector<2x384xf32> to vector<2x128xf32>
    %c0_69 = arith.constant 0 : index
    %c0_70 = arith.constant 0 : index
    %289 = vector.load %arg7[%c0_69, %c0_70] : memref<1x128xf32, #tpu.memory_space<vmem>>, vector<1x128xf32>
    %290 = vector.broadcast %289 : vector<1x128xf32> to vector<2x128xf32>
    %291 = arith.addf %288, %290 : vector<2x128xf32>
    %292 = arith.mulf %278, %291 : vector<2x128xf32>
    %293 = arith.addf %287, %292 : vector<2x128xf32>
    %294 = math.tanh %293 : vector<2x128xf32>
    %cst_71 = arith.constant 1.000000e+00 : f32
    %295 = vector.broadcast %cst_71 : f32 to vector<2x128xf32>
    %296 = arith.subf %295, %286 : vector<2x128xf32>
    %297 = arith.mulf %296, %294 : vector<2x128xf32>
    %298 = arith.mulf %286, %267 : vector<2x128xf32>
    %299 = arith.addf %297, %298 : vector<2x128xf32>
    %c7_i32 = arith.constant 7 : i32
    %300 = vector.broadcast %c7_i32 : i32 to vector<2x1xi32>
    %301 = arith.cmpi sgt, %1, %300 : vector<2x1xi32>
    %302 = vector.shape_cast %301 : vector<2x1xi1> to vector<2x1xi1>
    %303 = vector.broadcast %302 : vector<2x1xi1> to vector<2x128xi1>
    %304 = arith.select %303, %299, %267 : vector<2x128xi1>, vector<2x128xf32>
    %c0_72 = arith.constant 0 : index
    %c0_73 = arith.constant 0 : index
    %305 = vector.load %arg10[%c0_72, %c0_73] : memref<128x512xf32, #tpu.memory_space<vmem>>, vector<128x512xf32>
    %cst_74 = arith.constant dense<0.000000e+00> : vector<2x512xf32>
    %306 = tpu.matmul %304, %305, %cst_74 {dimension_numbers = #tpu.dot_dimension_numbers<[1], [0], [0], [1], [0, 0, 1, 1], [], []>} : vector<2x128xf32>, vector<128x512xf32>, vector<2x512xf32> -> vector<2x512xf32>
    %c0_75 = arith.constant 0 : index
    %c0_76 = arith.constant 0 : index
    %307 = vector.load %arg11[%c0_75, %c0_76] : memref<1x512xf32, #tpu.memory_space<vmem>>, vector<1x512xf32>
    %308 = vector.broadcast %307 : vector<1x512xf32> to vector<2x512xf32>
    %309 = arith.addf %306, %308 : vector<2x512xf32>
    %310 = vector.extract_strided_slice %309 {offsets = [0, 0], sizes = [2, 384], strides = [1, 1]} : vector<2x512xf32> to vector<2x384xf32>
    %c0_77 = arith.constant 0 : index
    %c0_78 = arith.constant 0 : index
    %311 = vector.load %arg2[%c0_77, %c0_78] : memref<2x1xi32, #tpu.memory_space<vmem>>, vector<2x1xi32>
    %312 = vector.broadcast %311 : vector<2x1xi32> to vector<2x128xi32>
    %313 = arith.cmpi eq, %0, %312 : vector<2x128xi32>
    %314 = arith.extui %313 : vector<2x128xi1> to vector<2x128xi32>
    %315 = arith.sitofp %314 : vector<2x128xi32> to vector<2x128xf32>
    %cst_79 = arith.constant 0.000000e+00 : f32
    %316 = vector.broadcast %cst_79 : f32 to vector<2x128xf32>
    %c0_80 = arith.constant 0 : index
    %c0_81 = arith.constant 0 : index
    %317 = vector.load %arg8[%c0_80, %c0_81] : memref<128x384xf32, #tpu.memory_space<vmem>>, vector<128x384xf32>
    %cst_82 = arith.constant dense<0.000000e+00> : vector<2x384xf32>
    %318 = tpu.matmul %315, %317, %cst_82 {dimension_numbers = #tpu.dot_dimension_numbers<[1], [0], [0], [1], [0, 0, 1, 1], [], []>} : vector<2x128xf32>, vector<128x384xf32>, vector<2x384xf32> -> vector<2x384xf32>
    %c0_83 = arith.constant 0 : index
    %c0_84 = arith.constant 0 : index
    %319 = vector.load %arg9[%c0_83, %c0_84] : memref<1x384xf32, #tpu.memory_space<vmem>>, vector<1x384xf32>
    %320 = vector.broadcast %319 : vector<1x384xf32> to vector<2x384xf32>
    %321 = arith.addf %318, %320 : vector<2x384xf32>
    %322 = vector.extract_strided_slice %321 {offsets = [0, 0], sizes = [2, 128], strides = [1, 1]} : vector<2x384xf32> to vector<2x128xf32>
    %323 = vector.extract_strided_slice %310 {offsets = [0, 0], sizes = [2, 128], strides = [1, 1]} : vector<2x384xf32> to vector<2x128xf32>
    %324 = arith.addf %322, %323 : vector<2x128xf32>
    %325 = arith.negf %324 : vector<2x128xf32>
    %326 = math.exp %325 : vector<2x128xf32>
    %cst_85 = arith.constant 1.000000e+00 : f32
    %327 = vector.broadcast %cst_85 : f32 to vector<2x128xf32>
    %328 = arith.addf %327, %326 : vector<2x128xf32>
    %329 = arith.divf %327, %328 : vector<2x128xf32>
    %330 = vector.extract_strided_slice %321 {offsets = [0, 128], sizes = [2, 128], strides = [1, 1]} : vector<2x384xf32> to vector<2x128xf32>
    %331 = vector.extract_strided_slice %310 {offsets = [0, 128], sizes = [2, 128], strides = [1, 1]} : vector<2x384xf32> to vector<2x128xf32>
    %332 = arith.addf %330, %331 : vector<2x128xf32>
    %333 = arith.negf %332 : vector<2x128xf32>
    %334 = math.exp %333 : vector<2x128xf32>
    %cst_86 = arith.constant 1.000000e+00 : f32
    %335 = vector.broadcast %cst_86 : f32 to vector<2x128xf32>
    %336 = arith.addf %335, %334 : vector<2x128xf32>
    %337 = arith.divf %335, %336 : vector<2x128xf32>
    %338 = vector.extract_strided_slice %321 {offsets = [0, 256], sizes = [2, 128], strides = [1, 1]} : vector<2x384xf32> to vector<2x128xf32>
    %339 = vector.extract_strided_slice %310 {offsets = [0, 256], sizes = [2, 128], strides = [1, 1]} : vector<2x384xf32> to vector<2x128xf32>
    %340 = arith.mulf %329, %339 : vector<2x128xf32>
    %341 = arith.addf %338, %340 : vector<2x128xf32>
    %342 = math.tanh %341 : vector<2x128xf32>
    %cst_87 = arith.constant 1.000000e+00 : f32
    %343 = vector.broadcast %cst_87 : f32 to vector<2x128xf32>
    %344 = arith.subf %343, %337 : vector<2x128xf32>
    %345 = arith.mulf %344, %342 : vector<2x128xf32>
    %346 = arith.mulf %337, %304 : vector<2x128xf32>
    %347 = arith.addf %345, %346 : vector<2x128xf32>
    %c0_88 = arith.constant 0 : index
    %c0_89 = arith.constant 0 : index
    %348 = vector.load %arg10[%c0_88, %c0_89] : memref<128x512xf32, #tpu.memory_space<vmem>>, vector<128x512xf32>
    %cst_90 = arith.constant dense<0.000000e+00> : vector<2x512xf32>
    %349 = tpu.matmul %347, %348, %cst_90 {dimension_numbers = #tpu.dot_dimension_numbers<[1], [0], [0], [1], [0, 0, 1, 1], [], []>} : vector<2x128xf32>, vector<128x512xf32>, vector<2x512xf32> -> vector<2x512xf32>
    %c0_91 = arith.constant 0 : index
    %c0_92 = arith.constant 0 : index
    %350 = vector.load %arg11[%c0_91, %c0_92] : memref<1x512xf32, #tpu.memory_space<vmem>>, vector<1x512xf32>
    %351 = vector.broadcast %350 : vector<1x512xf32> to vector<2x512xf32>
    %352 = arith.addf %349, %351 : vector<2x512xf32>
    %353 = vector.extract_strided_slice %352 {offsets = [0, 0], sizes = [2, 384], strides = [1, 1]} : vector<2x512xf32> to vector<2x384xf32>
    %354 = vector.extract_strided_slice %352 {offsets = [0, 384], sizes = [2, 128], strides = [1, 1]} : vector<2x512xf32> to vector<2x128xf32>
    %355 = tpu.reduce_index %354 {axis = 1 : i32, kind = #tpu.reduction_kind<arg_max>} : vector<2x128xf32> -> vector<2xi32>
    %356 = vector.shape_cast %355 : vector<2xi32> to vector<2x1xi32>
    %357 = vector.broadcast %356 : vector<2x1xi32> to vector<2x128xi32>
    %358 = arith.cmpi eq, %0, %357 : vector<2x128xi32>
    %359 = arith.extui %358 : vector<2x128xi1> to vector<2x128xi32>
    %360 = arith.sitofp %359 : vector<2x128xi32> to vector<2x128xf32>
    %c0_93 = arith.constant 0 : index
    %c0_94 = arith.constant 0 : index
    %361 = vector.load %arg8[%c0_93, %c0_94] : memref<128x384xf32, #tpu.memory_space<vmem>>, vector<128x384xf32>
    %cst_95 = arith.constant dense<0.000000e+00> : vector<2x384xf32>
    %362 = tpu.matmul %360, %361, %cst_95 {dimension_numbers = #tpu.dot_dimension_numbers<[1], [0], [0], [1], [0, 0, 1, 1], [], []>} : vector<2x128xf32>, vector<128x384xf32>, vector<2x384xf32> -> vector<2x384xf32>
    %c0_96 = arith.constant 0 : index
    %c0_97 = arith.constant 0 : index
    %363 = vector.load %arg9[%c0_96, %c0_97] : memref<1x384xf32, #tpu.memory_space<vmem>>, vector<1x384xf32>
    %364 = vector.broadcast %363 : vector<1x384xf32> to vector<2x384xf32>
    %365 = arith.addf %362, %364 : vector<2x384xf32>
    %366 = vector.extract_strided_slice %365 {offsets = [0, 0], sizes = [2, 128], strides = [1, 1]} : vector<2x384xf32> to vector<2x128xf32>
    %367 = vector.extract_strided_slice %353 {offsets = [0, 0], sizes = [2, 128], strides = [1, 1]} : vector<2x384xf32> to vector<2x128xf32>
    %368 = arith.addf %366, %367 : vector<2x128xf32>
    %369 = arith.negf %368 : vector<2x128xf32>
    %370 = math.exp %369 : vector<2x128xf32>
    %cst_98 = arith.constant 1.000000e+00 : f32
    %371 = vector.broadcast %cst_98 : f32 to vector<2x128xf32>
    %372 = arith.addf %371, %370 : vector<2x128xf32>
    %373 = arith.divf %371, %372 : vector<2x128xf32>
    %374 = vector.extract_strided_slice %365 {offsets = [0, 128], sizes = [2, 128], strides = [1, 1]} : vector<2x384xf32> to vector<2x128xf32>
    %375 = vector.extract_strided_slice %353 {offsets = [0, 128], sizes = [2, 128], strides = [1, 1]} : vector<2x384xf32> to vector<2x128xf32>
    %376 = arith.addf %374, %375 : vector<2x128xf32>
    %377 = arith.negf %376 : vector<2x128xf32>
    %378 = math.exp %377 : vector<2x128xf32>
    %cst_99 = arith.constant 1.000000e+00 : f32
    %379 = vector.broadcast %cst_99 : f32 to vector<2x128xf32>
    %380 = arith.addf %379, %378 : vector<2x128xf32>
    %381 = arith.divf %379, %380 : vector<2x128xf32>
    %382 = vector.extract_strided_slice %365 {offsets = [0, 256], sizes = [2, 128], strides = [1, 1]} : vector<2x384xf32> to vector<2x128xf32>
    %383 = vector.extract_strided_slice %353 {offsets = [0, 256], sizes = [2, 128], strides = [1, 1]} : vector<2x384xf32> to vector<2x128xf32>
    %384 = arith.mulf %373, %383 : vector<2x128xf32>
    %385 = arith.addf %382, %384 : vector<2x128xf32>
    %386 = math.tanh %385 : vector<2x128xf32>
    %cst_100 = arith.constant 1.000000e+00 : f32
    %387 = vector.broadcast %cst_100 : f32 to vector<2x128xf32>
    %388 = arith.subf %387, %381 : vector<2x128xf32>
    %389 = arith.mulf %388, %386 : vector<2x128xf32>
    %390 = arith.mulf %381, %347 : vector<2x128xf32>
    %391 = arith.addf %389, %390 : vector<2x128xf32>
    %c0_101 = arith.constant 0 : index
    %c0_102 = arith.constant 0 : index
    %392 = vector.load %arg10[%c0_101, %c0_102] : memref<128x512xf32, #tpu.memory_space<vmem>>, vector<128x512xf32>
    %cst_103 = arith.constant dense<0.000000e+00> : vector<2x512xf32>
    %393 = tpu.matmul %391, %392, %cst_103 {dimension_numbers = #tpu.dot_dimension_numbers<[1], [0], [0], [1], [0, 0, 1, 1], [], []>} : vector<2x128xf32>, vector<128x512xf32>, vector<2x512xf32> -> vector<2x512xf32>
    %c0_104 = arith.constant 0 : index
    %c0_105 = arith.constant 0 : index
    %394 = vector.load %arg11[%c0_104, %c0_105] : memref<1x512xf32, #tpu.memory_space<vmem>>, vector<1x512xf32>
    %395 = vector.broadcast %394 : vector<1x512xf32> to vector<2x512xf32>
    %396 = arith.addf %393, %395 : vector<2x512xf32>
    %397 = vector.extract_strided_slice %396 {offsets = [0, 0], sizes = [2, 384], strides = [1, 1]} : vector<2x512xf32> to vector<2x384xf32>
    %398 = vector.extract_strided_slice %396 {offsets = [0, 384], sizes = [2, 128], strides = [1, 1]} : vector<2x512xf32> to vector<2x128xf32>
    %399 = tpu.reduce_index %398 {axis = 1 : i32, kind = #tpu.reduction_kind<arg_max>} : vector<2x128xf32> -> vector<2xi32>
    %400 = vector.shape_cast %399 : vector<2xi32> to vector<2x1xi32>
    %401 = vector.broadcast %400 : vector<2x1xi32> to vector<2x128xi32>
    %402 = arith.cmpi eq, %0, %401 : vector<2x128xi32>
    %403 = arith.extui %402 : vector<2x128xi1> to vector<2x128xi32>
    %404 = arith.sitofp %403 : vector<2x128xi32> to vector<2x128xf32>
    %c0_106 = arith.constant 0 : index
    %c0_107 = arith.constant 0 : index
    %405 = vector.load %arg8[%c0_106, %c0_107] : memref<128x384xf32, #tpu.memory_space<vmem>>, vector<128x384xf32>
    %cst_108 = arith.constant dense<0.000000e+00> : vector<2x384xf32>
    %406 = tpu.matmul %404, %405, %cst_108 {dimension_numbers = #tpu.dot_dimension_numbers<[1], [0], [0], [1], [0, 0, 1, 1], [], []>} : vector<2x128xf32>, vector<128x384xf32>, vector<2x384xf32> -> vector<2x384xf32>
    %c0_109 = arith.constant 0 : index
    %c0_110 = arith.constant 0 : index
    %407 = vector.load %arg9[%c0_109, %c0_110] : memref<1x384xf32, #tpu.memory_space<vmem>>, vector<1x384xf32>
    %408 = vector.broadcast %407 : vector<1x384xf32> to vector<2x384xf32>
    %409 = arith.addf %406, %408 : vector<2x384xf32>
    %410 = vector.extract_strided_slice %409 {offsets = [0, 0], sizes = [2, 128], strides = [1, 1]} : vector<2x384xf32> to vector<2x128xf32>
    %411 = vector.extract_strided_slice %397 {offsets = [0, 0], sizes = [2, 128], strides = [1, 1]} : vector<2x384xf32> to vector<2x128xf32>
    %412 = arith.addf %410, %411 : vector<2x128xf32>
    %413 = arith.negf %412 : vector<2x128xf32>
    %414 = math.exp %413 : vector<2x128xf32>
    %cst_111 = arith.constant 1.000000e+00 : f32
    %415 = vector.broadcast %cst_111 : f32 to vector<2x128xf32>
    %416 = arith.addf %415, %414 : vector<2x128xf32>
    %417 = arith.divf %415, %416 : vector<2x128xf32>
    %418 = vector.extract_strided_slice %409 {offsets = [0, 128], sizes = [2, 128], strides = [1, 1]} : vector<2x384xf32> to vector<2x128xf32>
    %419 = vector.extract_strided_slice %397 {offsets = [0, 128], sizes = [2, 128], strides = [1, 1]} : vector<2x384xf32> to vector<2x128xf32>
    %420 = arith.addf %418, %419 : vector<2x128xf32>
    %421 = arith.negf %420 : vector<2x128xf32>
    %422 = math.exp %421 : vector<2x128xf32>
    %cst_112 = arith.constant 1.000000e+00 : f32
    %423 = vector.broadcast %cst_112 : f32 to vector<2x128xf32>
    %424 = arith.addf %423, %422 : vector<2x128xf32>
    %425 = arith.divf %423, %424 : vector<2x128xf32>
    %426 = vector.extract_strided_slice %409 {offsets = [0, 256], sizes = [2, 128], strides = [1, 1]} : vector<2x384xf32> to vector<2x128xf32>
    %427 = vector.extract_strided_slice %397 {offsets = [0, 256], sizes = [2, 128], strides = [1, 1]} : vector<2x384xf32> to vector<2x128xf32>
    %428 = arith.mulf %417, %427 : vector<2x128xf32>
    %429 = arith.addf %426, %428 : vector<2x128xf32>
    %430 = math.tanh %429 : vector<2x128xf32>
    %cst_113 = arith.constant 1.000000e+00 : f32
    %431 = vector.broadcast %cst_113 : f32 to vector<2x128xf32>
    %432 = arith.subf %431, %425 : vector<2x128xf32>
    %433 = arith.mulf %432, %430 : vector<2x128xf32>
    %434 = arith.mulf %425, %391 : vector<2x128xf32>
    %435 = arith.addf %433, %434 : vector<2x128xf32>
    %c0_114 = arith.constant 0 : index
    %c0_115 = arith.constant 0 : index
    %436 = vector.load %arg10[%c0_114, %c0_115] : memref<128x512xf32, #tpu.memory_space<vmem>>, vector<128x512xf32>
    %cst_116 = arith.constant dense<0.000000e+00> : vector<2x512xf32>
    %437 = tpu.matmul %435, %436, %cst_116 {dimension_numbers = #tpu.dot_dimension_numbers<[1], [0], [0], [1], [0, 0, 1, 1], [], []>} : vector<2x128xf32>, vector<128x512xf32>, vector<2x512xf32> -> vector<2x512xf32>
    %c0_117 = arith.constant 0 : index
    %c0_118 = arith.constant 0 : index
    %438 = vector.load %arg11[%c0_117, %c0_118] : memref<1x512xf32, #tpu.memory_space<vmem>>, vector<1x512xf32>
    %439 = vector.broadcast %438 : vector<1x512xf32> to vector<2x512xf32>
    %440 = arith.addf %437, %439 : vector<2x512xf32>
    %441 = vector.extract_strided_slice %440 {offsets = [0, 0], sizes = [2, 384], strides = [1, 1]} : vector<2x512xf32> to vector<2x384xf32>
    %442 = vector.extract_strided_slice %440 {offsets = [0, 384], sizes = [2, 128], strides = [1, 1]} : vector<2x512xf32> to vector<2x128xf32>
    %443 = tpu.reduce_index %442 {axis = 1 : i32, kind = #tpu.reduction_kind<arg_max>} : vector<2x128xf32> -> vector<2xi32>
    %444 = vector.shape_cast %443 : vector<2xi32> to vector<2x1xi32>
    %445 = vector.broadcast %444 : vector<2x1xi32> to vector<2x128xi32>
    %446 = arith.cmpi eq, %0, %445 : vector<2x128xi32>
    %447 = arith.extui %446 : vector<2x128xi1> to vector<2x128xi32>
    %448 = arith.sitofp %447 : vector<2x128xi32> to vector<2x128xf32>
    %c0_119 = arith.constant 0 : index
    %c0_120 = arith.constant 0 : index
    %449 = vector.load %arg8[%c0_119, %c0_120] : memref<128x384xf32, #tpu.memory_space<vmem>>, vector<128x384xf32>
    %cst_121 = arith.constant dense<0.000000e+00> : vector<2x384xf32>
    %450 = tpu.matmul %448, %449, %cst_121 {dimension_numbers = #tpu.dot_dimension_numbers<[1], [0], [0], [1], [0, 0, 1, 1], [], []>} : vector<2x128xf32>, vector<128x384xf32>, vector<2x384xf32> -> vector<2x384xf32>
    %c0_122 = arith.constant 0 : index
    %c0_123 = arith.constant 0 : index
    %451 = vector.load %arg9[%c0_122, %c0_123] : memref<1x384xf32, #tpu.memory_space<vmem>>, vector<1x384xf32>
    %452 = vector.broadcast %451 : vector<1x384xf32> to vector<2x384xf32>
    %453 = arith.addf %450, %452 : vector<2x384xf32>
    %454 = vector.extract_strided_slice %453 {offsets = [0, 0], sizes = [2, 128], strides = [1, 1]} : vector<2x384xf32> to vector<2x128xf32>
    %455 = vector.extract_strided_slice %441 {offsets = [0, 0], sizes = [2, 128], strides = [1, 1]} : vector<2x384xf32> to vector<2x128xf32>
    %456 = arith.addf %454, %455 : vector<2x128xf32>
    %457 = arith.negf %456 : vector<2x128xf32>
    %458 = math.exp %457 : vector<2x128xf32>
    %cst_124 = arith.constant 1.000000e+00 : f32
    %459 = vector.broadcast %cst_124 : f32 to vector<2x128xf32>
    %460 = arith.addf %459, %458 : vector<2x128xf32>
    %461 = arith.divf %459, %460 : vector<2x128xf32>
    %462 = vector.extract_strided_slice %453 {offsets = [0, 128], sizes = [2, 128], strides = [1, 1]} : vector<2x384xf32> to vector<2x128xf32>
    %463 = vector.extract_strided_slice %441 {offsets = [0, 128], sizes = [2, 128], strides = [1, 1]} : vector<2x384xf32> to vector<2x128xf32>
    %464 = arith.addf %462, %463 : vector<2x128xf32>
    %465 = arith.negf %464 : vector<2x128xf32>
    %466 = math.exp %465 : vector<2x128xf32>
    %cst_125 = arith.constant 1.000000e+00 : f32
    %467 = vector.broadcast %cst_125 : f32 to vector<2x128xf32>
    %468 = arith.addf %467, %466 : vector<2x128xf32>
    %469 = arith.divf %467, %468 : vector<2x128xf32>
    %470 = vector.extract_strided_slice %453 {offsets = [0, 256], sizes = [2, 128], strides = [1, 1]} : vector<2x384xf32> to vector<2x128xf32>
    %471 = vector.extract_strided_slice %441 {offsets = [0, 256], sizes = [2, 128], strides = [1, 1]} : vector<2x384xf32> to vector<2x128xf32>
    %472 = arith.mulf %461, %471 : vector<2x128xf32>
    %473 = arith.addf %470, %472 : vector<2x128xf32>
    %474 = math.tanh %473 : vector<2x128xf32>
    %cst_126 = arith.constant 1.000000e+00 : f32
    %475 = vector.broadcast %cst_126 : f32 to vector<2x128xf32>
    %476 = arith.subf %475, %469 : vector<2x128xf32>
    %477 = arith.mulf %476, %474 : vector<2x128xf32>
    %478 = arith.mulf %469, %435 : vector<2x128xf32>
    %479 = arith.addf %477, %478 : vector<2x128xf32>
    %c0_127 = arith.constant 0 : index
    %c0_128 = arith.constant 0 : index
    %480 = vector.load %arg10[%c0_127, %c0_128] : memref<128x512xf32, #tpu.memory_space<vmem>>, vector<128x512xf32>
    %cst_129 = arith.constant dense<0.000000e+00> : vector<2x512xf32>
    %481 = tpu.matmul %479, %480, %cst_129 {dimension_numbers = #tpu.dot_dimension_numbers<[1], [0], [0], [1], [0, 0, 1, 1], [], []>} : vector<2x128xf32>, vector<128x512xf32>, vector<2x512xf32> -> vector<2x512xf32>
    %c0_130 = arith.constant 0 : index
    %c0_131 = arith.constant 0 : index
    %482 = vector.load %arg11[%c0_130, %c0_131] : memref<1x512xf32, #tpu.memory_space<vmem>>, vector<1x512xf32>
    %483 = vector.broadcast %482 : vector<1x512xf32> to vector<2x512xf32>
    %484 = arith.addf %481, %483 : vector<2x512xf32>
    %485 = vector.extract_strided_slice %484 {offsets = [0, 0], sizes = [2, 384], strides = [1, 1]} : vector<2x512xf32> to vector<2x384xf32>
    %486 = vector.extract_strided_slice %484 {offsets = [0, 384], sizes = [2, 128], strides = [1, 1]} : vector<2x512xf32> to vector<2x128xf32>
    %487 = tpu.reduce_index %486 {axis = 1 : i32, kind = #tpu.reduction_kind<arg_max>} : vector<2x128xf32> -> vector<2xi32>
    %488 = vector.shape_cast %487 : vector<2xi32> to vector<2x1xi32>
    %489 = vector.broadcast %488 : vector<2x1xi32> to vector<2x128xi32>
    %490 = arith.cmpi eq, %0, %489 : vector<2x128xi32>
    %491 = arith.extui %490 : vector<2x128xi1> to vector<2x128xi32>
    %492 = arith.sitofp %491 : vector<2x128xi32> to vector<2x128xf32>
    %c0_132 = arith.constant 0 : index
    %c0_133 = arith.constant 0 : index
    %493 = vector.load %arg8[%c0_132, %c0_133] : memref<128x384xf32, #tpu.memory_space<vmem>>, vector<128x384xf32>
    %cst_134 = arith.constant dense<0.000000e+00> : vector<2x384xf32>
    %494 = tpu.matmul %492, %493, %cst_134 {dimension_numbers = #tpu.dot_dimension_numbers<[1], [0], [0], [1], [0, 0, 1, 1], [], []>} : vector<2x128xf32>, vector<128x384xf32>, vector<2x384xf32> -> vector<2x384xf32>
    %c0_135 = arith.constant 0 : index
    %c0_136 = arith.constant 0 : index
    %495 = vector.load %arg9[%c0_135, %c0_136] : memref<1x384xf32, #tpu.memory_space<vmem>>, vector<1x384xf32>
    %496 = vector.broadcast %495 : vector<1x384xf32> to vector<2x384xf32>
    %497 = arith.addf %494, %496 : vector<2x384xf32>
    %498 = vector.extract_strided_slice %497 {offsets = [0, 0], sizes = [2, 128], strides = [1, 1]} : vector<2x384xf32> to vector<2x128xf32>
    %499 = vector.extract_strided_slice %485 {offsets = [0, 0], sizes = [2, 128], strides = [1, 1]} : vector<2x384xf32> to vector<2x128xf32>
    %500 = arith.addf %498, %499 : vector<2x128xf32>
    %501 = arith.negf %500 : vector<2x128xf32>
    %502 = math.exp %501 : vector<2x128xf32>
    %cst_137 = arith.constant 1.000000e+00 : f32
    %503 = vector.broadcast %cst_137 : f32 to vector<2x128xf32>
    %504 = arith.addf %503, %502 : vector<2x128xf32>
    %505 = arith.divf %503, %504 : vector<2x128xf32>
    %506 = vector.extract_strided_slice %497 {offsets = [0, 128], sizes = [2, 128], strides = [1, 1]} : vector<2x384xf32> to vector<2x128xf32>
    %507 = vector.extract_strided_slice %485 {offsets = [0, 128], sizes = [2, 128], strides = [1, 1]} : vector<2x384xf32> to vector<2x128xf32>
    %508 = arith.addf %506, %507 : vector<2x128xf32>
    %509 = arith.negf %508 : vector<2x128xf32>
    %510 = math.exp %509 : vector<2x128xf32>
    %cst_138 = arith.constant 1.000000e+00 : f32
    %511 = vector.broadcast %cst_138 : f32 to vector<2x128xf32>
    %512 = arith.addf %511, %510 : vector<2x128xf32>
    %513 = arith.divf %511, %512 : vector<2x128xf32>
    %514 = vector.extract_strided_slice %497 {offsets = [0, 256], sizes = [2, 128], strides = [1, 1]} : vector<2x384xf32> to vector<2x128xf32>
    %515 = vector.extract_strided_slice %485 {offsets = [0, 256], sizes = [2, 128], strides = [1, 1]} : vector<2x384xf32> to vector<2x128xf32>
    %516 = arith.mulf %505, %515 : vector<2x128xf32>
    %517 = arith.addf %514, %516 : vector<2x128xf32>
    %518 = math.tanh %517 : vector<2x128xf32>
    %cst_139 = arith.constant 1.000000e+00 : f32
    %519 = vector.broadcast %cst_139 : f32 to vector<2x128xf32>
    %520 = arith.subf %519, %513 : vector<2x128xf32>
    %521 = arith.mulf %520, %518 : vector<2x128xf32>
    %522 = arith.mulf %513, %479 : vector<2x128xf32>
    %523 = arith.addf %521, %522 : vector<2x128xf32>
    %c0_140 = arith.constant 0 : index
    %c0_141 = arith.constant 0 : index
    %524 = vector.load %arg10[%c0_140, %c0_141] : memref<128x512xf32, #tpu.memory_space<vmem>>, vector<128x512xf32>
    %cst_142 = arith.constant dense<0.000000e+00> : vector<2x512xf32>
    %525 = tpu.matmul %523, %524, %cst_142 {dimension_numbers = #tpu.dot_dimension_numbers<[1], [0], [0], [1], [0, 0, 1, 1], [], []>} : vector<2x128xf32>, vector<128x512xf32>, vector<2x512xf32> -> vector<2x512xf32>
    %c0_143 = arith.constant 0 : index
    %c0_144 = arith.constant 0 : index
    %526 = vector.load %arg11[%c0_143, %c0_144] : memref<1x512xf32, #tpu.memory_space<vmem>>, vector<1x512xf32>
    %527 = vector.broadcast %526 : vector<1x512xf32> to vector<2x512xf32>
    %528 = arith.addf %525, %527 : vector<2x512xf32>
    %529 = vector.extract_strided_slice %528 {offsets = [0, 0], sizes = [2, 384], strides = [1, 1]} : vector<2x512xf32> to vector<2x384xf32>
    %530 = vector.extract_strided_slice %528 {offsets = [0, 384], sizes = [2, 128], strides = [1, 1]} : vector<2x512xf32> to vector<2x128xf32>
    %531 = tpu.reduce_index %530 {axis = 1 : i32, kind = #tpu.reduction_kind<arg_max>} : vector<2x128xf32> -> vector<2xi32>
    %532 = vector.shape_cast %531 : vector<2xi32> to vector<2x1xi32>
    %533 = vector.broadcast %532 : vector<2x1xi32> to vector<2x128xi32>
    %534 = arith.cmpi eq, %0, %533 : vector<2x128xi32>
    %535 = arith.extui %534 : vector<2x128xi1> to vector<2x128xi32>
    %536 = arith.sitofp %535 : vector<2x128xi32> to vector<2x128xf32>
    %c0_145 = arith.constant 0 : index
    %c0_146 = arith.constant 0 : index
    %537 = vector.load %arg8[%c0_145, %c0_146] : memref<128x384xf32, #tpu.memory_space<vmem>>, vector<128x384xf32>
    %cst_147 = arith.constant dense<0.000000e+00> : vector<2x384xf32>
    %538 = tpu.matmul %536, %537, %cst_147 {dimension_numbers = #tpu.dot_dimension_numbers<[1], [0], [0], [1], [0, 0, 1, 1], [], []>} : vector<2x128xf32>, vector<128x384xf32>, vector<2x384xf32> -> vector<2x384xf32>
    %c0_148 = arith.constant 0 : index
    %c0_149 = arith.constant 0 : index
    %539 = vector.load %arg9[%c0_148, %c0_149] : memref<1x384xf32, #tpu.memory_space<vmem>>, vector<1x384xf32>
    %540 = vector.broadcast %539 : vector<1x384xf32> to vector<2x384xf32>
    %541 = arith.addf %538, %540 : vector<2x384xf32>
    %542 = vector.extract_strided_slice %541 {offsets = [0, 0], sizes = [2, 128], strides = [1, 1]} : vector<2x384xf32> to vector<2x128xf32>
    %543 = vector.extract_strided_slice %529 {offsets = [0, 0], sizes = [2, 128], strides = [1, 1]} : vector<2x384xf32> to vector<2x128xf32>
    %544 = arith.addf %542, %543 : vector<2x128xf32>
    %545 = arith.negf %544 : vector<2x128xf32>
    %546 = math.exp %545 : vector<2x128xf32>
    %cst_150 = arith.constant 1.000000e+00 : f32
    %547 = vector.broadcast %cst_150 : f32 to vector<2x128xf32>
    %548 = arith.addf %547, %546 : vector<2x128xf32>
    %549 = arith.divf %547, %548 : vector<2x128xf32>
    %550 = vector.extract_strided_slice %541 {offsets = [0, 128], sizes = [2, 128], strides = [1, 1]} : vector<2x384xf32> to vector<2x128xf32>
    %551 = vector.extract_strided_slice %529 {offsets = [0, 128], sizes = [2, 128], strides = [1, 1]} : vector<2x384xf32> to vector<2x128xf32>
    %552 = arith.addf %550, %551 : vector<2x128xf32>
    %553 = arith.negf %552 : vector<2x128xf32>
    %554 = math.exp %553 : vector<2x128xf32>
    %cst_151 = arith.constant 1.000000e+00 : f32
    %555 = vector.broadcast %cst_151 : f32 to vector<2x128xf32>
    %556 = arith.addf %555, %554 : vector<2x128xf32>
    %557 = arith.divf %555, %556 : vector<2x128xf32>
    %558 = vector.extract_strided_slice %541 {offsets = [0, 256], sizes = [2, 128], strides = [1, 1]} : vector<2x384xf32> to vector<2x128xf32>
    %559 = vector.extract_strided_slice %529 {offsets = [0, 256], sizes = [2, 128], strides = [1, 1]} : vector<2x384xf32> to vector<2x128xf32>
    %560 = arith.mulf %549, %559 : vector<2x128xf32>
    %561 = arith.addf %558, %560 : vector<2x128xf32>
    %562 = math.tanh %561 : vector<2x128xf32>
    %cst_152 = arith.constant 1.000000e+00 : f32
    %563 = vector.broadcast %cst_152 : f32 to vector<2x128xf32>
    %564 = arith.subf %563, %557 : vector<2x128xf32>
    %565 = arith.mulf %564, %562 : vector<2x128xf32>
    %566 = arith.mulf %557, %523 : vector<2x128xf32>
    %567 = arith.addf %565, %566 : vector<2x128xf32>
    %c0_153 = arith.constant 0 : index
    %c0_154 = arith.constant 0 : index
    %568 = vector.load %arg10[%c0_153, %c0_154] : memref<128x512xf32, #tpu.memory_space<vmem>>, vector<128x512xf32>
    %cst_155 = arith.constant dense<0.000000e+00> : vector<2x512xf32>
    %569 = tpu.matmul %567, %568, %cst_155 {dimension_numbers = #tpu.dot_dimension_numbers<[1], [0], [0], [1], [0, 0, 1, 1], [], []>} : vector<2x128xf32>, vector<128x512xf32>, vector<2x512xf32> -> vector<2x512xf32>
    %c0_156 = arith.constant 0 : index
    %c0_157 = arith.constant 0 : index
    %570 = vector.load %arg11[%c0_156, %c0_157] : memref<1x512xf32, #tpu.memory_space<vmem>>, vector<1x512xf32>
    %571 = vector.broadcast %570 : vector<1x512xf32> to vector<2x512xf32>
    %572 = arith.addf %569, %571 : vector<2x512xf32>
    %573 = vector.extract_strided_slice %572 {offsets = [0, 0], sizes = [2, 384], strides = [1, 1]} : vector<2x512xf32> to vector<2x384xf32>
    %574 = vector.extract_strided_slice %572 {offsets = [0, 384], sizes = [2, 128], strides = [1, 1]} : vector<2x512xf32> to vector<2x128xf32>
    %575 = tpu.reduce_index %574 {axis = 1 : i32, kind = #tpu.reduction_kind<arg_max>} : vector<2x128xf32> -> vector<2xi32>
    %576 = vector.shape_cast %575 : vector<2xi32> to vector<2x1xi32>
    %577 = vector.broadcast %576 : vector<2x1xi32> to vector<2x128xi32>
    %578 = arith.cmpi eq, %0, %577 : vector<2x128xi32>
    %579 = arith.extui %578 : vector<2x128xi1> to vector<2x128xi32>
    %580 = arith.sitofp %579 : vector<2x128xi32> to vector<2x128xf32>
    %c0_158 = arith.constant 0 : index
    %c0_159 = arith.constant 0 : index
    %581 = vector.load %arg8[%c0_158, %c0_159] : memref<128x384xf32, #tpu.memory_space<vmem>>, vector<128x384xf32>
    %cst_160 = arith.constant dense<0.000000e+00> : vector<2x384xf32>
    %582 = tpu.matmul %580, %581, %cst_160 {dimension_numbers = #tpu.dot_dimension_numbers<[1], [0], [0], [1], [0, 0, 1, 1], [], []>} : vector<2x128xf32>, vector<128x384xf32>, vector<2x384xf32> -> vector<2x384xf32>
    %c0_161 = arith.constant 0 : index
    %c0_162 = arith.constant 0 : index
    %583 = vector.load %arg9[%c0_161, %c0_162] : memref<1x384xf32, #tpu.memory_space<vmem>>, vector<1x384xf32>
    %584 = vector.broadcast %583 : vector<1x384xf32> to vector<2x384xf32>
    %585 = arith.addf %582, %584 : vector<2x384xf32>
    %586 = vector.extract_strided_slice %585 {offsets = [0, 0], sizes = [2, 128], strides = [1, 1]} : vector<2x384xf32> to vector<2x128xf32>
    %587 = vector.extract_strided_slice %573 {offsets = [0, 0], sizes = [2, 128], strides = [1, 1]} : vector<2x384xf32> to vector<2x128xf32>
    %588 = arith.addf %586, %587 : vector<2x128xf32>
    %589 = arith.negf %588 : vector<2x128xf32>
    %590 = math.exp %589 : vector<2x128xf32>
    %cst_163 = arith.constant 1.000000e+00 : f32
    %591 = vector.broadcast %cst_163 : f32 to vector<2x128xf32>
    %592 = arith.addf %591, %590 : vector<2x128xf32>
    %593 = arith.divf %591, %592 : vector<2x128xf32>
    %594 = vector.extract_strided_slice %585 {offsets = [0, 128], sizes = [2, 128], strides = [1, 1]} : vector<2x384xf32> to vector<2x128xf32>
    %595 = vector.extract_strided_slice %573 {offsets = [0, 128], sizes = [2, 128], strides = [1, 1]} : vector<2x384xf32> to vector<2x128xf32>
    %596 = arith.addf %594, %595 : vector<2x128xf32>
    %597 = arith.negf %596 : vector<2x128xf32>
    %598 = math.exp %597 : vector<2x128xf32>
    %cst_164 = arith.constant 1.000000e+00 : f32
    %599 = vector.broadcast %cst_164 : f32 to vector<2x128xf32>
    %600 = arith.addf %599, %598 : vector<2x128xf32>
    %601 = arith.divf %599, %600 : vector<2x128xf32>
    %602 = vector.extract_strided_slice %585 {offsets = [0, 256], sizes = [2, 128], strides = [1, 1]} : vector<2x384xf32> to vector<2x128xf32>
    %603 = vector.extract_strided_slice %573 {offsets = [0, 256], sizes = [2, 128], strides = [1, 1]} : vector<2x384xf32> to vector<2x128xf32>
    %604 = arith.mulf %593, %603 : vector<2x128xf32>
    %605 = arith.addf %602, %604 : vector<2x128xf32>
    %606 = math.tanh %605 : vector<2x128xf32>
    %cst_165 = arith.constant 1.000000e+00 : f32
    %607 = vector.broadcast %cst_165 : f32 to vector<2x128xf32>
    %608 = arith.subf %607, %601 : vector<2x128xf32>
    %609 = arith.mulf %608, %606 : vector<2x128xf32>
    %610 = arith.mulf %601, %567 : vector<2x128xf32>
    %611 = arith.addf %609, %610 : vector<2x128xf32>
    %c0_166 = arith.constant 0 : index
    %c0_167 = arith.constant 0 : index
    %612 = vector.load %arg10[%c0_166, %c0_167] : memref<128x512xf32, #tpu.memory_space<vmem>>, vector<128x512xf32>
    %cst_168 = arith.constant dense<0.000000e+00> : vector<2x512xf32>
    %613 = tpu.matmul %611, %612, %cst_168 {dimension_numbers = #tpu.dot_dimension_numbers<[1], [0], [0], [1], [0, 0, 1, 1], [], []>} : vector<2x128xf32>, vector<128x512xf32>, vector<2x512xf32> -> vector<2x512xf32>
    %c0_169 = arith.constant 0 : index
    %c0_170 = arith.constant 0 : index
    %614 = vector.load %arg11[%c0_169, %c0_170] : memref<1x512xf32, #tpu.memory_space<vmem>>, vector<1x512xf32>
    %615 = vector.broadcast %614 : vector<1x512xf32> to vector<2x512xf32>
    %616 = arith.addf %613, %615 : vector<2x512xf32>
    %617 = vector.extract_strided_slice %616 {offsets = [0, 384], sizes = [2, 128], strides = [1, 1]} : vector<2x512xf32> to vector<2x128xf32>
    %618 = vector.shape_cast %316 : vector<2x128xf32> to vector<2x1x128xf32>
    %619 = vector.shape_cast %354 : vector<2x128xf32> to vector<2x1x128xf32>
    %620 = vector.shape_cast %398 : vector<2x128xf32> to vector<2x1x128xf32>
    %621 = vector.shape_cast %442 : vector<2x128xf32> to vector<2x1x128xf32>
    %622 = vector.shape_cast %486 : vector<2x128xf32> to vector<2x1x128xf32>
    %623 = vector.shape_cast %530 : vector<2x128xf32> to vector<2x1x128xf32>
    %624 = vector.shape_cast %574 : vector<2x128xf32> to vector<2x1x128xf32>
    %625 = vector.shape_cast %617 : vector<2x128xf32> to vector<2x1x128xf32>
    %626 = tpu.concatenate %618, %619, %620, %621, %622, %623, %624, %625 in 1 : vector<2x1x128xf32>, vector<2x1x128xf32>, vector<2x1x128xf32>, vector<2x1x128xf32>, vector<2x1x128xf32>, vector<2x1x128xf32>, vector<2x1x128xf32>, vector<2x1x128xf32> -> vector<2x8x128xf32>
    %c0_171 = arith.constant 0 : index
    %c0_172 = arith.constant 0 : index
    %c0_173 = arith.constant 0 : index
    %627 = vector.load %arg12[%c0_171, %c0_172, %c0_173] : memref<2x8x128xf32, #tpu.memory_space<vmem>>, vector<2x8x128xf32>
    tpu.vector_store %arg12[%c0_171, %c0_172, %c0_173], %626 {strides = array<i32>} : memref<2x8x128xf32, #tpu.memory_space<vmem>>, vector<2x8x128xf32>,
    return
  }
  func.func @transform_0(%arg0: i32) -> (i32, i32) {
    %c0_i32 = arith.constant 0 : i32
    %c0_i32_0 = arith.constant 0 : i32
    %c0_i32_1 = arith.constant 0 : i32
    return %c0_i32, %c0_i32_0 : i32, i32
  }
  func.func @transform_1(%arg0: i32) -> (i32, i32) {
    %c0_i32 = arith.constant 0 : i32
    %c0_i32_0 = arith.constant 0 : i32
    %c0_i32_1 = arith.constant 0 : i32
    return %c0_i32, %c0_i32_0 : i32, i32
  }
  func.func @transform_2(%arg0: i32) -> (i32, i32) {
    %c0_i32 = arith.constant 0 : i32
    %c0_i32_0 = arith.constant 0 : i32
    %c0_i32_1 = arith.constant 0 : i32
    return %c0_i32, %c0_i32_0 : i32, i32
  }
  func.func @transform_3(%arg0: i32) -> (i32, i32) {
    %c0_i32 = arith.constant 0 : i32
    %c0_i32_0 = arith.constant 0 : i32
    %c0_i32_1 = arith.constant 0 : i32
    return %c0_i32, %c0_i32_0 : i32, i32
  }
  func.func @transform_4(%arg0: i32) -> (i32, i32) {
    %c0_i32 = arith.constant 0 : i32
    %c0_i32_0 = arith.constant 0 : i32
    %c0_i32_1 = arith.constant 0 : i32
    return %c0_i32, %c0_i32_0 : i32, i32
  }
  func.func @transform_5(%arg0: i32) -> (i32, i32) {
    %c0_i32 = arith.constant 0 : i32
    %c0_i32_0 = arith.constant 0 : i32
    %c0_i32_1 = arith.constant 0 : i32
    return %c0_i32, %c0_i32_0 : i32, i32
  }
  func.func @transform_6(%arg0: i32) -> (i32, i32) {
    %c0_i32 = arith.constant 0 : i32
    %c0_i32_0 = arith.constant 0 : i32
    %c0_i32_1 = arith.constant 0 : i32
    return %c0_i32, %c0_i32_0 : i32, i32
  }
  func.func @transform_7(%arg0: i32) -> (i32, i32) {
    %c0_i32 = arith.constant 0 : i32
    %c0_i32_0 = arith.constant 0 : i32
    %c0_i32_1 = arith.constant 0 : i32
    return %c0_i32, %c0_i32_0 : i32, i32
  }
  func.func @transform_8(%arg0: i32) -> (i32, i32) {
    %c0_i32 = arith.constant 0 : i32
    %c0_i32_0 = arith.constant 0 : i32
    %c0_i32_1 = arith.constant 0 : i32
    return %c0_i32, %c0_i32_0 : i32, i32
  }
  func.func @transform_9(%arg0: i32) -> (i32, i32) {
    %c0_i32 = arith.constant 0 : i32
    %c0_i32_0 = arith.constant 0 : i32
    %c0_i32_1 = arith.constant 0 : i32
    return %c0_i32, %c0_i32_0 : i32, i32
  }
  func.func @transform_10(%arg0: i32) -> (i32, i32) {
    %c0_i32 = arith.constant 0 : i32
    %c0_i32_0 = arith.constant 0 : i32
    %c0_i32_1 = arith.constant 0 : i32
    return %c0_i32, %c0_i32_0 : i32, i32
  }
  func.func @transform_11(%arg0: i32) -> (i32, i32, i32) {
    %c0_i32 = arith.constant 0 : i32
    %c0_i32_0 = arith.constant 0 : i32
    %c0_i32_1 = arith.constant 0 : i32
    %c0_i32_2 = arith.constant 0 : i32
    return %c0_i32, %c0_i32_0, %c0_i32_1 : i32, i32, i32
  }
}

</mosaic_0001>

<llo_original>
// kernel: tpu_custom_call.1
$region0: #{tpu_custom_call.1}
  #allocation0 [shape = 'u32[]', space=smem, size = 0x4, offset = 0x4, fixed_abs, tag = 'smem constant byte address 0x4 - core index']
  #allocation1 [shape = 'u32[144,128]{1,0:T(1,128)}', space=vmem, size = 0x12000, scoped, tag = 'internal scratch']
  %s0 = inlined_call_operand.vmem [shape: s32[2,1], index: 0, kind: input, shape index: {}]
  %s1 = inlined_call_operand.vmem [shape: s32[2,1], index: 1, kind: input, shape index: {}]
  %s2 = inlined_call_operand.hbm [shape: f32[16,32], index: 2, kind: input, shape index: {}]
  %s3 = inlined_call_operand.hbm [shape: f32[32,384], index: 3, kind: input, shape index: {}]
  %s4 = inlined_call_operand.vmem [shape: f32[1,384], index: 4, kind: input, shape index: {}]
  %s5 = inlined_call_operand.hbm [shape: f32[128,384], index: 5, kind: input, shape index: {}]
  %s6 = inlined_call_operand.vmem [shape: f32[1,128], index: 6, kind: input, shape index: {}]
  %s7 = inlined_call_operand.hbm [shape: f32[128,384], index: 7, kind: input, shape index: {}]
  %s8 = inlined_call_operand.vmem [shape: f32[1,384], index: 8, kind: input, shape index: {}]
  %s9 = inlined_call_operand.hbm [shape: f32[128,512], index: 9, kind: input, shape index: {}]
  %s10 = inlined_call_operand.vmem [shape: f32[1,512], index: 10, kind: input, shape index: {}]
  %s11 = inlined_call_operand.hbm [shape: f32[2,8,128], index: 11, kind: output, shape index: {}]
  %s12 = sld [smem:[#allocation0]]
  $region74: #{tpu_custom_call.1} parent=0
    _
  %s14 = ssub.s32 1, %s12
  %s15 = scalar_select 0, %s14, %s12
  $region1: #{tpu_custom_call.1} parent=0
    #allocation2 [shape = 'u8[8192]{0}', space=vmem, size = 0x2000, scoped, tag = 'input window, operand 2, single buffered']
    #allocation3 [shape = 's32[1]{0}', space=sflag, size = 0x4, scoped, tag = 'scoped memory for tpu_custom_call.1']
    #allocation4 [shape = 's32[1]{0}', space=sflag, size = 0x4, scoped, tag = 'scoped memory for tpu_custom_call.1']
    #allocation5 [shape = 'u8[49152]{0}', space=vmem, size = 0xc000, scoped, tag = 'input window, operand 3, single buffered']
    #allocation6 [shape = 's32[1]{0}', space=sflag, size = 0x4, scoped, tag = 'scoped memory for tpu_custom_call.1']
    #allocation7 [shape = 'u8[196608]{0}', space=vmem, size = 0x30000, scoped, tag = 'input window, operand 5, single buffered']
    #allocation8 [shape = 'u8[196608]{0}', space=vmem, size = 0x30000, scoped, tag = 'input window, operand 7, single buffered']
    #allocation9 [shape = 's32[1]{0}', space=sflag, size = 0x4, scoped, tag = 'scoped memory for tpu_custom_call.1']
    #allocation10 [shape = 'u8[262144]{0}', space=vmem, size = 0x40000, scoped, tag = 'input window, operand 9, single buffered']
    #allocation11 [shape = 'u8[8192]{0}', space=vmem, size = 0x2000, scoped, tag = 'output window, operand 0, single buffered']
    %16 = vsyncpa [#allocation3], 0
    %17 = vsyncpa [#allocation6], 0
    %18 = vsyncpa [#allocation9], 0
    %19 = vsyncpa [#allocation4], 0
    // Predicated region
    $region2: #{tpu_custom_call.1} parent=1 // pred_check
      _
    $region3: #{tpu_custom_call.1} parent=1 // pred_check_branch
      %21 = sbr.rel (0) target = $region5
    $region4: #{tpu_custom_call.1} parent=1 // pred_region
      _
    $region5: #{tpu_custom_call.1} parent=1 // pred_fallthru
      _
    // Predicated region
    $region6: #{tpu_custom_call.1} parent=1 // pred_check
      _
    $region7: #{tpu_custom_call.1} parent=1 // pred_check_branch
      %23 = sbr.rel (0) target = $region9
    $region8: #{tpu_custom_call.1} parent=1 // pred_region
      _
    $region9: #{tpu_custom_call.1} parent=1 // pred_fallthru
      _
    // Predicated region
    $region10: #{tpu_custom_call.1} parent=1 // pred_check
      _
    $region11: #{tpu_custom_call.1} parent=1 // pred_check_branch
      %25 = sbr.rel (0) target = $region13
    $region12: #{tpu_custom_call.1} parent=1 // pred_region
      %s27 = ssub.s32 256, 256
      %28 = vsyncadd [#allocation3], %s27
      %s29 = sshll.u32 [#allocation2], 4
      %s30 = int_to_ptr.vmem [resolvable:$true] %s29
      %35 = dma.hbm_to_vmem [thread:$0]  %s2, 256, %s30, [#allocation3], 128, 128, 8
    $region13: #{tpu_custom_call.1} parent=1 // pred_fallthru
      _
    // Predicated region
    $region14: #{tpu_custom_call.1} parent=1 // pred_check
      _
    $region15: #{tpu_custom_call.1} parent=1 // pred_check_branch
      %37 = sbr.rel (0) target = $region17
    $region16: #{tpu_custom_call.1} parent=1 // pred_region
      %s39 = ssub.s32 1536, 1536
      %40 = vsyncadd [#allocation6], %s39
      %s41 = sshll.u32 [#allocation5], 4
      %s42 = int_to_ptr.vmem [resolvable:$true] %s41
      %47 = dma.hbm_to_vmem [thread:$0]  %s3, 1536, %s42, [#allocation6], 384, 384, 24
    $region17: #{tpu_custom_call.1} parent=1 // pred_fallthru
      _
    // Predicated region
    $region18: #{tpu_custom_call.1} parent=1 // pred_check
      _
    $region19: #{tpu_custom_call.1} parent=1 // pred_check_branch
      %49 = sbr.rel (0) target = $region21
    $region20: #{tpu_custom_call.1} parent=1 // pred_region
      _
    $region21: #{tpu_custom_call.1} parent=1 // pred_fallthru
      _
    // Predicated region
    $region22: #{tpu_custom_call.1} parent=1 // pred_check
      _
    $region23: #{tpu_custom_call.1} parent=1 // pred_check_branch
      %51 = sbr.rel (0) target = $region25
    $region24: #{tpu_custom_call.1} parent=1 // pred_region
      %s53 = ssub.s32 6144, 6144
      %54 = vsyncadd [#allocation6], %s53
      %s55 = sshll.u32 [#allocation7], 4
      %s56 = int_to_ptr.vmem [resolvable:$true] %s55
      %61 = dma.hbm_to_vmem [thread:$0]  %s5, 6144, %s56, [#allocation6], 384, 384, 24
    $region25: #{tpu_custom_call.1} parent=1 // pred_fallthru
      _
    // Predicated region
    $region26: #{tpu_custom_call.1} parent=1 // pred_check
      _
    $region27: #{tpu_custom_call.1} parent=1 // pred_check_branch
      %63 = sbr.rel (0) target = $region29
    $region28: #{tpu_custom_call.1} parent=1 // pred_region
      _
    $region29: #{tpu_custom_call.1} parent=1 // pred_fallthru
      _
    // Predicated region
    $region30: #{tpu_custom_call.1} parent=1 // pred_check
      _
    $region31: #{tpu_custom_call.1} parent=1 // pred_check_branch
      %65 = sbr.rel (0) target = $region33
    $region32: #{tpu_custom_call.1} parent=1 // pred_region
      %s67 = ssub.s32 6144, 6144
      %68 = vsyncadd [#allocation9], %s67
      %s69 = sshll.u32 [#allocation8], 4
      %s70 = int_to_ptr.vmem [resolvable:$true] %s69
      %75 = dma.hbm_to_vmem [thread:$0]  %s7, 6144, %s70, [#allocation9], 384, 384, 24
    $region33: #{tpu_custom_call.1} parent=1 // pred_fallthru
      _
    // Predicated region
    $region34: #{tpu_custom_call.1} parent=1 // pred_check
      _
    $region35: #{tpu_custom_call.1} parent=1 // pred_check_branch
      %77 = sbr.rel (0) target = $region37
    $region36: #{tpu_custom_call.1} parent=1 // pred_region
      _
    $region37: #{tpu_custom_call.1} parent=1 // pred_fallthru
      _
    // Predicated region
    $region38: #{tpu_custom_call.1} parent=1 // pred_check
      _
    $region39: #{tpu_custom_call.1} parent=1 // pred_check_branch
      %79 = sbr.rel (0) target = $region41
    $region40: #{tpu_custom_call.1} parent=1 // pred_region
      %s81 = ssub.s32 8192, 8192
      %82 = vsyncadd [#allocation9], %s81
      %s83 = sshll.u32 [#allocation10], 4
      %s84 = int_to_ptr.vmem [resolvable:$true] %s83
      %89 = dma.hbm_to_vmem [thread:$0]  %s9, 8192, %s84, [#allocation9], 512, 512, 32
    $region41: #{tpu_custom_call.1} parent=1 // pred_fallthru
      _
    // Predicated region
    $region42: #{tpu_custom_call.1} parent=1 // pred_check
      _
    $region43: #{tpu_custom_call.1} parent=1 // pred_check_branch
      %91 = sbr.rel (0) target = $region45
    $region44: #{tpu_custom_call.1} parent=1 // pred_region
      _
    $region45: #{tpu_custom_call.1} parent=1 // pred_fallthru
      _
    // Predicated region
    $region46: #{tpu_custom_call.1} parent=1 // pred_check
      _
    $region47: #{tpu_custom_call.1} parent=1 // pred_check_branch
      %93 = sbr.rel (0) target = $region49
    $region48: #{tpu_custom_call.1} parent=1 // pred_region
      %94 = dma.done [#allocation3], 256
    $region49: #{tpu_custom_call.1} parent=1 // pred_fallthru
      _
    // Predicated region
    $region50: #{tpu_custom_call.1} parent=1 // pred_check
      _
    $region51: #{tpu_custom_call.1} parent=1 // pred_check_branch
      %96 = sbr.rel (0) target = $region53
    $region52: #{tpu_custom_call.1} parent=1 // pred_region
      %97 = dma.done [#allocation6], 1536
    $region53: #{tpu_custom_call.1} parent=1 // pred_fallthru
      _
    // Predicated region
    $region54: #{tpu_custom_call.1} parent=1 // pred_check
      _
    $region55: #{tpu_custom_call.1} parent=1 // pred_check_branch
      %99 = sbr.rel (0) target = $region57
    $region56: #{tpu_custom_call.1} parent=1 // pred_region
      %100 = dma.done [#allocation6], 6144
    $region57: #{tpu_custom_call.1} parent=1 // pred_fallthru
      _
    // Predicated region
    $region58: #{tpu_custom_call.1} parent=1 // pred_check
      _
    $region59: #{tpu_custom_call.1} parent=1 // pred_check_branch
      %102 = sbr.rel (0) target = $region61
    $region60: #{tpu_custom_call.1} parent=1 // pred_region
      %103 = dma.done [#allocation9], 6144
    $region61: #{tpu_custom_call.1} parent=1 // pred_fallthru
      _
    // Predicated region
    $region62: #{tpu_custom_call.1} parent=1 // pred_check
      _
    $region63: #{tpu_custom_call.1} parent=1 // pred_check_branch
      %105 = sbr.rel (0) target = $region65
    $region64: #{tpu_custom_call.1} parent=1 // pred_region
      %106 = dma.done [#allocation9], 8192
    $region65: #{tpu_custom_call.1} parent=1 // pred_fallthru
      _
    %v107 = vlaneseq
    %v108 = vand.u32 %v107, 127
    %v109 = vld [vmem:[%s0] sm:$0x3]
    %v110 = vld [vmem:[#allocation2] sm:$0xff]
    %v111 = vld [vmem:[#allocation2 + $0x8] sm:$0xff]
    %v112 = vld [vmem:[#allocation5] sm:$0xff]
    %v113 = vld [vmem:[#allocation5 + $0x8] sm:$0xff]
    %v114 = vld [vmem:[#allocation5 + $0x10] sm:$0xff]
    %v115 = vld [vmem:[#allocation5 + $0x18] sm:$0xff]
    %v116 = vld [vmem:[#allocation5 + $0x20] sm:$0xff]
    %v117 = vld [vmem:[#allocation5 + $0x28] sm:$0xff]
    %v118 = vld [vmem:[#allocation5 + $0x30] sm:$0xff]
    %v119 = vld [vmem:[#allocation5 + $0x38] sm:$0xff]
    %v120 = vld [vmem:[#allocation5 + $0x40] sm:$0xff]
    %v121 = vld [vmem:[#allocation5 + $0x48] sm:$0xff]
    %v122 = vld [vmem:[#allocation5 + $0x50] sm:$0xff]
    %v123 = vld [vmem:[#allocation5 + $0x58] sm:$0xff]
    %v124 = vld [vmem:[%s4] sm:$0x7]
    %v126 = vlaneseq
    %v127 = vshrl.u32 %v126, 7
    %v128 = vsub.s32 0, %v127
    %v129 = vrot.slane %v124, %v128
    %v130 = vlaneseq
    %v131 = vshrl.u32 %v130, 7
    %v132 = vsub.s32 1, %v131
    %v133 = vrot.slane %v124, %v132
    %v134 = vlaneseq
    %v135 = vshrl.u32 %v134, 7
    %v136 = vsub.s32 2, %v135
    %v137 = vrot.slane %v124, %v136
    %vm141 = vcmask 261120
    %v143 = vsel %vm141, %v110, 0
    %v146 = vsel %vm141, %v111, 0
    %148 = vmatprep.subr.mxu0 %v113
    %149 = vmatpush1.msra.mxu0 %v112
    %150 = vmatprep.subr.mxu0 %v116
    %151 = vmatpush1.msra.mxu0 %v115
    %152 = vmatprep.subr.mxu0 %v119
    %153 = vmatpush1.msra.mxu0 %v118
    %154 = vmatprep.subr.mxu0 %v122
    %155 = vmatpush1.msra.mxu0 %v121
    %156 = vmatprep.subr.mxu0 0.0
    %157 = vmatpush1.msra.mxu0 0.0
    %158 = vmatprep.subr.mxu0 0.0
    %159 = vmatpush1.msra.mxu0 0.0
    %160 = vmatprep.subr.mxu0 0.0
    %161 = vmatpush1.msra.mxu0 0.0
    %162 = vmatprep.subr.mxu0 0.0
    %163 = vmatpush1.msra.mxu0 0.0
    %164 = vmatprep.subr.mxu0 0.0
    %165 = vmatpush1.msra.mxu0 0.0
    %166 = vmatprep.subr.mxu0 0.0
    %167 = vmatpush1.msra.mxu0 0.0
    %168 = vmatprep.subr.mxu0 0.0
    %169 = vmatpush1.msra.mxu0 0.0
    %170 = vmatprep.subr.mxu0 0.0
    %171 = vmatpush1.msra.mxu0 0.0
    %172 = vmatprep.subr.mxu0 0.0
    %173 = vmatpush1.msra.mxu0 0.0
    %174 = vmatprep.subr.mxu0 0.0
    %175 = vmatpush1.msra.mxu0 0.0
    %176 = vmatprep.subr.mxu0 0.0
    %177 = vmatpush1.msra.mxu0 0.0
    %178 = vmatprep.subr.mxu0 0.0
    %179 = vmatpush1.msra.mxu0 0.0
    %180 = vmatprep.subr.mxu0 0.0
    %181 = vmatpush1.msra.mxu0 0.0
    %182 = vmatprep.subr.mxu0 0.0
    %183 = vmatpush1.msra.mxu0 0.0
    %184 = vmatprep.subr.mxu0 0.0
    %185 = vmatpush1.msra.mxu0 0.0
    %186 = vmatprep.subr.mxu0 0.0
    %187 = vmatpush1.msra.mxu0 0.0
    %188 = vmatprep.subr.mxu0 0.0
    %189 = vmatpush1.msra.mxu0 0.0
    %190 = vmatprep.subr.mxu0 0.0
    %191 = vmatpush1.msra.mxu0 0.0
    %192 = vmatprep.subr.mxu0 0.0
    %193 = vmatpush1.msra.mxu0 0.0
    %194 = vmatprep.subr.mxu0 0.0
    %195 = vmatpush1.msra.mxu0 0.0
    %196 = vmatprep.subr.mxu0 0.0
    %197 = vmatpush1.msra.mxu0 0.0
    %198 = vmatprep.subr.mxu0 0.0
    %199 = vmatpush1.msra.mxu0 0.0
    %200 = vmatprep.subr.mxu0 0.0
    %201 = vmatpush1.msra.mxu0 0.0
    %202 = vmatprep.subr.mxu0 0.0
    %203 = vmatpush1.msra.mxu0 0.0
    %204 = vmatprep.subr.mxu0 0.0
    %205 = vmatpush1.msra.mxu0 0.0
    %206 = vmatprep.subr.mxu0 0.0
    %207 = vmatpush1.msra.mxu0 0.0
    %208 = vmatprep.subr.mxu0 0.0
    %209 = vmatpush1.msra.mxu0 0.0
    %210 = vmatprep.subr.mxu0 0.0
    %211 = vmatpush1.msra.mxu0 0.0
    %212 = vmatprep.mubr.f32.mxu0 0.0
    %213 = vmatmul.mubr.f32.gmra.mrb[0].mxu0 %v143
    %v214 = vpop.f32.mrb[0].mxu0
    %v215 = vadd.f32 %v129, %v214
    %v216 = vpop.f32.mrb[0].mxu0
    %v217 = vadd.f32 %v133, %v216
    %218 = vmatprep.mubr.f32.mxu0 0.0
    %219 = vmatmul.mubr.f32.gmra.mrb[0].mxu0 %v146
    %v220 = vpop.f32.mrb[0].mxu0
    %v221 = vadd.f32 %v129, %v220
    %v222 = vpop.f32.mrb[0].mxu0
    %v223 = vadd.f32 %v133, %v222
    %224 = vdwg.mxu0
    %225 = vmatprep.subr.mxu0 0.0
    %226 = vmatpush1.msra.mxu0 %v114
    %227 = vmatprep.subr.mxu0 0.0
    %228 = vmatpush1.msra.mxu0 %v117
    %229 = vmatprep.subr.mxu0 0.0
    %230 = vmatpush1.msra.mxu0 %v120
    %231 = vmatprep.subr.mxu0 0.0
    %232 = vmatpush1.msra.mxu0 %v123
    %233 = vmatprep.subr.mxu0 0.0
    %234 = vmatpush1.msra.mxu0 0.0
    %235 = vmatprep.subr.mxu0 0.0
    %236 = vmatpush1.msra.mxu0 0.0
    %237 = vmatprep.subr.mxu0 0.0
    %238 = vmatpush1.msra.mxu0 0.0
    %239 = vmatprep.subr.mxu0 0.0
    %240 = vmatpush1.msra.mxu0 0.0
    %241 = vmatprep.subr.mxu0 0.0
    %242 = vmatpush1.msra.mxu0 0.0
    %243 = vmatprep.subr.mxu0 0.0
    %244 = vmatpush1.msra.mxu0 0.0
    %245 = vmatprep.subr.mxu0 0.0
    %246 = vmatpush1.msra.mxu0 0.0
    %247 = vmatprep.subr.mxu0 0.0
    %248 = vmatpush1.msra.mxu0 0.0
    %249 = vmatprep.subr.mxu0 0.0
    %250 = vmatpush1.msra.mxu0 0.0
    %251 = vmatprep.subr.mxu0 0.0
    %252 = vmatpush1.msra.mxu0 0.0
    %253 = vmatprep.subr.mxu0 0.0
    %254 = vmatpush1.msra.mxu0 0.0
    %255 = vmatprep.subr.mxu0 0.0
    %256 = vmatpush1.msra.mxu0 0.0
    %257 = vmatprep.subr.mxu0 0.0
    %258 = vmatpush1.msra.mxu0 0.0
    %259 = vmatprep.subr.mxu0 0.0
    %260 = vmatpush1.msra.mxu0 0.0
    %261 = vmatprep.subr.mxu0 0.0
    %262 = vmatpush1.msra.mxu0 0.0
    %263 = vmatprep.subr.mxu0 0.0
    %264 = vmatpush1.msra.mxu0 0.0
    %265 = vmatprep.subr.mxu0 0.0
    %266 = vmatpush1.msra.mxu0 0.0
    %267 = vmatprep.subr.mxu0 0.0
    %268 = vmatpush1.msra.mxu0 0.0
    %269 = vmatprep.subr.mxu0 0.0
    %270 = vmatpush1.msra.mxu0 0.0
    %271 = vmatprep.subr.mxu0 0.0
    %272 = vmatpush1.msra.mxu0 0.0
    %273 = vmatprep.subr.mxu0 0.0
    %274 = vmatpush1.msra.mxu0 0.0
    %275 = vmatprep.subr.mxu0 0.0
    %276 = vmatpush1.msra.mxu0 0.0
    %277 = vmatprep.subr.mxu0 0.0
    %278 = vmatpush1.msra.mxu0 0.0
    %279 = vmatprep.subr.mxu0 0.0
    %280 = vmatpush1.msra.mxu0 0.0
    %281 = vmatprep.subr.mxu0 0.0
    %282 = vmatpush1.msra.mxu0 0.0
    %283 = vmatprep.subr.mxu0 0.0
    %284 = vmatpush1.msra.mxu0 0.0
    %285 = vmatprep.subr.mxu0 0.0
    %286 = vmatpush1.msra.mxu0 0.0
    %287 = vmatprep.subr.mxu0 0.0
    %288 = vmatpush1.msra.mxu0 0.0
    %289 = vmatprep.mubr.f32.mxu0 0.0
    %290 = vmatmul.mubr.f32.gmra.mrb[0].mxu0 %v143
    %v291 = vpop.f32.mrb[0].mxu0
    %v292 = vadd.f32 %v137, %v291
    %v293 = vpop.f32.mrb[0].mxu0
    %294 = vmatprep.mubr.f32.mxu0 0.0
    %295 = vmatmul.mubr.f32.gmra.mrb[0].mxu0 %v146
    %v296 = vpop.f32.mrb[0].mxu0
    %v297 = vadd.f32 %v137, %v296
    %v298 = vpop.f32.mrb[0].mxu0
    %299 = vdwg.mxu0
    %v300 = vld [vmem:[#allocation7] sm:$0xff]
    %v301 = vld [vmem:[#allocation7 + $0x8] sm:$0xff]
    %v302 = vld [vmem:[#allocation7 + $0x10] sm:$0xff]
    %v303 = vld [vmem:[#allocation7 + $0x18] sm:$0xff]
    %v304 = vld [vmem:[#allocation7 + $0x20] sm:$0xff]
    %v305 = vld [vmem:[#allocation7 + $0x28] sm:$0xff]
    %v306 = vld [vmem:[#allocation7 + $0x30] sm:$0xff]
    %v307 = vld [vmem:[#allocation7 + $0x38] sm:$0xff]
    %v308 = vld [vmem:[#allocation7 + $0x40] sm:$0xff]
    %v309 = vld [vmem:[#allocation7 + $0x48] sm:$0xff]
    %v310 = vld [vmem:[#allocation7 + $0x50] sm:$0xff]
    %v311 = vld [vmem:[#allocation7 + $0x58] sm:$0xff]
    %v312 = vld [vmem:[#allocation7 + $0x60] sm:$0xff]
    %v313 = vld [vmem:[#allocation7 + $0x68] sm:$0xff]
    %v314 = vld [vmem:[#allocation7 + $0x70] sm:$0xff]
    %v315 = vld [vmem:[#allocation7 + $0x78] sm:$0xff]
    %v316 = vld [vmem:[#allocation7 + $0x80] sm:$0xff]
    %v317 = vld [vmem:[#allocation7 + $0x88] sm:$0xff]
    %v318 = vld [vmem:[#allocation7 + $0x90] sm:$0xff]
    %v319 = vld [vmem:[#allocation7 + $0x98] sm:$0xff]
    %v320 = vld [vmem:[#allocation7 + $0xa0] sm:$0xff]
    %v321 = vld [vmem:[#allocation7 + $0xa8] sm:$0xff]
    %v322 = vld [vmem:[#allocation7 + $0xb0] sm:$0xff]
    %v323 = vld [vmem:[#allocation7 + $0xb8] sm:$0xff]
    %v324 = vld [vmem:[#allocation7 + $0xc0] sm:$0xff]
    %v325 = vld [vmem:[#allocation7 + $0xc8] sm:$0xff]
    %v326 = vld [vmem:[#allocation7 + $0xd0] sm:$0xff]
    %v327 = vld [vmem:[#allocation7 + $0xd8] sm:$0xff]
    %v328 = vld [vmem:[#allocation7 + $0xe0] sm:$0xff]
    %v329 = vld [vmem:[#allocation7 + $0xe8] sm:$0xff]
    %v330 = vld [vmem:[#allocation7 + $0xf0] sm:$0xff]
    %v331 = vld [vmem:[#allocation7 + $0xf8] sm:$0xff]
    %v332 = vld [vmem:[#allocation7 + $0x100] sm:$0xff]
    %v333 = vld [vmem:[#allocation7 + $0x108] sm:$0xff]
    %v334 = vld [vmem:[#allocation7 + $0x110] sm:$0xff]
    %v335 = vld [vmem:[#allocation7 + $0x118] sm:$0xff]
    %v336 = vld [vmem:[#allocation7 + $0x120] sm:$0xff]
    %v337 = vld [vmem:[#allocation7 + $0x128] sm:$0xff]
    %v338 = vld [vmem:[#allocation7 + $0x130] sm:$0xff]
    %v339 = vld [vmem:[#allocation7 + $0x138] sm:$0xff]
    %v340 = vld [vmem:[#allocation7 + $0x140] sm:$0xff]
    %v341 = vld [vmem:[#allocation7 + $0x148] sm:$0xff]
    %v342 = vld [vmem:[#allocation7 + $0x150] sm:$0xff]
    %v343 = vld [vmem:[#allocation7 + $0x158] sm:$0xff]
    %v344 = vld [vmem:[#allocation7 + $0x160] sm:$0xff]
    %v345 = vld [vmem:[#allocation7 + $0x168] sm:$0xff]
    %v346 = vld [vmem:[#allocation7 + $0x170] sm:$0xff]
    %v347 = vld [vmem:[#allocation7 + $0x178] sm:$0xff]
    %348 = vmatprep.subr.mxu0 %v301
    %349 = vmatpush1.msra.mxu0 %v300
    %350 = vmatprep.subr.mxu0 %v304
    %351 = vmatpush1.msra.mxu0 %v303
    %352 = vmatprep.subr.mxu0 %v307
    %353 = vmatpush1.msra.mxu0 %v306
    %354 = vmatprep.subr.mxu0 %v310
    %355 = vmatpush1.msra.mxu0 %v309
    %356 = vmatprep.subr.mxu0 %v313
    %357 = vmatpush1.msra.mxu0 %v312
    %358 = vmatprep.subr.mxu0 %v316
    %359 = vmatpush1.msra.mxu0 %v315
    %360 = vmatprep.subr.mxu0 %v319
    %361 = vmatpush1.msra.mxu0 %v318
    %362 = vmatprep.subr.mxu0 %v322
    %363 = vmatpush1.msra.mxu0 %v321
    %364 = vmatprep.subr.mxu0 %v325
    %365 = vmatpush1.msra.mxu0 %v324
    %366 = vmatprep.subr.mxu0 %v328
    %367 = vmatpush1.msra.mxu0 %v327
    %368 = vmatprep.subr.mxu0 %v331
    %369 = vmatpush1.msra.mxu0 %v330
    %370 = vmatprep.subr.mxu0 %v334
    %371 = vmatpush1.msra.mxu0 %v333
    %372 = vmatprep.subr.mxu0 %v337
    %373 = vmatpush1.msra.mxu0 %v336
    %374 = vmatprep.subr.mxu0 %v340
    %375 = vmatpush1.msra.mxu0 %v339
    %376 = vmatprep.subr.mxu0 %v343
    %377 = vmatpush1.msra.mxu0 %v342
    %378 = vmatprep.subr.mxu0 %v346
    %379 = vmatpush1.msra.mxu0 %v345
    %380 = vmatprep.subr.mxu0 0.0
    %381 = vmatpush1.msra.mxu0 0.0
    %382 = vmatprep.subr.mxu0 0.0
    %383 = vmatpush1.msra.mxu0 0.0
    %384 = vmatprep.subr.mxu0 0.0
    %385 = vmatpush1.msra.mxu0 0.0
    %386 = vmatprep.subr.mxu0 0.0
    %387 = vmatpush1.msra.mxu0 0.0
    %388 = vmatprep.subr.mxu0 0.0
    %389 = vmatpush1.msra.mxu0 0.0
    %390 = vmatprep.subr.mxu0 0.0
    %391 = vmatpush1.msra.mxu0 0.0
    %392 = vmatprep.subr.mxu0 0.0
    %393 = vmatpush1.msra.mxu0 0.0
    %394 = vmatprep.subr.mxu0 0.0
    %395 = vmatpush1.msra.mxu0 0.0
    %396 = vmatprep.subr.mxu0 0.0
    %397 = vmatpush1.msra.mxu0 0.0
    %398 = vmatprep.subr.mxu0 0.0
    %399 = vmatpush1.msra.mxu0 0.0
    %400 = vmatprep.subr.mxu0 0.0
    %401 = vmatpush1.msra.mxu0 0.0
    %402 = vmatprep.subr.mxu0 0.0
    %403 = vmatpush1.msra.mxu0 0.0
    %404 = vmatprep.subr.mxu0 0.0
    %405 = vmatpush1.msra.mxu0 0.0
    %406 = vmatprep.subr.mxu0 0.0
    %407 = vmatpush1.msra.mxu0 0.0
    %408 = vmatprep.subr.mxu0 0.0
    %409 = vmatpush1.msra.mxu0 0.0
    %410 = vmatprep.subr.mxu0 0.0
    %411 = vmatpush1.msra.mxu0 0.0
    %412 = vmatprep.mubr.f32.mxu0 0.0
    %413 = vmatmul.mubr.f32.gmra.mrb[0].mxu0 0.0
    %v414 = vpop.f32.mrb[0].mxu0
    %v415 = vadd.f32 0.0, %v414
    %v416 = vpop.f32.mrb[0].mxu0
    %v417 = vadd.f32 0.0, %v416
    %418 = vdwg.mxu0
    %419 = vmatprep.subr.mxu0 0.0
    %420 = vmatpush1.msra.mxu0 %v302
    %421 = vmatprep.subr.mxu0 0.0
    %422 = vmatpush1.msra.mxu0 %v305
    %423 = vmatprep.subr.mxu0 0.0
    %424 = vmatpush1.msra.mxu0 %v308
    %425 = vmatprep.subr.mxu0 0.0
    %426 = vmatpush1.msra.mxu0 %v311
    %427 = vmatprep.subr.mxu0 0.0
    %428 = vmatpush1.msra.mxu0 %v314
    %429 = vmatprep.subr.mxu0 0.0
    %430 = vmatpush1.msra.mxu0 %v317
    %431 = vmatprep.subr.mxu0 0.0
    %432 = vmatpush1.msra.mxu0 %v320
    %433 = vmatprep.subr.mxu0 0.0
    %434 = vmatpush1.msra.mxu0 %v323
    %435 = vmatprep.subr.mxu0 0.0
    %436 = vmatpush1.msra.mxu0 %v326
    %437 = vmatprep.subr.mxu0 0.0
    %438 = vmatpush1.msra.mxu0 %v329
    %439 = vmatprep.subr.mxu0 0.0
    %440 = vmatpush1.msra.mxu0 %v332
    %441 = vmatprep.subr.mxu0 0.0
    %442 = vmatpush1.msra.mxu0 %v335
    %443 = vmatprep.subr.mxu0 0.0
    %444 = vmatpush1.msra.mxu0 %v338
    %445 = vmatprep.subr.mxu0 0.0
    %446 = vmatpush1.msra.mxu0 %v341
    %447 = vmatprep.subr.mxu0 0.0
    %448 = vmatpush1.msra.mxu0 %v344
    %449 = vmatprep.subr.mxu0 0.0
    %450 = vmatpush1.msra.mxu0 %v347
    %451 = vmatprep.subr.mxu0 0.0
    %452 = vmatpush1.msra.mxu0 0.0
    %453 = vmatprep.subr.mxu0 0.0
    %454 = vmatpush1.msra.mxu0 0.0
    %455 = vmatprep.subr.mxu0 0.0
    %456 = vmatpush1.msra.mxu0 0.0
    %457 = vmatprep.subr.mxu0 0.0
    %458 = vmatpush1.msra.mxu0 0.0
    %459 = vmatprep.subr.mxu0 0.0
    %460 = vmatpush1.msra.mxu0 0.0
    %461 = vmatprep.subr.mxu0 0.0
    %462 = vmatpush1.msra.mxu0 0.0
    %463 = vmatprep.subr.mxu0 0.0
    %464 = vmatpush1.msra.mxu0 0.0
    %465 = vmatprep.subr.mxu0 0.0
    %466 = vmatpush1.msra.mxu0 0.0
    %467 = vmatprep.subr.mxu0 0.0
    %468 = vmatpush1.msra.mxu0 0.0
    %469 = vmatprep.subr.mxu0 0.0
    %470 = vmatpush1.msra.mxu0 0.0
    %471 = vmatprep.subr.mxu0 0.0
    %472 = vmatpush1.msra.mxu0 0.0
    %473 = vmatprep.subr.mxu0 0.0
    %474 = vmatpush1.msra.mxu0 0.0
    %475 = vmatprep.subr.mxu0 0.0
    %476 = vmatpush1.msra.mxu0 0.0
    %477 = vmatprep.subr.mxu0 0.0
    %478 = vmatpush1.msra.mxu0 0.0
    %479 = vmatprep.subr.mxu0 0.0
    %480 = vmatpush1.msra.mxu0 0.0
    %481 = vmatprep.subr.mxu0 0.0
    %482 = vmatpush1.msra.mxu0 0.0
    %483 = vmatprep.mubr.f32.mxu0 0.0
    %484 = vmatmul.mubr.f32.gmra.mrb[0].mxu0 0.0
    %v485 = vpop.f32.mrb[0].mxu0
    %v486 = vadd.f32 0.0, %v485
    %v487 = vpop.f32.mrb[0].mxu0
    %488 = vdwg.mxu0
    %v489 = vadd.f32 %v215, %v415
    %v490 = vxor.u32 %v489, 2147483648
    %v491 = vmul.f32 %v490, 1.442695
    %v492 = vpow.pop %v491
    %v493 = vadd.f32 %v492, 1.0
    %v494 = vrcp.pop %v493
    %v495 = vmul.f32 1.0, %v494
    %v496 = vadd.f32 %v217, %v417
    %v497 = vxor.u32 %v496, 2147483648
    %v498 = vmul.f32 %v497, 1.442695
    %v499 = vpow.pop %v498
    %v500 = vadd.f32 %v499, 1.0
    %v501 = vrcp.pop %v500
    %v502 = vmul.f32 1.0, %v501
    %v503 = vld [vmem:[%s6] sm:$0x1]
    %v505 = vlaneseq
    %v506 = vshrl.u32 %v505, 7
    %v507 = vsub.s32 0, %v506
    %v508 = vrot.slane %v503, %v507
    %v510 = vadd.f32 %v486, %v508
    %v511 = vmul.f32 %v495, %v510
    %v512 = vadd.f32 %v292, %v511
    %v513 = vtanh.pop %v512
    %v514 = vsub.f32 1.0, %v502
    %v515 = vmul.f32 %v514, %v513
    %v516 = vmul.f32 %v502, 0.0
    %v517 = vadd.f32 %v515, %v516
    %vm518 = vcmp.gt.s32.totalorder %v109, 0
    %v519 = vsel %vm518, 1, 0
    %520 = vset.pattern.permute.xlu0 0
    %521 = vperm.xlu0 %520, %v519
    %v522 = vpop.permute.xlu0 %521
    %vm523 = vcmp.eq.s32.totalorder %v522, 1
    %v524 = vsel %vm523, %v517, 0.0
    %525 = vmatprep.subr.mxu0 %v301
    %526 = vmatpush1.msra.mxu0 %v300
    %527 = vmatprep.subr.mxu0 %v304
    %528 = vmatpush1.msra.mxu0 %v303
    %529 = vmatprep.subr.mxu0 %v307
    %530 = vmatpush1.msra.mxu0 %v306
    %531 = vmatprep.subr.mxu0 %v310
    %532 = vmatpush1.msra.mxu0 %v309
    %533 = vmatprep.subr.mxu0 %v313
    %534 = vmatpush1.msra.mxu0 %v312
    %535 = vmatprep.subr.mxu0 %v316
    %536 = vmatpush1.msra.mxu0 %v315
    %537 = vmatprep.subr.mxu0 %v319
    %538 = vmatpush1.msra.mxu0 %v318
    %539 = vmatprep.subr.mxu0 %v322
    %540 = vmatpush1.msra.mxu0 %v321
    %541 = vmatprep.subr.mxu0 %v325
    %542 = vmatpush1.msra.mxu0 %v324
    %543 = vmatprep.subr.mxu0 %v328
    %544 = vmatpush1.msra.mxu0 %v327
    %545 = vmatprep.subr.mxu0 %v331
    %546 = vmatpush1.msra.mxu0 %v330
    %547 = vmatprep.subr.mxu0 %v334
    %548 = vmatpush1.msra.mxu0 %v333
    %549 = vmatprep.subr.mxu0 %v337
    %550 = vmatpush1.msra.mxu0 %v336
    %551 = vmatprep.subr.mxu0 %v340
    %552 = vmatpush1.msra.mxu0 %v339
    %553 = vmatprep.subr.mxu0 %v343
    %554 = vmatpush1.msra.mxu0 %v342
    %555 = vmatprep.subr.mxu0 %v346
    %556 = vmatpush1.msra.mxu0 %v345
    %557 = vmatprep.subr.mxu0 0.0
    %558 = vmatpush1.msra.mxu0 0.0
    %559 = vmatprep.subr.mxu0 0.0
    %560 = vmatpush1.msra.mxu0 0.0
    %561 = vmatprep.subr.mxu0 0.0
    %562 = vmatpush1.msra.mxu0 0.0
    %563 = vmatprep.subr.mxu0 0.0
    %564 = vmatpush1.msra.mxu0 0.0
    %565 = vmatprep.subr.mxu0 0.0
    %566 = vmatpush1.msra.mxu0 0.0
    %567 = vmatprep.subr.mxu0 0.0
    %568 = vmatpush1.msra.mxu0 0.0
    %569 = vmatprep.subr.mxu0 0.0
    %570 = vmatpush1.msra.mxu0 0.0
    %571 = vmatprep.subr.mxu0 0.0
    %572 = vmatpush1.msra.mxu0 0.0
    %573 = vmatprep.subr.mxu0 0.0
    %574 = vmatpush1.msra.mxu0 0.0
    %575 = vmatprep.subr.mxu0 0.0
    %576 = vmatpush1.msra.mxu0 0.0
    %577 = vmatprep.subr.mxu0 0.0
    %578 = vmatpush1.msra.mxu0 0.0
    %579 = vmatprep.subr.mxu0 0.0
    %580 = vmatpush1.msra.mxu0 0.0
    %581 = vmatprep.subr.mxu0 0.0
    %582 = vmatpush1.msra.mxu0 0.0
    %583 = vmatprep.subr.mxu0 0.0
    %584 = vmatpush1.msra.mxu0 0.0
    %585 = vmatprep.subr.mxu0 0.0
    %586 = vmatpush1.msra.mxu0 0.0
    %587 = vmatprep.subr.mxu0 0.0
    %588 = vmatpush1.msra.mxu0 0.0
    %589 = vmatprep.mubr.f32.mxu0 0.0
    %590 = vmatmul.mubr.f32.gmra.mrb[0].mxu0 %v524
    %v591 = vpop.f32.mrb[0].mxu0
    %v592 = vadd.f32 0.0, %v591
    %v593 = vpop.f32.mrb[0].mxu0
    %v594 = vadd.f32 0.0, %v593
    %595 = vdwg.mxu0
    %596 = vmatprep.subr.mxu0 0.0
    %597 = vmatpush1.msra.mxu0 %v302
    %598 = vmatprep.subr.mxu0 0.0
    %599 = vmatpush1.msra.mxu0 %v305
    %600 = vmatprep.subr.mxu0 0.0
    %601 = vmatpush1.msra.mxu0 %v308
    %602 = vmatprep.subr.mxu0 0.0
    %603 = vmatpush1.msra.mxu0 %v311
    %604 = vmatprep.subr.mxu0 0.0
    %605 = vmatpush1.msra.mxu0 %v314
    %606 = vmatprep.subr.mxu0 0.0
    %607 = vmatpush1.msra.mxu0 %v317
    %608 = vmatprep.subr.mxu0 0.0
    %609 = vmatpush1.msra.mxu0 %v320
    %610 = vmatprep.subr.mxu0 0.0
    %611 = vmatpush1.msra.mxu0 %v323
    %612 = vmatprep.subr.mxu0 0.0
    %613 = vmatpush1.msra.mxu0 %v326
    %614 = vmatprep.subr.mxu0 0.0
    %615 = vmatpush1.msra.mxu0 %v329
    %616 = vmatprep.subr.mxu0 0.0
    %617 = vmatpush1.msra.mxu0 %v332
    %618 = vmatprep.subr.mxu0 0.0
    %619 = vmatpush1.msra.mxu0 %v335
    %620 = vmatprep.subr.mxu0 0.0
    %621 = vmatpush1.msra.mxu0 %v338
    %622 = vmatprep.subr.mxu0 0.0
    %623 = vmatpush1.msra.mxu0 %v341
    %624 = vmatprep.subr.mxu0 0.0
    %625 = vmatpush1.msra.mxu0 %v344
    %626 = vmatprep.subr.mxu0 0.0
    %627 = vmatpush1.msra.mxu0 %v347
    %628 = vmatprep.subr.mxu0 0.0
    %629 = vmatpush1.msra.mxu0 0.0
    %630 = vmatprep.subr.mxu0 0.0
    %631 = vmatpush1.msra.mxu0 0.0
    %632 = vmatprep.subr.mxu0 0.0
    %633 = vmatpush1.msra.mxu0 0.0
    %634 = vmatprep.subr.mxu0 0.0
    %635 = vmatpush1.msra.mxu0 0.0
    %636 = vmatprep.subr.mxu0 0.0
    %637 = vmatpush1.msra.mxu0 0.0
    %638 = vmatprep.subr.mxu0 0.0
    %639 = vmatpush1.msra.mxu0 0.0
    %640 = vmatprep.subr.mxu0 0.0
    %641 = vmatpush1.msra.mxu0 0.0
    %642 = vmatprep.subr.mxu0 0.0
    %643 = vmatpush1.msra.mxu0 0.0
    %644 = vmatprep.subr.mxu0 0.0
    %645 = vmatpush1.msra.mxu0 0.0
    %646 = vmatprep.subr.mxu0 0.0
    %647 = vmatpush1.msra.mxu0 0.0
    %648 = vmatprep.subr.mxu0 0.0
    %649 = vmatpush1.msra.mxu0 0.0
    %650 = vmatprep.subr.mxu0 0.0
    %651 = vmatpush1.msra.mxu0 0.0
    %652 = vmatprep.subr.mxu0 0.0
    %653 = vmatpush1.msra.mxu0 0.0
    %654 = vmatprep.subr.mxu0 0.0
    %655 = vmatpush1.msra.mxu0 0.0
    %656 = vmatprep.subr.mxu0 0.0
    %657 = vmatpush1.msra.mxu0 0.0
    %658 = vmatprep.subr.mxu0 0.0
    %659 = vmatpush1.msra.mxu0 0.0
    %660 = vmatprep.mubr.f32.mxu0 0.0
    %661 = vmatmul.mubr.f32.gmra.mrb[0].mxu0 %v524
    %v662 = vpop.f32.mrb[0].mxu0
    %v663 = vadd.f32 0.0, %v662
    %v664 = vpop.f32.mrb[0].mxu0
    %665 = vdwg.mxu0
    %v667 = vrot.slane %v592, 6
    %v669 = vadd.f32 %v215, %v667
    %v670 = vxor.u32 %v669, 2147483648
    %v671 = vmul.f32 %v670, 1.442695
    %v672 = vpow.pop %v671
    %v673 = vadd.f32 %v672, 1.0
    %v674 = vrcp.pop %v673
    %v675 = vmul.f32 1.0, %v674
    %v677 = vrot.slane %v594, 6
    %v679 = vadd.f32 %v217, %v677
    %v680 = vxor.u32 %v679, 2147483648
    %v681 = vmul.f32 %v680, 1.442695
    %v682 = vpow.pop %v681
    %v683 = vadd.f32 %v682, 1.0
    %v684 = vrcp.pop %v683
    %v685 = vmul.f32 1.0, %v684
    %v686 = vadd.f32 %v663, %v508
    %v688 = vrot.slane %v686, 6
    %v690 = vmul.f32 %v675, %v688
    %v691 = vadd.f32 %v292, %v690
    %v692 = vtanh.pop %v691
    %v693 = vsub.f32 1.0, %v685
    %v694 = vmul.f32 %v693, %v692
    %v696 = vrot.slane %v524, 6
    %v698 = vmul.f32 %v685, %v696
    %v699 = vadd.f32 %v694, %v698
    %vm700 = vcmp.gt.s32.totalorder %v109, 1
    %v701 = vsel %vm700, 1, 0
    %702 = vset.pattern.permute.xlu0 0
    %703 = vperm.xlu0 %702, %v701
    %v704 = vpop.permute.xlu0 %703
    %vm705 = vcmp.eq.s32.totalorder %v704, 1
    %v707 = vrot.slane %v699, 2
    %v709 = vsel %vm705, %v707, %v524
    %710 = vmatprep.subr.mxu0 %v301
    %711 = vmatpush1.msra.mxu0 %v300
    %712 = vmatprep.subr.mxu0 %v304
    %713 = vmatpush1.msra.mxu0 %v303
    %714 = vmatprep.subr.mxu0 %v307
    %715 = vmatpush1.msra.mxu0 %v306
    %716 = vmatprep.subr.mxu0 %v310
    %717 = vmatpush1.msra.mxu0 %v309
    %718 = vmatprep.subr.mxu0 %v313
    %719 = vmatpush1.msra.mxu0 %v312
    %720 = vmatprep.subr.mxu0 %v316
    %721 = vmatpush1.msra.mxu0 %v315
    %722 = vmatprep.subr.mxu0 %v319
    %723 = vmatpush1.msra.mxu0 %v318
    %724 = vmatprep.subr.mxu0 %v322
    %725 = vmatpush1.msra.mxu0 %v321
    %726 = vmatprep.subr.mxu0 %v325
    %727 = vmatpush1.msra.mxu0 %v324
    %728 = vmatprep.subr.mxu0 %v328
    %729 = vmatpush1.msra.mxu0 %v327
    %730 = vmatprep.subr.mxu0 %v331
    %731 = vmatpush1.msra.mxu0 %v330
    %732 = vmatprep.subr.mxu0 %v334
    %733 = vmatpush1.msra.mxu0 %v333
    %734 = vmatprep.subr.mxu0 %v337
    %735 = vmatpush1.msra.mxu0 %v336
    %736 = vmatprep.subr.mxu0 %v340
    %737 = vmatpush1.msra.mxu0 %v339
    %738 = vmatprep.subr.mxu0 %v343
    %739 = vmatpush1.msra.mxu0 %v342
    %740 = vmatprep.subr.mxu0 %v346
    %741 = vmatpush1.msra.mxu0 %v345
    %742 = vmatprep.subr.mxu0 0.0
    %743 = vmatpush1.msra.mxu0 0.0
    %744 = vmatprep.subr.mxu0 0.0
    %745 = vmatpush1.msra.mxu0 0.0
    %746 = vmatprep.subr.mxu0 0.0
    %747 = vmatpush1.msra.mxu0 0.0
    %748 = vmatprep.subr.mxu0 0.0
    %749 = vmatpush1.msra.mxu0 0.0
    %750 = vmatprep.subr.mxu0 0.0
    %751 = vmatpush1.msra.mxu0 0.0
    %752 = vmatprep.subr.mxu0 0.0
    %753 = vmatpush1.msra.mxu0 0.0
    %754 = vmatprep.subr.mxu0 0.0
    %755 = vmatpush1.msra.mxu0 0.0
    %756 = vmatprep.subr.mxu0 0.0
    %757 = vmatpush1.msra.mxu0 0.0
    %758 = vmatprep.subr.mxu0 0.0
    %759 = vmatpush1.msra.mxu0 0.0
    %760 = vmatprep.subr.mxu0 0.0
    %761 = vmatpush1.msra.mxu0 0.0
    %762 = vmatprep.subr.mxu0 0.0
    %763 = vmatpush1.msra.mxu0 0.0
    %764 = vmatprep.subr.mxu0 0.0
    %765 = vmatpush1.msra.mxu0 0.0
    %766 = vmatprep.subr.mxu0 0.0
    %767 = vmatpush1.msra.mxu0 0.0
    %768 = vmatprep.subr.mxu0 0.0
    %769 = vmatpush1.msra.mxu0 0.0
    %770 = vmatprep.subr.mxu0 0.0
    %771 = vmatpush1.msra.mxu0 0.0
    %772 = vmatprep.subr.mxu0 0.0
    %773 = vmatpush1.msra.mxu0 0.0
    %774 = vmatprep.mubr.f32.mxu0 0.0
    %775 = vmatmul.mubr.f32.gmra.mrb[0].mxu0 %v709
    %v776 = vpop.f32.mrb[0].mxu0
    %v777 = vadd.f32 0.0, %v776
    %v778 = vpop.f32.mrb[0].mxu0
    %v779 = vadd.f32 0.0, %v778
    %780 = vdwg.mxu0
    %781 = vmatprep.subr.mxu0 0.0
    %782 = vmatpush1.msra.mxu0 %v302
    %783 = vmatprep.subr.mxu0 0.0
    %784 = vmatpush1.msra.mxu0 %v305
    %785 = vmatprep.subr.mxu0 0.0
    %786 = vmatpush1.msra.mxu0 %v308
    %787 = vmatprep.subr.mxu0 0.0
    %788 = vmatpush1.msra.mxu0 %v311
    %789 = vmatprep.subr.mxu0 0.0
    %790 = vmatpush1.msra.mxu0 %v314
    %791 = vmatprep.subr.mxu0 0.0
    %792 = vmatpush1.msra.mxu0 %v317
    %793 = vmatprep.subr.mxu0 0.0
    %794 = vmatpush1.msra.mxu0 %v320
    %795 = vmatprep.subr.mxu0 0.0
    %796 = vmatpush1.msra.mxu0 %v323
    %797 = vmatprep.subr.mxu0 0.0
    %798 = vmatpush1.msra.mxu0 %v326
    %799 = vmatprep.subr.mxu0 0.0
    %800 = vmatpush1.msra.mxu0 %v329
    %801 = vmatprep.subr.mxu0 0.0
    %802 = vmatpush1.msra.mxu0 %v332
    %803 = vmatprep.subr.mxu0 0.0
    %804 = vmatpush1.msra.mxu0 %v335
    %805 = vmatprep.subr.mxu0 0.0
    %806 = vmatpush1.msra.mxu0 %v338
    %807 = vmatprep.subr.mxu0 0.0
    %808 = vmatpush1.msra.mxu0 %v341
    %809 = vmatprep.subr.mxu0 0.0
    %810 = vmatpush1.msra.mxu0 %v344
    %811 = vmatprep.subr.mxu0 0.0
    %812 = vmatpush1.msra.mxu0 %v347
    %813 = vmatprep.subr.mxu0 0.0
    %814 = vmatpush1.msra.mxu0 0.0
    %815 = vmatprep.subr.mxu0 0.0
    %816 = vmatpush1.msra.mxu0 0.0
    %817 = vmatprep.subr.mxu0 0.0
    %818 = vmatpush1.msra.mxu0 0.0
    %819 = vmatprep.subr.mxu0 0.0
    %820 = vmatpush1.msra.mxu0 0.0
    %821 = vmatprep.subr.mxu0 0.0
    %822 = vmatpush1.msra.mxu0 0.0
    %823 = vmatprep.subr.mxu0 0.0
    %824 = vmatpush1.msra.mxu0 0.0
    %825 = vmatprep.subr.mxu0 0.0
    %826 = vmatpush1.msra.mxu0 0.0
    %827 = vmatprep.subr.mxu0 0.0
    %828 = vmatpush1.msra.mxu0 0.0
    %829 = vmatprep.subr.mxu0 0.0
    %830 = vmatpush1.msra.mxu0 0.0
    %831 = vmatprep.subr.mxu0 0.0
    %832 = vmatpush1.msra.mxu0 0.0
    %833 = vmatprep.subr.mxu0 0.0
    %834 = vmatpush1.msra.mxu0 0.0
    %835 = vmatprep.subr.mxu0 0.0
    %836 = vmatpush1.msra.mxu0 0.0
    %837 = vmatprep.subr.mxu0 0.0
    %838 = vmatpush1.msra.mxu0 0.0
    %839 = vmatprep.subr.mxu0 0.0
    %840 = vmatpush1.msra.mxu0 0.0
    %841 = vmatprep.subr.mxu0 0.0
    %842 = vmatpush1.msra.mxu0 0.0
    %843 = vmatprep.subr.mxu0 0.0
    %844 = vmatpush1.msra.mxu0 0.0
    %845 = vmatprep.mubr.f32.mxu0 0.0
    %846 = vmatmul.mubr.f32.gmra.mrb[0].mxu0 %v709
    %v847 = vpop.f32.mrb[0].mxu0
    %v848 = vadd.f32 0.0, %v847
    %v849 = vpop.f32.mrb[0].mxu0
    %850 = vdwg.mxu0
    %v852 = vrot.slane %v777, 4
    %v854 = vadd.f32 %v215, %v852
    %v855 = vxor.u32 %v854, 2147483648
    %v856 = vmul.f32 %v855, 1.442695
    %v857 = vpow.pop %v856
    %v858 = vadd.f32 %v857, 1.0
    %v859 = vrcp.pop %v858
    %v860 = vmul.f32 1.0, %v859
    %v862 = vrot.slane %v779, 4
    %v864 = vadd.f32 %v217, %v862
    %v865 = vxor.u32 %v864, 2147483648
    %v866 = vmul.f32 %v865, 1.442695
    %v867 = vpow.pop %v866
    %v868 = vadd.f32 %v867, 1.0
    %v869 = vrcp.pop %v868
    %v870 = vmul.f32 1.0, %v869
    %v871 = vadd.f32 %v848, %v508
    %v873 = vrot.slane %v871, 4
    %v875 = vmul.f32 %v860, %v873
    %v876 = vadd.f32 %v292, %v875
    %v877 = vtanh.pop %v876
    %v878 = vsub.f32 1.0, %v870
    %v879 = vmul.f32 %v878, %v877
    %v881 = vrot.slane %v709, 4
    %v883 = vmul.f32 %v870, %v881
    %v884 = vadd.f32 %v879, %v883
    %vm885 = vcmp.gt.s32.totalorder %v109, 2
    %v886 = vsel %vm885, 1, 0
    %887 = vset.pattern.permute.xlu0 0
    %888 = vperm.xlu0 %887, %v886
    %v889 = vpop.permute.xlu0 %888
    %vm890 = vcmp.eq.s32.totalorder %v889, 1
    %v892 = vrot.slane %v884, 4
    %v894 = vsel %vm890, %v892, %v709
    %895 = vmatprep.subr.mxu0 %v301
    %896 = vmatpush1.msra.mxu0 %v300
    %897 = vmatprep.subr.mxu0 %v304
    %898 = vmatpush1.msra.mxu0 %v303
    %899 = vmatprep.subr.mxu0 %v307
    %900 = vmatpush1.msra.mxu0 %v306
    %901 = vmatprep.subr.mxu0 %v310
    %902 = vmatpush1.msra.mxu0 %v309
    %903 = vmatprep.subr.mxu0 %v313
    %904 = vmatpush1.msra.mxu0 %v312
    %905 = vmatprep.subr.mxu0 %v316
    %906 = vmatpush1.msra.mxu0 %v315
    %907 = vmatprep.subr.mxu0 %v319
    %908 = vmatpush1.msra.mxu0 %v318
    %909 = vmatprep.subr.mxu0 %v322
    %910 = vmatpush1.msra.mxu0 %v321
    %911 = vmatprep.subr.mxu0 %v325
    %912 = vmatpush1.msra.mxu0 %v324
    %913 = vmatprep.subr.mxu0 %v328
    %914 = vmatpush1.msra.mxu0 %v327
    %915 = vmatprep.subr.mxu0 %v331
    %916 = vmatpush1.msra.mxu0 %v330
    %917 = vmatprep.subr.mxu0 %v334
    %918 = vmatpush1.msra.mxu0 %v333
    %919 = vmatprep.subr.mxu0 %v337
    %920 = vmatpush1.msra.mxu0 %v336
    %921 = vmatprep.subr.mxu0 %v340
    %922 = vmatpush1.msra.mxu0 %v339
    %923 = vmatprep.subr.mxu0 %v343
    %924 = vmatpush1.msra.mxu0 %v342
    %925 = vmatprep.subr.mxu0 %v346
    %926 = vmatpush1.msra.mxu0 %v345
    %927 = vmatprep.subr.mxu0 0.0
    %928 = vmatpush1.msra.mxu0 0.0
    %929 = vmatprep.subr.mxu0 0.0
    %930 = vmatpush1.msra.mxu0 0.0
    %931 = vmatprep.subr.mxu0 0.0
    %932 = vmatpush1.msra.mxu0 0.0
    %933 = vmatprep.subr.mxu0 0.0
    %934 = vmatpush1.msra.mxu0 0.0
    %935 = vmatprep.subr.mxu0 0.0
    %936 = vmatpush1.msra.mxu0 0.0
    %937 = vmatprep.subr.mxu0 0.0
    %938 = vmatpush1.msra.mxu0 0.0
    %939 = vmatprep.subr.mxu0 0.0
    %940 = vmatpush1.msra.mxu0 0.0
    %941 = vmatprep.subr.mxu0 0.0
    %942 = vmatpush1.msra.mxu0 0.0
    %943 = vmatprep.subr.mxu0 0.0
    %944 = vmatpush1.msra.mxu0 0.0
    %945 = vmatprep.subr.mxu0 0.0
    %946 = vmatpush1.msra.mxu0 0.0
    %947 = vmatprep.subr.mxu0 0.0
    %948 = vmatpush1.msra.mxu0 0.0
    %949 = vmatprep.subr.mxu0 0.0
    %950 = vmatpush1.msra.mxu0 0.0
    %951 = vmatprep.subr.mxu0 0.0
    %952 = vmatpush1.msra.mxu0 0.0
    %953 = vmatprep.subr.mxu0 0.0
    %954 = vmatpush1.msra.mxu0 0.0
    %955 = vmatprep.subr.mxu0 0.0
    %956 = vmatpush1.msra.mxu0 0.0
    %957 = vmatprep.subr.mxu0 0.0
    %958 = vmatpush1.msra.mxu0 0.0
    %959 = vmatprep.mubr.f32.mxu0 0.0
    %960 = vmatmul.mubr.f32.gmra.mrb[0].mxu0 %v894
    %v961 = vpop.f32.mrb[0].mxu0
    %v962 = vadd.f32 0.0, %v961
    %v963 = vpop.f32.mrb[0].mxu0
    %v964 = vadd.f32 0.0, %v963
    %965 = vdwg.mxu0
    %966 = vmatprep.subr.mxu0 0.0
    %967 = vmatpush1.msra.mxu0 %v302
    %968 = vmatprep.subr.mxu0 0.0
    %969 = vmatpush1.msra.mxu0 %v305
    %970 = vmatprep.subr.mxu0 0.0
    %971 = vmatpush1.msra.mxu0 %v308
    %972 = vmatprep.subr.mxu0 0.0
    %973 = vmatpush1.msra.mxu0 %v311
    %974 = vmatprep.subr.mxu0 0.0
    %975 = vmatpush1.msra.mxu0 %v314
    %976 = vmatprep.subr.mxu0 0.0
    %977 = vmatpush1.msra.mxu0 %v317
    %978 = vmatprep.subr.mxu0 0.0
    %979 = vmatpush1.msra.mxu0 %v320
    %980 = vmatprep.subr.mxu0 0.0
    %981 = vmatpush1.msra.mxu0 %v323
    %982 = vmatprep.subr.mxu0 0.0
    %983 = vmatpush1.msra.mxu0 %v326
    %984 = vmatprep.subr.mxu0 0.0
    %985 = vmatpush1.msra.mxu0 %v329
    %986 = vmatprep.subr.mxu0 0.0
    %987 = vmatpush1.msra.mxu0 %v332
    %988 = vmatprep.subr.mxu0 0.0
    %989 = vmatpush1.msra.mxu0 %v335
    %990 = vmatprep.subr.mxu0 0.0
    %991 = vmatpush1.msra.mxu0 %v338
    %992 = vmatprep.subr.mxu0 0.0
    %993 = vmatpush1.msra.mxu0 %v341
    %994 = vmatprep.subr.mxu0 0.0
    %995 = vmatpush1.msra.mxu0 %v344
    %996 = vmatprep.subr.mxu0 0.0
    %997 = vmatpush1.msra.mxu0 %v347
    %998 = vmatprep.subr.mxu0 0.0
    %999 = vmatpush1.msra.mxu0 0.0
    %1000 = vmatprep.subr.mxu0 0.0
    %1001 = vmatpush1.msra.mxu0 0.0
    %1002 = vmatprep.subr.mxu0 0.0
    %1003 = vmatpush1.msra.mxu0 0.0
    %1004 = vmatprep.subr.mxu0 0.0
    %1005 = vmatpush1.msra.mxu0 0.0
    %1006 = vmatprep.subr.mxu0 0.0
    %1007 = vmatpush1.msra.mxu0 0.0
    %1008 = vmatprep.subr.mxu0 0.0
    %1009 = vmatpush1.msra.mxu0 0.0
    %1010 = vmatprep.subr.mxu0 0.0
    %1011 = vmatpush1.msra.mxu0 0.0
    %1012 = vmatprep.subr.mxu0 0.0
    %1013 = vmatpush1.msra.mxu0 0.0
    %1014 = vmatprep.subr.mxu0 0.0
    %1015 = vmatpush1.msra.mxu0 0.0
    %1016 = vmatprep.subr.mxu0 0.0
    %1017 = vmatpush1.msra.mxu0 0.0
    %1018 = vmatprep.subr.mxu0 0.0
    %1019 = vmatpush1.msra.mxu0 0.0
    %1020 = vmatprep.subr.mxu0 0.0
    %1021 = vmatpush1.msra.mxu0 0.0
    %1022 = vmatprep.subr.mxu0 0.0
    %1023 = vmatpush1.msra.mxu0 0.0
    %1024 = vmatprep.subr.mxu0 0.0
    %1025 = vmatpush1.msra.mxu0 0.0
    %1026 = vmatprep.subr.mxu0 0.0
    %1027 = vmatpush1.msra.mxu0 0.0
    %1028 = vmatprep.subr.mxu0 0.0
    %1029 = vmatpush1.msra.mxu0 0.0
    %1030 = vmatprep.mubr.f32.mxu0 0.0
    %1031 = vmatmul.mubr.f32.gmra.mrb[0].mxu0 %v894
    %v1032 = vpop.f32.mrb[0].mxu0
    %v1033 = vadd.f32 0.0, %v1032
    %v1034 = vpop.f32.mrb[0].mxu0
    %1035 = vdwg.mxu0
    %v1037 = vrot.slane %v962, 2
    %v1039 = vadd.f32 %v215, %v1037
    %v1040 = vxor.u32 %v1039, 2147483648
    %v1041 = vmul.f32 %v1040, 1.442695
    %v1042 = vpow.pop %v1041
    %v1043 = vadd.f32 %v1042, 1.0
    %v1044 = vrcp.pop %v1043
    %v1045 = vmul.f32 1.0, %v1044
    %v1047 = vrot.slane %v964, 2
    %v1049 = vadd.f32 %v217, %v1047
    %v1050 = vxor.u32 %v1049, 2147483648
    %v1051 = vmul.f32 %v1050, 1.442695
    %v1052 = vpow.pop %v1051
    %v1053 = vadd.f32 %v1052, 1.0
    %v1054 = vrcp.pop %v1053
    %v1055 = vmul.f32 1.0, %v1054
    %v1056 = vadd.f32 %v1033, %v508
    %v1058 = vrot.slane %v1056, 2
    %v1060 = vmul.f32 %v1045, %v1058
    %v1061 = vadd.f32 %v292, %v1060
    %v1062 = vtanh.pop %v1061
    %v1063 = vsub.f32 1.0, %v1055
    %v1064 = vmul.f32 %v1063, %v1062
    %v1066 = vrot.slane %v894, 2
    %v1068 = vmul.f32 %v1055, %v1066
    %v1069 = vadd.f32 %v1064, %v1068
    %vm1070 = vcmp.gt.s32.totalorder %v109, 3
    %v1071 = vsel %vm1070, 1, 0
    %1072 = vset.pattern.permute.xlu0 0
    %1073 = vperm.xlu0 %1072, %v1071
    %v1074 = vpop.permute.xlu0 %1073
    %vm1075 = vcmp.eq.s32.totalorder %v1074, 1
    %v1077 = vrot.slane %v1069, 6
    %v1079 = vsel %vm1075, %v1077, %v894
    %1080 = vmatprep.subr.mxu0 %v301
    %1081 = vmatpush1.msra.mxu0 %v300
    %1082 = vmatprep.subr.mxu0 %v304
    %1083 = vmatpush1.msra.mxu0 %v303
    %1084 = vmatprep.subr.mxu0 %v307
    %1085 = vmatpush1.msra.mxu0 %v306
    %1086 = vmatprep.subr.mxu0 %v310
    %1087 = vmatpush1.msra.mxu0 %v309
    %1088 = vmatprep.subr.mxu0 %v313
    %1089 = vmatpush1.msra.mxu0 %v312
    %1090 = vmatprep.subr.mxu0 %v316
    %1091 = vmatpush1.msra.mxu0 %v315
    %1092 = vmatprep.subr.mxu0 %v319
    %1093 = vmatpush1.msra.mxu0 %v318
    %1094 = vmatprep.subr.mxu0 %v322
    %1095 = vmatpush1.msra.mxu0 %v321
    %1096 = vmatprep.subr.mxu0 %v325
    %1097 = vmatpush1.msra.mxu0 %v324
    %1098 = vmatprep.subr.mxu0 %v328
    %1099 = vmatpush1.msra.mxu0 %v327
    %1100 = vmatprep.subr.mxu0 %v331
    %1101 = vmatpush1.msra.mxu0 %v330
    %1102 = vmatprep.subr.mxu0 %v334
    %1103 = vmatpush1.msra.mxu0 %v333
    %1104 = vmatprep.subr.mxu0 %v337
    %1105 = vmatpush1.msra.mxu0 %v336
    %1106 = vmatprep.subr.mxu0 %v340
    %1107 = vmatpush1.msra.mxu0 %v339
    %1108 = vmatprep.subr.mxu0 %v343
    %1109 = vmatpush1.msra.mxu0 %v342
    %1110 = vmatprep.subr.mxu0 %v346
    %1111 = vmatpush1.msra.mxu0 %v345
    %1112 = vmatprep.subr.mxu0 0.0
    %1113 = vmatpush1.msra.mxu0 0.0
    %1114 = vmatprep.subr.mxu0 0.0
    %1115 = vmatpush1.msra.mxu0 0.0
    %1116 = vmatprep.subr.mxu0 0.0
    %1117 = vmatpush1.msra.mxu0 0.0
    %1118 = vmatprep.subr.mxu0 0.0
    %1119 = vmatpush1.msra.mxu0 0.0
    %1120 = vmatprep.subr.mxu0 0.0
    %1121 = vmatpush1.msra.mxu0 0.0
    %1122 = vmatprep.subr.mxu0 0.0
    %1123 = vmatpush1.msra.mxu0 0.0
    %1124 = vmatprep.subr.mxu0 0.0
    %1125 = vmatpush1.msra.mxu0 0.0
    %1126 = vmatprep.subr.mxu0 0.0
    %1127 = vmatpush1.msra.mxu0 0.0
    %1128 = vmatprep.subr.mxu0 0.0
    %1129 = vmatpush1.msra.mxu0 0.0
    %1130 = vmatprep.subr.mxu0 0.0
    %1131 = vmatpush1.msra.mxu0 0.0
    %1132 = vmatprep.subr.mxu0 0.0
    %1133 = vmatpush1.msra.mxu0 0.0
    %1134 = vmatprep.subr.mxu0 0.0
    %1135 = vmatpush1.msra.mxu0 0.0
    %1136 = vmatprep.subr.mxu0 0.0
    %1137 = vmatpush1.msra.mxu0 0.0
    %1138 = vmatprep.subr.mxu0 0.0
    %1139 = vmatpush1.msra.mxu0 0.0
    %1140 = vmatprep.subr.mxu0 0.0
    %1141 = vmatpush1.msra.mxu0 0.0
    %1142 = vmatprep.subr.mxu0 0.0
    %1143 = vmatpush1.msra.mxu0 0.0
    %1144 = vmatprep.mubr.f32.mxu0 0.0
    %1145 = vmatmul.mubr.f32.gmra.mrb[0].mxu0 %v1079
    %v1146 = vpop.f32.mrb[0].mxu0
    %v1147 = vadd.f32 0.0, %v1146
    %v1148 = vpop.f32.mrb[0].mxu0
    %v1149 = vadd.f32 0.0, %v1148
    %1150 = vdwg.mxu0
    %1151 = vmatprep.subr.mxu0 0.0
    %1152 = vmatpush1.msra.mxu0 %v302
    %1153 = vmatprep.subr.mxu0 0.0
    %1154 = vmatpush1.msra.mxu0 %v305
    %1155 = vmatprep.subr.mxu0 0.0
    %1156 = vmatpush1.msra.mxu0 %v308
    %1157 = vmatprep.subr.mxu0 0.0
    %1158 = vmatpush1.msra.mxu0 %v311
    %1159 = vmatprep.subr.mxu0 0.0
    %1160 = vmatpush1.msra.mxu0 %v314
    %1161 = vmatprep.subr.mxu0 0.0
    %1162 = vmatpush1.msra.mxu0 %v317
    %1163 = vmatprep.subr.mxu0 0.0
    %1164 = vmatpush1.msra.mxu0 %v320
    %1165 = vmatprep.subr.mxu0 0.0
    %1166 = vmatpush1.msra.mxu0 %v323
    %1167 = vmatprep.subr.mxu0 0.0
    %1168 = vmatpush1.msra.mxu0 %v326
    %1169 = vmatprep.subr.mxu0 0.0
    %1170 = vmatpush1.msra.mxu0 %v329
    %1171 = vmatprep.subr.mxu0 0.0
    %1172 = vmatpush1.msra.mxu0 %v332
    %1173 = vmatprep.subr.mxu0 0.0
    %1174 = vmatpush1.msra.mxu0 %v335
    %1175 = vmatprep.subr.mxu0 0.0
    %1176 = vmatpush1.msra.mxu0 %v338
    %1177 = vmatprep.subr.mxu0 0.0
    %1178 = vmatpush1.msra.mxu0 %v341
    %1179 = vmatprep.subr.mxu0 0.0
    %1180 = vmatpush1.msra.mxu0 %v344
    %1181 = vmatprep.subr.mxu0 0.0
    %1182 = vmatpush1.msra.mxu0 %v347
    %1183 = vmatprep.subr.mxu0 0.0
    %1184 = vmatpush1.msra.mxu0 0.0
    %1185 = vmatprep.subr.mxu0 0.0
    %1186 = vmatpush1.msra.mxu0 0.0
    %1187 = vmatprep.subr.mxu0 0.0
    %1188 = vmatpush1.msra.mxu0 0.0
    %1189 = vmatprep.subr.mxu0 0.0
    %1190 = vmatpush1.msra.mxu0 0.0
    %1191 = vmatprep.subr.mxu0 0.0
    %1192 = vmatpush1.msra.mxu0 0.0
    %1193 = vmatprep.subr.mxu0 0.0
    %1194 = vmatpush1.msra.mxu0 0.0
    %1195 = vmatprep.subr.mxu0 0.0
    %1196 = vmatpush1.msra.mxu0 0.0
    %1197 = vmatprep.subr.mxu0 0.0
    %1198 = vmatpush1.msra.mxu0 0.0
    %1199 = vmatprep.subr.mxu0 0.0
    %1200 = vmatpush1.msra.mxu0 0.0
    %1201 = vmatprep.subr.mxu0 0.0
    %1202 = vmatpush1.msra.mxu0 0.0
    %1203 = vmatprep.subr.mxu0 0.0
    %1204 = vmatpush1.msra.mxu0 0.0
    %1205 = vmatprep.subr.mxu0 0.0
    %1206 = vmatpush1.msra.mxu0 0.0
    %1207 = vmatprep.subr.mxu0 0.0
    %1208 = vmatpush1.msra.mxu0 0.0
    %1209 = vmatprep.subr.mxu0 0.0
    %1210 = vmatpush1.msra.mxu0 0.0
    %1211 = vmatprep.subr.mxu0 0.0
    %1212 = vmatpush1.msra.mxu0 0.0
    %1213 = vmatprep.subr.mxu0 0.0
    %1214 = vmatpush1.msra.mxu0 0.0
    %1215 = vmatprep.mubr.f32.mxu0 0.0
    %1216 = vmatmul.mubr.f32.gmra.mrb[0].mxu0 %v1079
    %v1217 = vpop.f32.mrb[0].mxu0
    %v1218 = vadd.f32 0.0, %v1217
    %v1219 = vpop.f32.mrb[0].mxu0
    %1220 = vdwg.mxu0
    %v1221 = vadd.f32 %v221, %v1147
    %v1222 = vxor.u32 %v1221, 2147483648
    %v1223 = vmul.f32 %v1222, 1.442695
    %v1224 = vpow.pop %v1223
    %v1225 = vadd.f32 %v1224, 1.0
    %v1226 = vrcp.pop %v1225
    %v1227 = vmul.f32 1.0, %v1226
    %v1228 = vadd.f32 %v223, %v1149
    %v1229 = vxor.u32 %v1228, 2147483648
    %v1230 = vmul.f32 %v1229, 1.442695
    %v1231 = vpow.pop %v1230
    %v1232 = vadd.f32 %v1231, 1.0
    %v1233 = vrcp.pop %v1232
    %v1234 = vmul.f32 1.0, %v1233
    %v1235 = vadd.f32 %v1218, %v508
    %v1236 = vmul.f32 %v1227, %v1235
    %v1237 = vadd.f32 %v297, %v1236
    %v1238 = vtanh.pop %v1237
    %v1239 = vsub.f32 1.0, %v1234
    %v1240 = vmul.f32 %v1239, %v1238
    %v1241 = vmul.f32 %v1234, %v1079
    %v1242 = vadd.f32 %v1240, %v1241
    %vm1243 = vcmp.gt.s32.totalorder %v109, 4
    %v1244 = vsel %vm1243, 1, 0
    %1245 = vset.pattern.permute.xlu0 0
    %1246 = vperm.xlu0 %1245, %v1244
    %v1247 = vpop.permute.xlu0 %1246
    %vm1248 = vcmp.eq.s32.totalorder %v1247, 1
    %v1249 = vsel %vm1248, %v1242, %v1079
    %1250 = vmatprep.subr.mxu0 %v301
    %1251 = vmatpush1.msra.mxu0 %v300
    %1252 = vmatprep.subr.mxu0 %v304
    %1253 = vmatpush1.msra.mxu0 %v303
    %1254 = vmatprep.subr.mxu0 %v307
    %1255 = vmatpush1.msra.mxu0 %v306
    %1256 = vmatprep.subr.mxu0 %v310
    %1257 = vmatpush1.msra.mxu0 %v309
    %1258 = vmatprep.subr.mxu0 %v313
    %1259 = vmatpush1.msra.mxu0 %v312
    %1260 = vmatprep.subr.mxu0 %v316
    %1261 = vmatpush1.msra.mxu0 %v315
    %1262 = vmatprep.subr.mxu0 %v319
    %1263 = vmatpush1.msra.mxu0 %v318
    %1264 = vmatprep.subr.mxu0 %v322
    %1265 = vmatpush1.msra.mxu0 %v321
    %1266 = vmatprep.subr.mxu0 %v325
    %1267 = vmatpush1.msra.mxu0 %v324
    %1268 = vmatprep.subr.mxu0 %v328
    %1269 = vmatpush1.msra.mxu0 %v327
    %1270 = vmatprep.subr.mxu0 %v331
    %1271 = vmatpush1.msra.mxu0 %v330
    %1272 = vmatprep.subr.mxu0 %v334
    %1273 = vmatpush1.msra.mxu0 %v333
    %1274 = vmatprep.subr.mxu0 %v337
    %1275 = vmatpush1.msra.mxu0 %v336
    %1276 = vmatprep.subr.mxu0 %v340
    %1277 = vmatpush1.msra.mxu0 %v339
    %1278 = vmatprep.subr.mxu0 %v343
    %1279 = vmatpush1.msra.mxu0 %v342
    %1280 = vmatprep.subr.mxu0 %v346
    %1281 = vmatpush1.msra.mxu0 %v345
    %1282 = vmatprep.subr.mxu0 0.0
    %1283 = vmatpush1.msra.mxu0 0.0
    %1284 = vmatprep.subr.mxu0 0.0
    %1285 = vmatpush1.msra.mxu0 0.0
    %1286 = vmatprep.subr.mxu0 0.0
    %1287 = vmatpush1.msra.mxu0 0.0
    %1288 = vmatprep.subr.mxu0 0.0
    %1289 = vmatpush1.msra.mxu0 0.0
    %1290 = vmatprep.subr.mxu0 0.0
    %1291 = vmatpush1.msra.mxu0 0.0
    %1292 = vmatprep.subr.mxu0 0.0
    %1293 = vmatpush1.msra.mxu0 0.0
    %1294 = vmatprep.subr.mxu0 0.0
    %1295 = vmatpush1.msra.mxu0 0.0
    %1296 = vmatprep.subr.mxu0 0.0
    %1297 = vmatpush1.msra.mxu0 0.0
    %1298 = vmatprep.subr.mxu0 0.0
    %1299 = vmatpush1.msra.mxu0 0.0
    %1300 = vmatprep.subr.mxu0 0.0
    %1301 = vmatpush1.msra.mxu0 0.0
    %1302 = vmatprep.subr.mxu0 0.0
    %1303 = vmatpush1.msra.mxu0 0.0
    %1304 = vmatprep.subr.mxu0 0.0
    %1305 = vmatpush1.msra.mxu0 0.0
    %1306 = vmatprep.subr.mxu0 0.0
    %1307 = vmatpush1.msra.mxu0 0.0
    %1308 = vmatprep.subr.mxu0 0.0
    %1309 = vmatpush1.msra.mxu0 0.0
    %1310 = vmatprep.subr.mxu0 0.0
    %1311 = vmatpush1.msra.mxu0 0.0
    %1312 = vmatprep.subr.mxu0 0.0
    %1313 = vmatpush1.msra.mxu0 0.0
    %1314 = vmatprep.mubr.f32.mxu0 0.0
    %1315 = vmatmul.mubr.f32.gmra.mrb[0].mxu0 %v1249
    %v1316 = vpop.f32.mrb[0].mxu0
    %v1317 = vadd.f32 0.0, %v1316
    %v1318 = vpop.f32.mrb[0].mxu0
    %v1319 = vadd.f32 0.0, %v1318
    %1320 = vdwg.mxu0
    %1321 = vmatprep.subr.mxu0 0.0
    %1322 = vmatpush1.msra.mxu0 %v302
    %1323 = vmatprep.subr.mxu0 0.0
    %1324 = vmatpush1.msra.mxu0 %v305
    %1325 = vmatprep.subr.mxu0 0.0
    %1326 = vmatpush1.msra.mxu0 %v308
    %1327 = vmatprep.subr.mxu0 0.0
    %1328 = vmatpush1.msra.mxu0 %v311
    %1329 = vmatprep.subr.mxu0 0.0
    %1330 = vmatpush1.msra.mxu0 %v314
    %1331 = vmatprep.subr.mxu0 0.0
    %1332 = vmatpush1.msra.mxu0 %v317
    %1333 = vmatprep.subr.mxu0 0.0
    %1334 = vmatpush1.msra.mxu0 %v320
    %1335 = vmatprep.subr.mxu0 0.0
    %1336 = vmatpush1.msra.mxu0 %v323
    %1337 = vmatprep.subr.mxu0 0.0
    %1338 = vmatpush1.msra.mxu0 %v326
    %1339 = vmatprep.subr.mxu0 0.0
    %1340 = vmatpush1.msra.mxu0 %v329
    %1341 = vmatprep.subr.mxu0 0.0
    %1342 = vmatpush1.msra.mxu0 %v332
    %1343 = vmatprep.subr.mxu0 0.0
    %1344 = vmatpush1.msra.mxu0 %v335
    %1345 = vmatprep.subr.mxu0 0.0
    %1346 = vmatpush1.msra.mxu0 %v338
    %1347 = vmatprep.subr.mxu0 0.0
    %1348 = vmatpush1.msra.mxu0 %v341
    %1349 = vmatprep.subr.mxu0 0.0
    %1350 = vmatpush1.msra.mxu0 %v344
    %1351 = vmatprep.subr.mxu0 0.0
    %1352 = vmatpush1.msra.mxu0 %v347
    %1353 = vmatprep.subr.mxu0 0.0
    %1354 = vmatpush1.msra.mxu0 0.0
    %1355 = vmatprep.subr.mxu0 0.0
    %1356 = vmatpush1.msra.mxu0 0.0
    %1357 = vmatprep.subr.mxu0 0.0
    %1358 = vmatpush1.msra.mxu0 0.0
    %1359 = vmatprep.subr.mxu0 0.0
    %1360 = vmatpush1.msra.mxu0 0.0
    %1361 = vmatprep.subr.mxu0 0.0
    %1362 = vmatpush1.msra.mxu0 0.0
    %1363 = vmatprep.subr.mxu0 0.0
    %1364 = vmatpush1.msra.mxu0 0.0
    %1365 = vmatprep.subr.mxu0 0.0
    %1366 = vmatpush1.msra.mxu0 0.0
    %1367 = vmatprep.subr.mxu0 0.0
    %1368 = vmatpush1.msra.mxu0 0.0
    %1369 = vmatprep.subr.mxu0 0.0
    %1370 = vmatpush1.msra.mxu0 0.0
    %1371 = vmatprep.subr.mxu0 0.0
    %1372 = vmatpush1.msra.mxu0 0.0
    %1373 = vmatprep.subr.mxu0 0.0
    %1374 = vmatpush1.msra.mxu0 0.0
    %1375 = vmatprep.subr.mxu0 0.0
    %1376 = vmatpush1.msra.mxu0 0.0
    %1377 = vmatprep.subr.mxu0 0.0
    %1378 = vmatpush1.msra.mxu0 0.0
    %1379 = vmatprep.subr.mxu0 0.0
    %1380 = vmatpush1.msra.mxu0 0.0
    %1381 = vmatprep.subr.mxu0 0.0
    %1382 = vmatpush1.msra.mxu0 0.0
    %1383 = vmatprep.subr.mxu0 0.0
    %1384 = vmatpush1.msra.mxu0 0.0
    %1385 = vmatprep.mubr.f32.mxu0 0.0
    %1386 = vmatmul.mubr.f32.gmra.mrb[0].mxu0 %v1249
    %v1387 = vpop.f32.mrb[0].mxu0
    %v1388 = vadd.f32 0.0, %v1387
    %v1389 = vpop.f32.mrb[0].mxu0
    %1390 = vdwg.mxu0
    %v1392 = vrot.slane %v1317, 6
    %v1394 = vadd.f32 %v221, %v1392
    %v1395 = vxor.u32 %v1394, 2147483648
    %v1396 = vmul.f32 %v1395, 1.442695
    %v1397 = vpow.pop %v1396
    %v1398 = vadd.f32 %v1397, 1.0
    %v1399 = vrcp.pop %v1398
    %v1400 = vmul.f32 1.0, %v1399
    %v1402 = vrot.slane %v1319, 6
    %v1404 = vadd.f32 %v223, %v1402
    %v1405 = vxor.u32 %v1404, 2147483648
    %v1406 = vmul.f32 %v1405, 1.442695
    %v1407 = vpow.pop %v1406
    %v1408 = vadd.f32 %v1407, 1.0
    %v1409 = vrcp.pop %v1408
    %v1410 = vmul.f32 1.0, %v1409
    %v1411 = vadd.f32 %v1388, %v508
    %v1413 = vrot.slane %v1411, 6
    %v1415 = vmul.f32 %v1400, %v1413
    %v1416 = vadd.f32 %v297, %v1415
    %v1417 = vtanh.pop %v1416
    %v1418 = vsub.f32 1.0, %v1410
    %v1419 = vmul.f32 %v1418, %v1417
    %v1421 = vrot.slane %v1249, 6
    %v1423 = vmul.f32 %v1410, %v1421
    %v1424 = vadd.f32 %v1419, %v1423
    %vm1425 = vcmp.gt.s32.totalorder %v109, 5
    %v1426 = vsel %vm1425, 1, 0
    %1427 = vset.pattern.permute.xlu0 0
    %1428 = vperm.xlu0 %1427, %v1426
    %v1429 = vpop.permute.xlu0 %1428
    %vm1430 = vcmp.eq.s32.totalorder %v1429, 1
    %v1432 = vrot.slane %v1424, 2
    %v1434 = vsel %vm1430, %v1432, %v1249
    %1435 = vmatprep.subr.mxu0 %v301
    %1436 = vmatpush1.msra.mxu0 %v300
    %1437 = vmatprep.subr.mxu0 %v304
    %1438 = vmatpush1.msra.mxu0 %v303
    %1439 = vmatprep.subr.mxu0 %v307
    %1440 = vmatpush1.msra.mxu0 %v306
    %1441 = vmatprep.subr.mxu0 %v310
    %1442 = vmatpush1.msra.mxu0 %v309
    %1443 = vmatprep.subr.mxu0 %v313
    %1444 = vmatpush1.msra.mxu0 %v312
    %1445 = vmatprep.subr.mxu0 %v316
    %1446 = vmatpush1.msra.mxu0 %v315
    %1447 = vmatprep.subr.mxu0 %v319
    %1448 = vmatpush1.msra.mxu0 %v318
    %1449 = vmatprep.subr.mxu0 %v322
    %1450 = vmatpush1.msra.mxu0 %v321
    %1451 = vmatprep.subr.mxu0 %v325
    %1452 = vmatpush1.msra.mxu0 %v324
    %1453 = vmatprep.subr.mxu0 %v328
    %1454 = vmatpush1.msra.mxu0 %v327
    %1455 = vmatprep.subr.mxu0 %v331
    %1456 = vmatpush1.msra.mxu0 %v330
    %1457 = vmatprep.subr.mxu0 %v334
    %1458 = vmatpush1.msra.mxu0 %v333
    %1459 = vmatprep.subr.mxu0 %v337
    %1460 = vmatpush1.msra.mxu0 %v336
    %1461 = vmatprep.subr.mxu0 %v340
    %1462 = vmatpush1.msra.mxu0 %v339
    %1463 = vmatprep.subr.mxu0 %v343
    %1464 = vmatpush1.msra.mxu0 %v342
    %1465 = vmatprep.subr.mxu0 %v346
    %1466 = vmatpush1.msra.mxu0 %v345
    %1467 = vmatprep.subr.mxu0 0.0
    %1468 = vmatpush1.msra.mxu0 0.0
    %1469 = vmatprep.subr.mxu0 0.0
    %1470 = vmatpush1.msra.mxu0 0.0
    %1471 = vmatprep.subr.mxu0 0.0
    %1472 = vmatpush1.msra.mxu0 0.0
    %1473 = vmatprep.subr.mxu0 0.0
    %1474 = vmatpush1.msra.mxu0 0.0
    %1475 = vmatprep.subr.mxu0 0.0
    %1476 = vmatpush1.msra.mxu0 0.0
    %1477 = vmatprep.subr.mxu0 0.0
    %1478 = vmatpush1.msra.mxu0 0.0
    %1479 = vmatprep.subr.mxu0 0.0
    %1480 = vmatpush1.msra.mxu0 0.0
    %1481 = vmatprep.subr.mxu0 0.0
    %1482 = vmatpush1.msra.mxu0 0.0
    %1483 = vmatprep.subr.mxu0 0.0
    %1484 = vmatpush1.msra.mxu0 0.0
    %1485 = vmatprep.subr.mxu0 0.0
    %1486 = vmatpush1.msra.mxu0 0.0
    %1487 = vmatprep.subr.mxu0 0.0
    %1488 = vmatpush1.msra.mxu0 0.0
    %1489 = vmatprep.subr.mxu0 0.0
    %1490 = vmatpush1.msra.mxu0 0.0
    %1491 = vmatprep.subr.mxu0 0.0
    %1492 = vmatpush1.msra.mxu0 0.0
    %1493 = vmatprep.subr.mxu0 0.0
    %1494 = vmatpush1.msra.mxu0 0.0
    %1495 = vmatprep.subr.mxu0 0.0
    %1496 = vmatpush1.msra.mxu0 0.0
    %1497 = vmatprep.subr.mxu0 0.0
    %1498 = vmatpush1.msra.mxu0 0.0
    %1499 = vmatprep.mubr.f32.mxu0 0.0
    %1500 = vmatmul.mubr.f32.gmra.mrb[0].mxu0 %v1434
    %v1501 = vpop.f32.mrb[0].mxu0
    %v1502 = vadd.f32 0.0, %v1501
    %v1503 = vpop.f32.mrb[0].mxu0
    %v1504 = vadd.f32 0.0, %v1503
    %1505 = vdwg.mxu0
    %1506 = vmatprep.subr.mxu0 0.0
    %1507 = vmatpush1.msra.mxu0 %v302
    %1508 = vmatprep.subr.mxu0 0.0
    %1509 = vmatpush1.msra.mxu0 %v305
    %1510 = vmatprep.subr.mxu0 0.0
    %1511 = vmatpush1.msra.mxu0 %v308
    %1512 = vmatprep.subr.mxu0 0.0
    %1513 = vmatpush1.msra.mxu0 %v311
    %1514 = vmatprep.subr.mxu0 0.0
    %1515 = vmatpush1.msra.mxu0 %v314
    %1516 = vmatprep.subr.mxu0 0.0
    %1517 = vmatpush1.msra.mxu0 %v317
    %1518 = vmatprep.subr.mxu0 0.0
    %1519 = vmatpush1.msra.mxu0 %v320
    %1520 = vmatprep.subr.mxu0 0.0
    %1521 = vmatpush1.msra.mxu0 %v323
    %1522 = vmatprep.subr.mxu0 0.0
    %1523 = vmatpush1.msra.mxu0 %v326
    %1524 = vmatprep.subr.mxu0 0.0
    %1525 = vmatpush1.msra.mxu0 %v329
    %1526 = vmatprep.subr.mxu0 0.0
    %1527 = vmatpush1.msra.mxu0 %v332
    %1528 = vmatprep.subr.mxu0 0.0
    %1529 = vmatpush1.msra.mxu0 %v335
    %1530 = vmatprep.subr.mxu0 0.0
    %1531 = vmatpush1.msra.mxu0 %v338
    %1532 = vmatprep.subr.mxu0 0.0
    %1533 = vmatpush1.msra.mxu0 %v341
    %1534 = vmatprep.subr.mxu0 0.0
    %1535 = vmatpush1.msra.mxu0 %v344
    %1536 = vmatprep.subr.mxu0 0.0
    %1537 = vmatpush1.msra.mxu0 %v347
    %1538 = vmatprep.subr.mxu0 0.0
    %1539 = vmatpush1.msra.mxu0 0.0
    %1540 = vmatprep.subr.mxu0 0.0
    %1541 = vmatpush1.msra.mxu0 0.0
    %1542 = vmatprep.subr.mxu0 0.0
    %1543 = vmatpush1.msra.mxu0 0.0
    %1544 = vmatprep.subr.mxu0 0.0
    %1545 = vmatpush1.msra.mxu0 0.0
    %1546 = vmatprep.subr.mxu0 0.0
    %1547 = vmatpush1.msra.mxu0 0.0
    %1548 = vmatprep.subr.mxu0 0.0
    %1549 = vmatpush1.msra.mxu0 0.0
    %1550 = vmatprep.subr.mxu0 0.0
    %1551 = vmatpush1.msra.mxu0 0.0
    %1552 = vmatprep.subr.mxu0 0.0
    %1553 = vmatpush1.msra.mxu0 0.0
    %1554 = vmatprep.subr.mxu0 0.0
    %1555 = vmatpush1.msra.mxu0 0.0
    %1556 = vmatprep.subr.mxu0 0.0
    %1557 = vmatpush1.msra.mxu0 0.0
    %1558 = vmatprep.subr.mxu0 0.0
    %1559 = vmatpush1.msra.mxu0 0.0
    %1560 = vmatprep.subr.mxu0 0.0
    %1561 = vmatpush1.msra.mxu0 0.0
    %1562 = vmatprep.subr.mxu0 0.0
    %1563 = vmatpush1.msra.mxu0 0.0
    %1564 = vmatprep.subr.mxu0 0.0
    %1565 = vmatpush1.msra.mxu0 0.0
    %1566 = vmatprep.subr.mxu0 0.0
    %1567 = vmatpush1.msra.mxu0 0.0
    %1568 = vmatprep.subr.mxu0 0.0
    %1569 = vmatpush1.msra.mxu0 0.0
    %1570 = vmatprep.mubr.f32.mxu0 0.0
    %1571 = vmatmul.mubr.f32.gmra.mrb[0].mxu0 %v1434
    %v1572 = vpop.f32.mrb[0].mxu0
    %v1573 = vadd.f32 0.0, %v1572
    %v1574 = vpop.f32.mrb[0].mxu0
    %1575 = vdwg.mxu0
    %v1577 = vrot.slane %v1502, 4
    %v1579 = vadd.f32 %v221, %v1577
    %v1580 = vxor.u32 %v1579, 2147483648
    %v1581 = vmul.f32 %v1580, 1.442695
    %v1582 = vpow.pop %v1581
    %v1583 = vadd.f32 %v1582, 1.0
    %v1584 = vrcp.pop %v1583
    %v1585 = vmul.f32 1.0, %v1584
    %v1587 = vrot.slane %v1504, 4
    %v1589 = vadd.f32 %v223, %v1587
    %v1590 = vxor.u32 %v1589, 2147483648
    %v1591 = vmul.f32 %v1590, 1.442695
    %v1592 = vpow.pop %v1591
    %v1593 = vadd.f32 %v1592, 1.0
    %v1594 = vrcp.pop %v1593
    %v1595 = vmul.f32 1.0, %v1594
    %v1596 = vadd.f32 %v1573, %v508
    %v1598 = vrot.slane %v1596, 4
    %v1600 = vmul.f32 %v1585, %v1598
    %v1601 = vadd.f32 %v297, %v1600
    %v1602 = vtanh.pop %v1601
    %v1603 = vsub.f32 1.0, %v1595
    %v1604 = vmul.f32 %v1603, %v1602
    %v1606 = vrot.slane %v1434, 4
    %v1608 = vmul.f32 %v1595, %v1606
    %v1609 = vadd.f32 %v1604, %v1608
    %vm1610 = vcmp.gt.s32.totalorder %v109, 6
    %v1611 = vsel %vm1610, 1, 0
    %1612 = vset.pattern.permute.xlu0 0
    %1613 = vperm.xlu0 %1612, %v1611
    %v1614 = vpop.permute.xlu0 %1613
    %vm1615 = vcmp.eq.s32.totalorder %v1614, 1
    %v1617 = vrot.slane %v1609, 4
    %v1619 = vsel %vm1615, %v1617, %v1434
    %1620 = vmatprep.subr.mxu0 %v301
    %1621 = vmatpush1.msra.mxu0 %v300
    %1622 = vmatprep.subr.mxu0 %v304
    %1623 = vmatpush1.msra.mxu0 %v303
    %1624 = vmatprep.subr.mxu0 %v307
    %1625 = vmatpush1.msra.mxu0 %v306
    %1626 = vmatprep.subr.mxu0 %v310
    %1627 = vmatpush1.msra.mxu0 %v309
    %1628 = vmatprep.subr.mxu0 %v313
    %1629 = vmatpush1.msra.mxu0 %v312
    %1630 = vmatprep.subr.mxu0 %v316
    %1631 = vmatpush1.msra.mxu0 %v315
    %1632 = vmatprep.subr.mxu0 %v319
    %1633 = vmatpush1.msra.mxu0 %v318
    %1634 = vmatprep.subr.mxu0 %v322
    %1635 = vmatpush1.msra.mxu0 %v321
    %1636 = vmatprep.subr.mxu0 %v325
    %1637 = vmatpush1.msra.mxu0 %v324
    %1638 = vmatprep.subr.mxu0 %v328
    %1639 = vmatpush1.msra.mxu0 %v327
    %1640 = vmatprep.subr.mxu0 %v331
    %1641 = vmatpush1.msra.mxu0 %v330
    %1642 = vmatprep.subr.mxu0 %v334
    %1643 = vmatpush1.msra.mxu0 %v333
    %1644 = vmatprep.subr.mxu0 %v337
    %1645 = vmatpush1.msra.mxu0 %v336
    %1646 = vmatprep.subr.mxu0 %v340
    %1647 = vmatpush1.msra.mxu0 %v339
    %1648 = vmatprep.subr.mxu0 %v343
    %1649 = vmatpush1.msra.mxu0 %v342
    %1650 = vmatprep.subr.mxu0 %v346
    %1651 = vmatpush1.msra.mxu0 %v345
    %1652 = vmatprep.subr.mxu0 0.0
    %1653 = vmatpush1.msra.mxu0 0.0
    %1654 = vmatprep.subr.mxu0 0.0
    %1655 = vmatpush1.msra.mxu0 0.0
    %1656 = vmatprep.subr.mxu0 0.0
    %1657 = vmatpush1.msra.mxu0 0.0
    %1658 = vmatprep.subr.mxu0 0.0
    %1659 = vmatpush1.msra.mxu0 0.0
    %1660 = vmatprep.subr.mxu0 0.0
    %1661 = vmatpush1.msra.mxu0 0.0
    %1662 = vmatprep.subr.mxu0 0.0
    %1663 = vmatpush1.msra.mxu0 0.0
    %1664 = vmatprep.subr.mxu0 0.0
    %1665 = vmatpush1.msra.mxu0 0.0
    %1666 = vmatprep.subr.mxu0 0.0
    %1667 = vmatpush1.msra.mxu0 0.0
    %1668 = vmatprep.subr.mxu0 0.0
    %1669 = vmatpush1.msra.mxu0 0.0
    %1670 = vmatprep.subr.mxu0 0.0
    %1671 = vmatpush1.msra.mxu0 0.0
    %1672 = vmatprep.subr.mxu0 0.0
    %1673 = vmatpush1.msra.mxu0 0.0
    %1674 = vmatprep.subr.mxu0 0.0
    %1675 = vmatpush1.msra.mxu0 0.0
    %1676 = vmatprep.subr.mxu0 0.0
    %1677 = vmatpush1.msra.mxu0 0.0
    %1678 = vmatprep.subr.mxu0 0.0
    %1679 = vmatpush1.msra.mxu0 0.0
    %1680 = vmatprep.subr.mxu0 0.0
    %1681 = vmatpush1.msra.mxu0 0.0
    %1682 = vmatprep.subr.mxu0 0.0
    %1683 = vmatpush1.msra.mxu0 0.0
    %1684 = vmatprep.mubr.f32.mxu0 0.0
    %1685 = vmatmul.mubr.f32.gmra.mrb[0].mxu0 %v1619
    %v1686 = vpop.f32.mrb[0].mxu0
    %v1687 = vadd.f32 0.0, %v1686
    %v1688 = vpop.f32.mrb[0].mxu0
    %v1689 = vadd.f32 0.0, %v1688
    %1690 = vdwg.mxu0
    %1691 = vmatprep.subr.mxu0 0.0
    %1692 = vmatpush1.msra.mxu0 %v302
    %1693 = vmatprep.subr.mxu0 0.0
    %1694 = vmatpush1.msra.mxu0 %v305
    %1695 = vmatprep.subr.mxu0 0.0
    %1696 = vmatpush1.msra.mxu0 %v308
    %1697 = vmatprep.subr.mxu0 0.0
    %1698 = vmatpush1.msra.mxu0 %v311
    %1699 = vmatprep.subr.mxu0 0.0
    %1700 = vmatpush1.msra.mxu0 %v314
    %1701 = vmatprep.subr.mxu0 0.0
    %1702 = vmatpush1.msra.mxu0 %v317
    %1703 = vmatprep.subr.mxu0 0.0
    %1704 = vmatpush1.msra.mxu0 %v320
    %1705 = vmatprep.subr.mxu0 0.0
    %1706 = vmatpush1.msra.mxu0 %v323
    %1707 = vmatprep.subr.mxu0 0.0
    %1708 = vmatpush1.msra.mxu0 %v326
    %1709 = vmatprep.subr.mxu0 0.0
    %1710 = vmatpush1.msra.mxu0 %v329
    %1711 = vmatprep.subr.mxu0 0.0
    %1712 = vmatpush1.msra.mxu0 %v332
    %1713 = vmatprep.subr.mxu0 0.0
    %1714 = vmatpush1.msra.mxu0 %v335
    %1715 = vmatprep.subr.mxu0 0.0
    %1716 = vmatpush1.msra.mxu0 %v338
    %1717 = vmatprep.subr.mxu0 0.0
    %1718 = vmatpush1.msra.mxu0 %v341
    %1719 = vmatprep.subr.mxu0 0.0
    %1720 = vmatpush1.msra.mxu0 %v344
    %1721 = vmatprep.subr.mxu0 0.0
    %1722 = vmatpush1.msra.mxu0 %v347
    %1723 = vmatprep.subr.mxu0 0.0
    %1724 = vmatpush1.msra.mxu0 0.0
    %1725 = vmatprep.subr.mxu0 0.0
    %1726 = vmatpush1.msra.mxu0 0.0
    %1727 = vmatprep.subr.mxu0 0.0
    %1728 = vmatpush1.msra.mxu0 0.0
    %1729 = vmatprep.subr.mxu0 0.0
    %1730 = vmatpush1.msra.mxu0 0.0
    %1731 = vmatprep.subr.mxu0 0.0
    %1732 = vmatpush1.msra.mxu0 0.0
    %1733 = vmatprep.subr.mxu0 0.0
    %1734 = vmatpush1.msra.mxu0 0.0
    %1735 = vmatprep.subr.mxu0 0.0
    %1736 = vmatpush1.msra.mxu0 0.0
    %1737 = vmatprep.subr.mxu0 0.0
    %1738 = vmatpush1.msra.mxu0 0.0
    %1739 = vmatprep.subr.mxu0 0.0
    %1740 = vmatpush1.msra.mxu0 0.0
    %1741 = vmatprep.subr.mxu0 0.0
    %1742 = vmatpush1.msra.mxu0 0.0
    %1743 = vmatprep.subr.mxu0 0.0
    %1744 = vmatpush1.msra.mxu0 0.0
    %1745 = vmatprep.subr.mxu0 0.0
    %1746 = vmatpush1.msra.mxu0 0.0
    %1747 = vmatprep.subr.mxu0 0.0
    %1748 = vmatpush1.msra.mxu0 0.0
    %1749 = vmatprep.subr.mxu0 0.0
    %1750 = vmatpush1.msra.mxu0 0.0
    %1751 = vmatprep.subr.mxu0 0.0
    %1752 = vmatpush1.msra.mxu0 0.0
    %1753 = vmatprep.subr.mxu0 0.0
    %1754 = vmatpush1.msra.mxu0 0.0
    %1755 = vmatprep.mubr.f32.mxu0 0.0
    %1756 = vmatmul.mubr.f32.gmra.mrb[0].mxu0 %v1619
    %v1757 = vpop.f32.mrb[0].mxu0
    %v1758 = vadd.f32 0.0, %v1757
    %v1759 = vpop.f32.mrb[0].mxu0
    %1760 = vdwg.mxu0
    %v1762 = vrot.slane %v1687, 2
    %v1764 = vadd.f32 %v221, %v1762
    %v1765 = vxor.u32 %v1764, 2147483648
    %v1766 = vmul.f32 %v1765, 1.442695
    %v1767 = vpow.pop %v1766
    %v1768 = vadd.f32 %v1767, 1.0
    %v1769 = vrcp.pop %v1768
    %v1770 = vmul.f32 1.0, %v1769
    %v1772 = vrot.slane %v1689, 2
    %v1774 = vadd.f32 %v223, %v1772
    %v1775 = vxor.u32 %v1774, 2147483648
    %v1776 = vmul.f32 %v1775, 1.442695
    %v1777 = vpow.pop %v1776
    %v1778 = vadd.f32 %v1777, 1.0
    %v1779 = vrcp.pop %v1778
    %v1780 = vmul.f32 1.0, %v1779
    %v1781 = vadd.f32 %v1758, %v508
    %v1783 = vrot.slane %v1781, 2
    %v1785 = vmul.f32 %v1770, %v1783
    %v1786 = vadd.f32 %v297, %v1785
    %v1787 = vtanh.pop %v1786
    %v1788 = vsub.f32 1.0, %v1780
    %v1789 = vmul.f32 %v1788, %v1787
    %v1791 = vrot.slane %v1619, 2
    %v1793 = vmul.f32 %v1780, %v1791
    %v1794 = vadd.f32 %v1789, %v1793
    %vm1795 = vcmp.gt.s32.totalorder %v109, 7
    %v1796 = vsel %vm1795, 1, 0
    %1797 = vset.pattern.permute.xlu0 0
    %1798 = vperm.xlu0 %1797, %v1796
    %v1799 = vpop.permute.xlu0 %1798
    %vm1800 = vcmp.eq.s32.totalorder %v1799, 1
    %v1802 = vrot.slane %v1794, 6
    %v1804 = vsel %vm1800, %v1802, %v1619
    %v1805 = vld [vmem:[#allocation10] sm:$0xff]
    %v1806 = vld [vmem:[#allocation10 + $0x8] sm:$0xff]
    %v1807 = vld [vmem:[#allocation10 + $0x10] sm:$0xff]
    %v1808 = vld [vmem:[#allocation10 + $0x18] sm:$0xff]
    %v1809 = vld [vmem:[#allocation10 + $0x20] sm:$0xff]
    %v1810 = vld [vmem:[#allocation10 + $0x28] sm:$0xff]
    %v1811 = vld [vmem:[#allocation10 + $0x30] sm:$0xff]
    %v1812 = vld [vmem:[#allocation10 + $0x38] sm:$0xff]
    %v1813 = vld [vmem:[#allocation10 + $0x40] sm:$0xff]
    %v1814 = vld [vmem:[#allocation10 + $0x48] sm:$0xff]
    %v1815 = vld [vmem:[#allocation10 + $0x50] sm:$0xff]
    %v1816 = vld [vmem:[#allocation10 + $0x58] sm:$0xff]
    %v1817 = vld [vmem:[#allocation10 + $0x60] sm:$0xff]
    %v1818 = vld [vmem:[#allocation10 + $0x68] sm:$0xff]
    %v1819 = vld [vmem:[#allocation10 + $0x70] sm:$0xff]
    %v1820 = vld [vmem:[#allocation10 + $0x78] sm:$0xff]
    %v1821 = vld [vmem:[#allocation10 + $0x80] sm:$0xff]
    %v1822 = vld [vmem:[#allocation10 + $0x88] sm:$0xff]
    %v1823 = vld [vmem:[#allocation10 + $0x90] sm:$0xff]
    %v1824 = vld [vmem:[#allocation10 + $0x98] sm:$0xff]
    %v1825 = vld [vmem:[#allocation10 + $0xa0] sm:$0xff]
    %v1826 = vld [vmem:[#allocation10 + $0xa8] sm:$0xff]
    %v1827 = vld [vmem:[#allocation10 + $0xb0] sm:$0xff]
    %v1828 = vld [vmem:[#allocation10 + $0xb8] sm:$0xff]
    %v1829 = vld [vmem:[#allocation10 + $0xc0] sm:$0xff]
    %v1830 = vld [vmem:[#allocation10 + $0xc8] sm:$0xff]
    %v1831 = vld [vmem:[#allocation10 + $0xd0] sm:$0xff]
    %v1832 = vld [vmem:[#allocation10 + $0xd8] sm:$0xff]
    %v1833 = vld [vmem:[#allocation10 + $0xe0] sm:$0xff]
    %v1834 = vld [vmem:[#allocation10 + $0xe8] sm:$0xff]
    %v1835 = vld [vmem:[#allocation10 + $0xf0] sm:$0xff]
    %v1836 = vld [vmem:[#allocation10 + $0xf8] sm:$0xff]
    %v1837 = vld [vmem:[#allocation10 + $0x100] sm:$0xff]
    %v1838 = vld [vmem:[#allocation10 + $0x108] sm:$0xff]
    %v1839 = vld [vmem:[#allocation10 + $0x110] sm:$0xff]
    %v1840 = vld [vmem:[#allocation10 + $0x118] sm:$0xff]
    %v1841 = vld [vmem:[#allocation10 + $0x120] sm:$0xff]
    %v1842 = vld [vmem:[#allocation10 + $0x128] sm:$0xff]
    %v1843 = vld [vmem:[#allocation10 + $0x130] sm:$0xff]
    %v1844 = vld [vmem:[#allocation10 + $0x138] sm:$0xff]
    %v1845 = vld [vmem:[#allocation10 + $0x140] sm:$0xff]
    %v1846 = vld [vmem:[#allocation10 + $0x148] sm:$0xff]
    %v1847 = vld [vmem:[#allocation10 + $0x150] sm:$0xff]
    %v1848 = vld [vmem:[#allocation10 + $0x158] sm:$0xff]
    %v1849 = vld [vmem:[#allocation10 + $0x160] sm:$0xff]
    %v1850 = vld [vmem:[#allocation10 + $0x168] sm:$0xff]
    %v1851 = vld [vmem:[#allocation10 + $0x170] sm:$0xff]
    %v1852 = vld [vmem:[#allocation10 + $0x178] sm:$0xff]
    %v1853 = vld [vmem:[#allocation10 + $0x180] sm:$0xff]
    %v1854 = vld [vmem:[#allocation10 + $0x188] sm:$0xff]
    %v1855 = vld [vmem:[#allocation10 + $0x190] sm:$0xff]
    %v1856 = vld [vmem:[#allocation10 + $0x198] sm:$0xff]
    %v1857 = vld [vmem:[#allocation10 + $0x1a0] sm:$0xff]
    %v1858 = vld [vmem:[#allocation10 + $0x1a8] sm:$0xff]
    %v1859 = vld [vmem:[#allocation10 + $0x1b0] sm:$0xff]
    %v1860 = vld [vmem:[#allocation10 + $0x1b8] sm:$0xff]
    %v1861 = vld [vmem:[#allocation10 + $0x1c0] sm:$0xff]
    %v1862 = vld [vmem:[#allocation10 + $0x1c8] sm:$0xff]
    %v1863 = vld [vmem:[#allocation10 + $0x1d0] sm:$0xff]
    %v1864 = vld [vmem:[#allocation10 + $0x1d8] sm:$0xff]
    %v1865 = vld [vmem:[#allocation10 + $0x1e0] sm:$0xff]
    %v1866 = vld [vmem:[#allocation10 + $0x1e8] sm:$0xff]
    %v1867 = vld [vmem:[#allocation10 + $0x1f0] sm:$0xff]
    %v1868 = vld [vmem:[#allocation10 + $0x1f8] sm:$0xff]
    %v1869 = vld [vmem:[%s10] sm:$0xf]
    %v1871 = vlaneseq
    %v1872 = vshrl.u32 %v1871, 7
    %v1873 = vsub.s32 0, %v1872
    %v1874 = vrot.slane %v1869, %v1873
    %v1875 = vlaneseq
    %v1876 = vshrl.u32 %v1875, 7
    %v1877 = vsub.s32 1, %v1876
    %v1878 = vrot.slane %v1869, %v1877
    %v1879 = vlaneseq
    %v1880 = vshrl.u32 %v1879, 7
    %v1881 = vsub.s32 2, %v1880
    %v1882 = vrot.slane %v1869, %v1881
    %v1883 = vlaneseq
    %v1884 = vshrl.u32 %v1883, 7
    %v1885 = vsub.s32 3, %v1884
    %v1886 = vrot.slane %v1869, %v1885
    %1891 = vmatprep.subr.mxu0 %v1806
    %1892 = vmatpush1.msra.mxu0 %v1805
    %1893 = vmatprep.subr.mxu0 %v1810
    %1894 = vmatpush1.msra.mxu0 %v1809
    %1895 = vmatprep.subr.mxu0 %v1814
    %1896 = vmatpush1.msra.mxu0 %v1813
    %1897 = vmatprep.subr.mxu0 %v1818
    %1898 = vmatpush1.msra.mxu0 %v1817
    %1899 = vmatprep.subr.mxu0 %v1822
    %1900 = vmatpush1.msra.mxu0 %v1821
    %1901 = vmatprep.subr.mxu0 %v1826
    %1902 = vmatpush1.msra.mxu0 %v1825
    %1903 = vmatprep.subr.mxu0 %v1830
    %1904 = vmatpush1.msra.mxu0 %v1829
    %1905 = vmatprep.subr.mxu0 %v1834
    %1906 = vmatpush1.msra.mxu0 %v1833
    %1907 = vmatprep.subr.mxu0 %v1838
    %1908 = vmatpush1.msra.mxu0 %v1837
    %1909 = vmatprep.subr.mxu0 %v1842
    %1910 = vmatpush1.msra.mxu0 %v1841
    %1911 = vmatprep.subr.mxu0 %v1846
    %1912 = vmatpush1.msra.mxu0 %v1845
    %1913 = vmatprep.subr.mxu0 %v1850
    %1914 = vmatpush1.msra.mxu0 %v1849
    %1915 = vmatprep.subr.mxu0 %v1854
    %1916 = vmatpush1.msra.mxu0 %v1853
    %1917 = vmatprep.subr.mxu0 %v1858
    %1918 = vmatpush1.msra.mxu0 %v1857
    %1919 = vmatprep.subr.mxu0 %v1862
    %1920 = vmatpush1.msra.mxu0 %v1861
    %1921 = vmatprep.subr.mxu0 %v1866
    %1922 = vmatpush1.msra.mxu0 %v1865
    %1923 = vmatprep.subr.mxu0 0.0
    %1924 = vmatpush1.msra.mxu0 0.0
    %1925 = vmatprep.subr.mxu0 0.0
    %1926 = vmatpush1.msra.mxu0 0.0
    %1927 = vmatprep.subr.mxu0 0.0
    %1928 = vmatpush1.msra.mxu0 0.0
    %1929 = vmatprep.subr.mxu0 0.0
    %1930 = vmatpush1.msra.mxu0 0.0
    %1931 = vmatprep.subr.mxu0 0.0
    %1932 = vmatpush1.msra.mxu0 0.0
    %1933 = vmatprep.subr.mxu0 0.0
    %1934 = vmatpush1.msra.mxu0 0.0
    %1935 = vmatprep.subr.mxu0 0.0
    %1936 = vmatpush1.msra.mxu0 0.0
    %1937 = vmatprep.subr.mxu0 0.0
    %1938 = vmatpush1.msra.mxu0 0.0
    %1939 = vmatprep.subr.mxu0 0.0
    %1940 = vmatpush1.msra.mxu0 0.0
    %1941 = vmatprep.subr.mxu0 0.0
    %1942 = vmatpush1.msra.mxu0 0.0
    %1943 = vmatprep.subr.mxu0 0.0
    %1944 = vmatpush1.msra.mxu0 0.0
    %1945 = vmatprep.subr.mxu0 0.0
    %1946 = vmatpush1.msra.mxu0 0.0
    %1947 = vmatprep.subr.mxu0 0.0
    %1948 = vmatpush1.msra.mxu0 0.0
    %1949 = vmatprep.subr.mxu0 0.0
    %1950 = vmatpush1.msra.mxu0 0.0
    %1951 = vmatprep.subr.mxu0 0.0
    %1952 = vmatpush1.msra.mxu0 0.0
    %1953 = vmatprep.subr.mxu0 0.0
    %1954 = vmatpush1.msra.mxu0 0.0
    %1955 = vmatprep.mubr.f32.mxu0 0.0
    %1956 = vmatmul.mubr.f32.gmra.mrb[0].mxu0 %v1804
    %v1957 = vpop.f32.mrb[0].mxu0
    %v1958 = vadd.f32 %v1874, %v1957
    %v1959 = vpop.f32.mrb[0].mxu0
    %v1960 = vadd.f32 %v1878, %v1959
    %1961 = vdwg.mxu0
    %1962 = vmatprep.subr.mxu0 %v1808
    %1963 = vmatpush1.msra.mxu0 %v1807
    %1964 = vmatprep.subr.mxu0 %v1812
    %1965 = vmatpush1.msra.mxu0 %v1811
    %1966 = vmatprep.subr.mxu0 %v1816
    %1967 = vmatpush1.msra.mxu0 %v1815
    %1968 = vmatprep.subr.mxu0 %v1820
    %1969 = vmatpush1.msra.mxu0 %v1819
    %1970 = vmatprep.subr.mxu0 %v1824
    %1971 = vmatpush1.msra.mxu0 %v1823
    %1972 = vmatprep.subr.mxu0 %v1828
    %1973 = vmatpush1.msra.mxu0 %v1827
    %1974 = vmatprep.subr.mxu0 %v1832
    %1975 = vmatpush1.msra.mxu0 %v1831
    %1976 = vmatprep.subr.mxu0 %v1836
    %1977 = vmatpush1.msra.mxu0 %v1835
    %1978 = vmatprep.subr.mxu0 %v1840
    %1979 = vmatpush1.msra.mxu0 %v1839
    %1980 = vmatprep.subr.mxu0 %v1844
    %1981 = vmatpush1.msra.mxu0 %v1843
    %1982 = vmatprep.subr.mxu0 %v1848
    %1983 = vmatpush1.msra.mxu0 %v1847
    %1984 = vmatprep.subr.mxu0 %v1852
    %1985 = vmatpush1.msra.mxu0 %v1851
    %1986 = vmatprep.subr.mxu0 %v1856
    %1987 = vmatpush1.msra.mxu0 %v1855
    %1988 = vmatprep.subr.mxu0 %v1860
    %1989 = vmatpush1.msra.mxu0 %v1859
    %1990 = vmatprep.subr.mxu0 %v1864
    %1991 = vmatpush1.msra.mxu0 %v1863
    %1992 = vmatprep.subr.mxu0 %v1868
    %1993 = vmatpush1.msra.mxu0 %v1867
    %1994 = vmatprep.subr.mxu0 0.0
    %1995 = vmatpush1.msra.mxu0 0.0
    %1996 = vmatprep.subr.mxu0 0.0
    %1997 = vmatpush1.msra.mxu0 0.0
    %1998 = vmatprep.subr.mxu0 0.0
    %1999 = vmatpush1.msra.mxu0 0.0
    %2000 = vmatprep.subr.mxu0 0.0
    %2001 = vmatpush1.msra.mxu0 0.0
    %2002 = vmatprep.subr.mxu0 0.0
    %2003 = vmatpush1.msra.mxu0 0.0
    %2004 = vmatprep.subr.mxu0 0.0
    %2005 = vmatpush1.msra.mxu0 0.0
    %2006 = vmatprep.subr.mxu0 0.0
    %2007 = vmatpush1.msra.mxu0 0.0
    %2008 = vmatprep.subr.mxu0 0.0
    %2009 = vmatpush1.msra.mxu0 0.0
    %2010 = vmatprep.subr.mxu0 0.0
    %2011 = vmatpush1.msra.mxu0 0.0
    %2012 = vmatprep.subr.mxu0 0.0
    %2013 = vmatpush1.msra.mxu0 0.0
    %2014 = vmatprep.subr.mxu0 0.0
    %2015 = vmatpush1.msra.mxu0 0.0
    %2016 = vmatprep.subr.mxu0 0.0
    %2017 = vmatpush1.msra.mxu0 0.0
    %2018 = vmatprep.subr.mxu0 0.0
    %2019 = vmatpush1.msra.mxu0 0.0
    %2020 = vmatprep.subr.mxu0 0.0
    %2021 = vmatpush1.msra.mxu0 0.0
    %2022 = vmatprep.subr.mxu0 0.0
    %2023 = vmatpush1.msra.mxu0 0.0
    %2024 = vmatprep.subr.mxu0 0.0
    %2025 = vmatpush1.msra.mxu0 0.0
    %2026 = vmatprep.mubr.f32.mxu0 0.0
    %2027 = vmatmul.mubr.f32.gmra.mrb[0].mxu0 %v1804
    %v2028 = vpop.f32.mrb[0].mxu0
    %v2029 = vadd.f32 %v1882, %v2028
    %v2030 = vpop.f32.mrb[0].mxu0
    %2031 = vdwg.mxu0
    %v2032 = vld [vmem:[%s1] sm:$0x3]
    %2033 = vset.pattern.permute.xlu0 0
    %2034 = vperm.xlu0 %2033, %v2032
    %v2035 = vpop.permute.xlu0 %2034
    %vm2036 = vcmp.eq.s32.totalorder %v108, %v2035
    %v2037 = vsel %vm2036, 1, 0
    %v2038 = vcvt.s32.f32 %v2037
    %v2039 = vld [vmem:[#allocation8] sm:$0xff]
    %v2040 = vld [vmem:[#allocation8 + $0x8] sm:$0xff]
    %v2041 = vld [vmem:[#allocation8 + $0x10] sm:$0xff]
    %v2042 = vld [vmem:[#allocation8 + $0x18] sm:$0xff]
    %v2043 = vld [vmem:[#allocation8 + $0x20] sm:$0xff]
    %v2044 = vld [vmem:[#allocation8 + $0x28] sm:$0xff]
    %v2045 = vld [vmem:[#allocation8 + $0x30] sm:$0xff]
    %v2046 = vld [vmem:[#allocation8 + $0x38] sm:$0xff]
    %v2047 = vld [vmem:[#allocation8 + $0x40] sm:$0xff]
    %v2048 = vld [vmem:[#allocation8 + $0x48] sm:$0xff]
    %v2049 = vld [vmem:[#allocation8 + $0x50] sm:$0xff]
    %v2050 = vld [vmem:[#allocation8 + $0x58] sm:$0xff]
    %v2051 = vld [vmem:[#allocation8 + $0x60] sm:$0xff]
    %v2052 = vld [vmem:[#allocation8 + $0x68] sm:$0xff]
    %v2053 = vld [vmem:[#allocation8 + $0x70] sm:$0xff]
    %v2054 = vld [vmem:[#allocation8 + $0x78] sm:$0xff]
    %v2055 = vld [vmem:[#allocation8 + $0x80] sm:$0xff]
    %v2056 = vld [vmem:[#allocation8 + $0x88] sm:$0xff]
    %v2057 = vld [vmem:[#allocation8 + $0x90] sm:$0xff]
    %v2058 = vld [vmem:[#allocation8 + $0x98] sm:$0xff]
    %v2059 = vld [vmem:[#allocation8 + $0xa0] sm:$0xff]
    %v2060 = vld [vmem:[#allocation8 + $0xa8] sm:$0xff]
    %v2061 = vld [vmem:[#allocation8 + $0xb0] sm:$0xff]
    %v2062 = vld [vmem:[#allocation8 + $0xb8] sm:$0xff]
    %v2063 = vld [vmem:[#allocation8 + $0xc0] sm:$0xff]
    %v2064 = vld [vmem:[#allocation8 + $0xc8] sm:$0xff]
    %v2065 = vld [vmem:[#allocation8 + $0xd0] sm:$0xff]
    %v2066 = vld [vmem:[#allocation8 + $0xd8] sm:$0xff]
    %v2067 = vld [vmem:[#allocation8 + $0xe0] sm:$0xff]
    %v2068 = vld [vmem:[#allocation8 + $0xe8] sm:$0xff]
    %v2069 = vld [vmem:[#allocation8 + $0xf0] sm:$0xff]
    %v2070 = vld [vmem:[#allocation8 + $0xf8] sm:$0xff]
    %v2071 = vld [vmem:[#allocation8 + $0x100] sm:$0xff]
    %v2072 = vld [vmem:[#allocation8 + $0x108] sm:$0xff]
    %v2073 = vld [vmem:[#allocation8 + $0x110] sm:$0xff]
    %v2074 = vld [vmem:[#allocation8 + $0x118] sm:$0xff]
    %v2075 = vld [vmem:[#allocation8 + $0x120] sm:$0xff]
    %v2076 = vld [vmem:[#allocation8 + $0x128] sm:$0xff]
    %v2077 = vld [vmem:[#allocation8 + $0x130] sm:$0xff]
    %v2078 = vld [vmem:[#allocation8 + $0x138] sm:$0xff]
    %v2079 = vld [vmem:[#allocation8 + $0x140] sm:$0xff]
    %v2080 = vld [vmem:[#allocation8 + $0x148] sm:$0xff]
    %v2081 = vld [vmem:[#allocation8 + $0x150] sm:$0xff]
    %v2082 = vld [vmem:[#allocation8 + $0x158] sm:$0xff]
    %v2083 = vld [vmem:[#allocation8 + $0x160] sm:$0xff]
    %v2084 = vld [vmem:[#allocation8 + $0x168] sm:$0xff]
    %v2085 = vld [vmem:[#allocation8 + $0x170] sm:$0xff]
    %v2086 = vld [vmem:[#allocation8 + $0x178] sm:$0xff]
    %v2087 = vld [vmem:[%s8] sm:$0x7]
    %v2089 = vlaneseq
    %v2090 = vshrl.u32 %v2089, 7
    %v2091 = vsub.s32 0, %v2090
    %v2092 = vrot.slane %v2087, %v2091
    %v2093 = vlaneseq
    %v2094 = vshrl.u32 %v2093, 7
    %v2095 = vsub.s32 1, %v2094
    %v2096 = vrot.slane %v2087, %v2095
    %v2097 = vlaneseq
    %v2098 = vshrl.u32 %v2097, 7
    %v2099 = vsub.s32 2, %v2098
    %v2100 = vrot.slane %v2087, %v2099
    %2104 = vmatprep.subr.mxu0 %v2040
    %2105 = vmatpush1.msra.mxu0 %v2039
    %2106 = vmatprep.subr.mxu0 %v2043
    %2107 = vmatpush1.msra.mxu0 %v2042
    %2108 = vmatprep.subr.mxu0 %v2046
    %2109 = vmatpush1.msra.mxu0 %v2045
    %2110 = vmatprep.subr.mxu0 %v2049
    %2111 = vmatpush1.msra.mxu0 %v2048
    %2112 = vmatprep.subr.mxu0 %v2052
    %2113 = vmatpush1.msra.mxu0 %v2051
    %2114 = vmatprep.subr.mxu0 %v2055
    %2115 = vmatpush1.msra.mxu0 %v2054
    %2116 = vmatprep.subr.mxu0 %v2058
    %2117 = vmatpush1.msra.mxu0 %v2057
    %2118 = vmatprep.subr.mxu0 %v2061
    %2119 = vmatpush1.msra.mxu0 %v2060
    %2120 = vmatprep.subr.mxu0 %v2064
    %2121 = vmatpush1.msra.mxu0 %v2063
    %2122 = vmatprep.subr.mxu0 %v2067
    %2123 = vmatpush1.msra.mxu0 %v2066
    %2124 = vmatprep.subr.mxu0 %v2070
    %2125 = vmatpush1.msra.mxu0 %v2069
    %2126 = vmatprep.subr.mxu0 %v2073
    %2127 = vmatpush1.msra.mxu0 %v2072
    %2128 = vmatprep.subr.mxu0 %v2076
    %2129 = vmatpush1.msra.mxu0 %v2075
    %2130 = vmatprep.subr.mxu0 %v2079
    %2131 = vmatpush1.msra.mxu0 %v2078
    %2132 = vmatprep.subr.mxu0 %v2082
    %2133 = vmatpush1.msra.mxu0 %v2081
    %2134 = vmatprep.subr.mxu0 %v2085
    %2135 = vmatpush1.msra.mxu0 %v2084
    %2136 = vmatprep.subr.mxu0 0.0
    %2137 = vmatpush1.msra.mxu0 0.0
    %2138 = vmatprep.subr.mxu0 0.0
    %2139 = vmatpush1.msra.mxu0 0.0
    %2140 = vmatprep.subr.mxu0 0.0
    %2141 = vmatpush1.msra.mxu0 0.0
    %2142 = vmatprep.subr.mxu0 0.0
    %2143 = vmatpush1.msra.mxu0 0.0
    %2144 = vmatprep.subr.mxu0 0.0
    %2145 = vmatpush1.msra.mxu0 0.0
    %2146 = vmatprep.subr.mxu0 0.0
    %2147 = vmatpush1.msra.mxu0 0.0
    %2148 = vmatprep.subr.mxu0 0.0
    %2149 = vmatpush1.msra.mxu0 0.0
    %2150 = vmatprep.subr.mxu0 0.0
    %2151 = vmatpush1.msra.mxu0 0.0
    %2152 = vmatprep.subr.mxu0 0.0
    %2153 = vmatpush1.msra.mxu0 0.0
    %2154 = vmatprep.subr.mxu0 0.0
    %2155 = vmatpush1.msra.mxu0 0.0
    %2156 = vmatprep.subr.mxu0 0.0
    %2157 = vmatpush1.msra.mxu0 0.0
    %2158 = vmatprep.subr.mxu0 0.0
    %2159 = vmatpush1.msra.mxu0 0.0
    %2160 = vmatprep.subr.mxu0 0.0
    %2161 = vmatpush1.msra.mxu0 0.0
    %2162 = vmatprep.subr.mxu0 0.0
    %2163 = vmatpush1.msra.mxu0 0.0
    %2164 = vmatprep.subr.mxu0 0.0
    %2165 = vmatpush1.msra.mxu0 0.0
    %2166 = vmatprep.subr.mxu0 0.0
    %2167 = vmatpush1.msra.mxu0 0.0
    %2168 = vmatprep.mubr.f32.mxu0 0.0
    %2169 = vmatmul.mubr.f32.gmra.mrb[0].mxu0 %v2038
    %v2170 = vpop.f32.mrb[0].mxu0
    %v2171 = vadd.f32 %v2092, %v2170
    %v2172 = vpop.f32.mrb[0].mxu0
    %v2173 = vadd.f32 %v2096, %v2172
    %2174 = vdwg.mxu0
    %2175 = vmatprep.subr.mxu0 0.0
    %2176 = vmatpush1.msra.mxu0 %v2041
    %2177 = vmatprep.subr.mxu0 0.0
    %2178 = vmatpush1.msra.mxu0 %v2044
    %2179 = vmatprep.subr.mxu0 0.0
    %2180 = vmatpush1.msra.mxu0 %v2047
    %2181 = vmatprep.subr.mxu0 0.0
    %2182 = vmatpush1.msra.mxu0 %v2050
    %2183 = vmatprep.subr.mxu0 0.0
    %2184 = vmatpush1.msra.mxu0 %v2053
    %2185 = vmatprep.subr.mxu0 0.0
    %2186 = vmatpush1.msra.mxu0 %v2056
    %2187 = vmatprep.subr.mxu0 0.0
    %2188 = vmatpush1.msra.mxu0 %v2059
    %2189 = vmatprep.subr.mxu0 0.0
    %2190 = vmatpush1.msra.mxu0 %v2062
    %2191 = vmatprep.subr.mxu0 0.0
    %2192 = vmatpush1.msra.mxu0 %v2065
    %2193 = vmatprep.subr.mxu0 0.0
    %2194 = vmatpush1.msra.mxu0 %v2068
    %2195 = vmatprep.subr.mxu0 0.0
    %2196 = vmatpush1.msra.mxu0 %v2071
    %2197 = vmatprep.subr.mxu0 0.0
    %2198 = vmatpush1.msra.mxu0 %v2074
    %2199 = vmatprep.subr.mxu0 0.0
    %2200 = vmatpush1.msra.mxu0 %v2077
    %2201 = vmatprep.subr.mxu0 0.0
    %2202 = vmatpush1.msra.mxu0 %v2080
    %2203 = vmatprep.subr.mxu0 0.0
    %2204 = vmatpush1.msra.mxu0 %v2083
    %2205 = vmatprep.subr.mxu0 0.0
    %2206 = vmatpush1.msra.mxu0 %v2086
    %2207 = vmatprep.subr.mxu0 0.0
    %2208 = vmatpush1.msra.mxu0 0.0
    %2209 = vmatprep.subr.mxu0 0.0
    %2210 = vmatpush1.msra.mxu0 0.0
    %2211 = vmatprep.subr.mxu0 0.0
    %2212 = vmatpush1.msra.mxu0 0.0
    %2213 = vmatprep.subr.mxu0 0.0
    %2214 = vmatpush1.msra.mxu0 0.0
    %2215 = vmatprep.subr.mxu0 0.0
    %2216 = vmatpush1.msra.mxu0 0.0
    %2217 = vmatprep.subr.mxu0 0.0
    %2218 = vmatpush1.msra.mxu0 0.0
    %2219 = vmatprep.subr.mxu0 0.0
    %2220 = vmatpush1.msra.mxu0 0.0
    %2221 = vmatprep.subr.mxu0 0.0
    %2222 = vmatpush1.msra.mxu0 0.0
    %2223 = vmatprep.subr.mxu0 0.0
    %2224 = vmatpush1.msra.mxu0 0.0
    %2225 = vmatprep.subr.mxu0 0.0
    %2226 = vmatpush1.msra.mxu0 0.0
    %2227 = vmatprep.subr.mxu0 0.0
    %2228 = vmatpush1.msra.mxu0 0.0
    %2229 = vmatprep.subr.mxu0 0.0
    %2230 = vmatpush1.msra.mxu0 0.0
    %2231 = vmatprep.subr.mxu0 0.0
    %2232 = vmatpush1.msra.mxu0 0.0
    %2233 = vmatprep.subr.mxu0 0.0
    %2234 = vmatpush1.msra.mxu0 0.0
    %2235 = vmatprep.subr.mxu0 0.0
    %2236 = vmatpush1.msra.mxu0 0.0
    %2237 = vmatprep.subr.mxu0 0.0
    %2238 = vmatpush1.msra.mxu0 0.0
    %2239 = vmatprep.mubr.f32.mxu0 0.0
    %2240 = vmatmul.mubr.f32.gmra.mrb[0].mxu0 %v2038
    %v2241 = vpop.f32.mrb[0].mxu0
    %v2242 = vadd.f32 %v2100, %v2241
    %v2243 = vpop.f32.mrb[0].mxu0
    %2244 = vdwg.mxu0
    %v2245 = vadd.f32 %v2171, %v1958
    %v2246 = vxor.u32 %v2245, 2147483648
    %v2247 = vmul.f32 %v2246, 1.442695
    %v2248 = vpow.pop %v2247
    %v2249 = vadd.f32 %v2248, 1.0
    %v2250 = vrcp.pop %v2249
    %v2251 = vmul.f32 1.0, %v2250
    %v2252 = vadd.f32 %v2173, %v1960
    %v2253 = vxor.u32 %v2252, 2147483648
    %v2254 = vmul.f32 %v2253, 1.442695
    %v2255 = vpow.pop %v2254
    %v2256 = vadd.f32 %v2255, 1.0
    %v2257 = vrcp.pop %v2256
    %v2258 = vmul.f32 1.0, %v2257
    %v2259 = vmul.f32 %v2251, %v2029
    %v2260 = vadd.f32 %v2242, %v2259
    %v2261 = vtanh.pop %v2260
    %v2262 = vsub.f32 1.0, %v2258
    %v2263 = vmul.f32 %v2262, %v2261
    %v2264 = vmul.f32 %v2258, %v1804
    %v2265 = vadd.f32 %v2263, %v2264
    %2266 = vmatprep.subr.mxu0 %v1806
    %2267 = vmatpush1.msra.mxu0 %v1805
    %2268 = vmatprep.subr.mxu0 %v1810
    %2269 = vmatpush1.msra.mxu0 %v1809
    %2270 = vmatprep.subr.mxu0 %v1814
    %2271 = vmatpush1.msra.mxu0 %v1813
    %2272 = vmatprep.subr.mxu0 %v1818
    %2273 = vmatpush1.msra.mxu0 %v1817
    %2274 = vmatprep.subr.mxu0 %v1822
    %2275 = vmatpush1.msra.mxu0 %v1821
    %2276 = vmatprep.subr.mxu0 %v1826
    %2277 = vmatpush1.msra.mxu0 %v1825
    %2278 = vmatprep.subr.mxu0 %v1830
    %2279 = vmatpush1.msra.mxu0 %v1829
    %2280 = vmatprep.subr.mxu0 %v1834
    %2281 = vmatpush1.msra.mxu0 %v1833
    %2282 = vmatprep.subr.mxu0 %v1838
    %2283 = vmatpush1.msra.mxu0 %v1837
    %2284 = vmatprep.subr.mxu0 %v1842
    %2285 = vmatpush1.msra.mxu0 %v1841
    %2286 = vmatprep.subr.mxu0 %v1846
    %2287 = vmatpush1.msra.mxu0 %v1845
    %2288 = vmatprep.subr.mxu0 %v1850
    %2289 = vmatpush1.msra.mxu0 %v1849
    %2290 = vmatprep.subr.mxu0 %v1854
    %2291 = vmatpush1.msra.mxu0 %v1853
    %2292 = vmatprep.subr.mxu0 %v1858
    %2293 = vmatpush1.msra.mxu0 %v1857
    %2294 = vmatprep.subr.mxu0 %v1862
    %2295 = vmatpush1.msra.mxu0 %v1861
    %2296 = vmatprep.subr.mxu0 %v1866
    %2297 = vmatpush1.msra.mxu0 %v1865
    %2298 = vmatprep.subr.mxu0 0.0
    %2299 = vmatpush1.msra.mxu0 0.0
    %2300 = vmatprep.subr.mxu0 0.0
    %2301 = vmatpush1.msra.mxu0 0.0
    %2302 = vmatprep.subr.mxu0 0.0
    %2303 = vmatpush1.msra.mxu0 0.0
    %2304 = vmatprep.subr.mxu0 0.0
    %2305 = vmatpush1.msra.mxu0 0.0
    %2306 = vmatprep.subr.mxu0 0.0
    %2307 = vmatpush1.msra.mxu0 0.0
    %2308 = vmatprep.subr.mxu0 0.0
    %2309 = vmatpush1.msra.mxu0 0.0
    %2310 = vmatprep.subr.mxu0 0.0
    %2311 = vmatpush1.msra.mxu0 0.0
    %2312 = vmatprep.subr.mxu0 0.0
    %2313 = vmatpush1.msra.mxu0 0.0
    %2314 = vmatprep.subr.mxu0 0.0
    %2315 = vmatpush1.msra.mxu0 0.0
    %2316 = vmatprep.subr.mxu0 0.0
    %2317 = vmatpush1.msra.mxu0 0.0
    %2318 = vmatprep.subr.mxu0 0.0
    %2319 = vmatpush1.msra.mxu0 0.0
    %2320 = vmatprep.subr.mxu0 0.0
    %2321 = vmatpush1.msra.mxu0 0.0
    %2322 = vmatprep.subr.mxu0 0.0
    %2323 = vmatpush1.msra.mxu0 0.0
    %2324 = vmatprep.subr.mxu0 0.0
    %2325 = vmatpush1.msra.mxu0 0.0
    %2326 = vmatprep.subr.mxu0 0.0
    %2327 = vmatpush1.msra.mxu0 0.0
    %2328 = vmatprep.subr.mxu0 0.0
    %2329 = vmatpush1.msra.mxu0 0.0
    %2330 = vmatprep.mubr.f32.mxu0 0.0
    %2331 = vmatmul.mubr.f32.gmra.mrb[0].mxu0 %v2265
    %v2332 = vpop.f32.mrb[0].mxu0
    %v2333 = vadd.f32 %v1874, %v2332
    %v2334 = vpop.f32.mrb[0].mxu0
    %v2335 = vadd.f32 %v1878, %v2334
    %2336 = vdwg.mxu0
    %2337 = vmatprep.subr.mxu0 %v1808
    %2338 = vmatpush1.msra.mxu0 %v1807
    %2339 = vmatprep.subr.mxu0 %v1812
    %2340 = vmatpush1.msra.mxu0 %v1811
    %2341 = vmatprep.subr.mxu0 %v1816
    %2342 = vmatpush1.msra.mxu0 %v1815
    %2343 = vmatprep.subr.mxu0 %v1820
    %2344 = vmatpush1.msra.mxu0 %v1819
    %2345 = vmatprep.subr.mxu0 %v1824
    %2346 = vmatpush1.msra.mxu0 %v1823
    %2347 = vmatprep.subr.mxu0 %v1828
    %2348 = vmatpush1.msra.mxu0 %v1827
    %2349 = vmatprep.subr.mxu0 %v1832
    %2350 = vmatpush1.msra.mxu0 %v1831
    %2351 = vmatprep.subr.mxu0 %v1836
    %2352 = vmatpush1.msra.mxu0 %v1835
    %2353 = vmatprep.subr.mxu0 %v1840
    %2354 = vmatpush1.msra.mxu0 %v1839
    %2355 = vmatprep.subr.mxu0 %v1844
    %2356 = vmatpush1.msra.mxu0 %v1843
    %2357 = vmatprep.subr.mxu0 %v1848
    %2358 = vmatpush1.msra.mxu0 %v1847
    %2359 = vmatprep.subr.mxu0 %v1852
    %2360 = vmatpush1.msra.mxu0 %v1851
    %2361 = vmatprep.subr.mxu0 %v1856
    %2362 = vmatpush1.msra.mxu0 %v1855
    %2363 = vmatprep.subr.mxu0 %v1860
    %2364 = vmatpush1.msra.mxu0 %v1859
    %2365 = vmatprep.subr.mxu0 %v1864
    %2366 = vmatpush1.msra.mxu0 %v1863
    %2367 = vmatprep.subr.mxu0 %v1868
    %2368 = vmatpush1.msra.mxu0 %v1867
    %2369 = vmatprep.subr.mxu0 0.0
    %2370 = vmatpush1.msra.mxu0 0.0
    %2371 = vmatprep.subr.mxu0 0.0
    %2372 = vmatpush1.msra.mxu0 0.0
    %2373 = vmatprep.subr.mxu0 0.0
    %2374 = vmatpush1.msra.mxu0 0.0
    %2375 = vmatprep.subr.mxu0 0.0
    %2376 = vmatpush1.msra.mxu0 0.0
    %2377 = vmatprep.subr.mxu0 0.0
    %2378 = vmatpush1.msra.mxu0 0.0
    %2379 = vmatprep.subr.mxu0 0.0
    %2380 = vmatpush1.msra.mxu0 0.0
    %2381 = vmatprep.subr.mxu0 0.0
    %2382 = vmatpush1.msra.mxu0 0.0
    %2383 = vmatprep.subr.mxu0 0.0
    %2384 = vmatpush1.msra.mxu0 0.0
    %2385 = vmatprep.subr.mxu0 0.0
    %2386 = vmatpush1.msra.mxu0 0.0
    %2387 = vmatprep.subr.mxu0 0.0
    %2388 = vmatpush1.msra.mxu0 0.0
    %2389 = vmatprep.subr.mxu0 0.0
    %2390 = vmatpush1.msra.mxu0 0.0
    %2391 = vmatprep.subr.mxu0 0.0
    %2392 = vmatpush1.msra.mxu0 0.0
    %2393 = vmatprep.subr.mxu0 0.0
    %2394 = vmatpush1.msra.mxu0 0.0
    %2395 = vmatprep.subr.mxu0 0.0
    %2396 = vmatpush1.msra.mxu0 0.0
    %2397 = vmatprep.subr.mxu0 0.0
    %2398 = vmatpush1.msra.mxu0 0.0
    %2399 = vmatprep.subr.mxu0 0.0
    %2400 = vmatpush1.msra.mxu0 0.0
    %2401 = vmatprep.mubr.f32.mxu0 0.0
    %2402 = vmatmul.mubr.f32.gmra.mrb[0].mxu0 %v2265
    %v2403 = vpop.f32.mrb[0].mxu0
    %v2404 = vadd.f32 %v1882, %v2403
    %v2405 = vpop.f32.mrb[0].mxu0
    %v2406 = vadd.f32 %v1886, %v2405
    %2407 = vdwg.mxu0
    %vm2408 = vcmask 1041408
    %v2409 = vsel %vm2408, %v2406, -inf
    %2410 = vmax.index.xlane.f32.xlu0 %v2409
    %v2411 = vpop.xlane.xlu0 %2410
    %vm2412 = vcmp.eq.s32.totalorder %v108, %v2411
    %v2413 = vsel %vm2412, 1, 0
    %v2414 = vcvt.s32.f32 %v2413
    %2415 = vmatprep.subr.mxu0 %v2040
    %2416 = vmatpush1.msra.mxu0 %v2039
    %2417 = vmatprep.subr.mxu0 %v2043
    %2418 = vmatpush1.msra.mxu0 %v2042
    %2419 = vmatprep.subr.mxu0 %v2046
    %2420 = vmatpush1.msra.mxu0 %v2045
    %2421 = vmatprep.subr.mxu0 %v2049
    %2422 = vmatpush1.msra.mxu0 %v2048
    %2423 = vmatprep.subr.mxu0 %v2052
    %2424 = vmatpush1.msra.mxu0 %v2051
    %2425 = vmatprep.subr.mxu0 %v2055
    %2426 = vmatpush1.msra.mxu0 %v2054
    %2427 = vmatprep.subr.mxu0 %v2058
    %2428 = vmatpush1.msra.mxu0 %v2057
    %2429 = vmatprep.subr.mxu0 %v2061
    %2430 = vmatpush1.msra.mxu0 %v2060
    %2431 = vmatprep.subr.mxu0 %v2064
    %2432 = vmatpush1.msra.mxu0 %v2063
    %2433 = vmatprep.subr.mxu0 %v2067
    %2434 = vmatpush1.msra.mxu0 %v2066
    %2435 = vmatprep.subr.mxu0 %v2070
    %2436 = vmatpush1.msra.mxu0 %v2069
    %2437 = vmatprep.subr.mxu0 %v2073
    %2438 = vmatpush1.msra.mxu0 %v2072
    %2439 = vmatprep.subr.mxu0 %v2076
    %2440 = vmatpush1.msra.mxu0 %v2075
    %2441 = vmatprep.subr.mxu0 %v2079
    %2442 = vmatpush1.msra.mxu0 %v2078
    %2443 = vmatprep.subr.mxu0 %v2082
    %2444 = vmatpush1.msra.mxu0 %v2081
    %2445 = vmatprep.subr.mxu0 %v2085
    %2446 = vmatpush1.msra.mxu0 %v2084
    %2447 = vmatprep.subr.mxu0 0.0
    %2448 = vmatpush1.msra.mxu0 0.0
    %2449 = vmatprep.subr.mxu0 0.0
    %2450 = vmatpush1.msra.mxu0 0.0
    %2451 = vmatprep.subr.mxu0 0.0
    %2452 = vmatpush1.msra.mxu0 0.0
    %2453 = vmatprep.subr.mxu0 0.0
    %2454 = vmatpush1.msra.mxu0 0.0
    %2455 = vmatprep.subr.mxu0 0.0
    %2456 = vmatpush1.msra.mxu0 0.0
    %2457 = vmatprep.subr.mxu0 0.0
    %2458 = vmatpush1.msra.mxu0 0.0
    %2459 = vmatprep.subr.mxu0 0.0
    %2460 = vmatpush1.msra.mxu0 0.0
    %2461 = vmatprep.subr.mxu0 0.0
    %2462 = vmatpush1.msra.mxu0 0.0
    %2463 = vmatprep.subr.mxu0 0.0
    %2464 = vmatpush1.msra.mxu0 0.0
    %2465 = vmatprep.subr.mxu0 0.0
    %2466 = vmatpush1.msra.mxu0 0.0
    %2467 = vmatprep.subr.mxu0 0.0
    %2468 = vmatpush1.msra.mxu0 0.0
    %2469 = vmatprep.subr.mxu0 0.0
    %2470 = vmatpush1.msra.mxu0 0.0
    %2471 = vmatprep.subr.mxu0 0.0
    %2472 = vmatpush1.msra.mxu0 0.0
    %2473 = vmatprep.subr.mxu0 0.0
    %2474 = vmatpush1.msra.mxu0 0.0
    %2475 = vmatprep.subr.mxu0 0.0
    %2476 = vmatpush1.msra.mxu0 0.0
    %2477 = vmatprep.subr.mxu0 0.0
    %2478 = vmatpush1.msra.mxu0 0.0
    %2479 = vmatprep.mubr.f32.mxu0 0.0
    %2480 = vmatmul.mubr.f32.gmra.mrb[0].mxu0 %v2414
    %v2481 = vpop.f32.mrb[0].mxu0
    %v2482 = vadd.f32 %v2092, %v2481
    %v2483 = vpop.f32.mrb[0].mxu0
    %v2484 = vadd.f32 %v2096, %v2483
    %2485 = vdwg.mxu0
    %2486 = vmatprep.subr.mxu0 0.0
    %2487 = vmatpush1.msra.mxu0 %v2041
    %2488 = vmatprep.subr.mxu0 0.0
    %2489 = vmatpush1.msra.mxu0 %v2044
    %2490 = vmatprep.subr.mxu0 0.0
    %2491 = vmatpush1.msra.mxu0 %v2047
    %2492 = vmatprep.subr.mxu0 0.0
    %2493 = vmatpush1.msra.mxu0 %v2050
    %2494 = vmatprep.subr.mxu0 0.0
    %2495 = vmatpush1.msra.mxu0 %v2053
    %2496 = vmatprep.subr.mxu0 0.0
    %2497 = vmatpush1.msra.mxu0 %v2056
    %2498 = vmatprep.subr.mxu0 0.0
    %2499 = vmatpush1.msra.mxu0 %v2059
    %2500 = vmatprep.subr.mxu0 0.0
    %2501 = vmatpush1.msra.mxu0 %v2062
    %2502 = vmatprep.subr.mxu0 0.0
    %2503 = vmatpush1.msra.mxu0 %v2065
    %2504 = vmatprep.subr.mxu0 0.0
    %2505 = vmatpush1.msra.mxu0 %v2068
    %2506 = vmatprep.subr.mxu0 0.0
    %2507 = vmatpush1.msra.mxu0 %v2071
    %2508 = vmatprep.subr.mxu0 0.0
    %2509 = vmatpush1.msra.mxu0 %v2074
    %2510 = vmatprep.subr.mxu0 0.0
    %2511 = vmatpush1.msra.mxu0 %v2077
    %2512 = vmatprep.subr.mxu0 0.0
    %2513 = vmatpush1.msra.mxu0 %v2080
    %2514 = vmatprep.subr.mxu0 0.0
    %2515 = vmatpush1.msra.mxu0 %v2083
    %2516 = vmatprep.subr.mxu0 0.0
    %2517 = vmatpush1.msra.mxu0 %v2086
    %2518 = vmatprep.subr.mxu0 0.0
    %2519 = vmatpush1.msra.mxu0 0.0
    %2520 = vmatprep.subr.mxu0 0.0
    %2521 = vmatpush1.msra.mxu0 0.0
    %2522 = vmatprep.subr.mxu0 0.0
    %2523 = vmatpush1.msra.mxu0 0.0
    %2524 = vmatprep.subr.mxu0 0.0
    %2525 = vmatpush1.msra.mxu0 0.0
    %2526 = vmatprep.subr.mxu0 0.0
    %2527 = vmatpush1.msra.mxu0 0.0
    %2528 = vmatprep.subr.mxu0 0.0
    %2529 = vmatpush1.msra.mxu0 0.0
    %2530 = vmatprep.subr.mxu0 0.0
    %2531 = vmatpush1.msra.mxu0 0.0
    %2532 = vmatprep.subr.mxu0 0.0
    %2533 = vmatpush1.msra.mxu0 0.0
    %2534 = vmatprep.subr.mxu0 0.0
    %2535 = vmatpush1.msra.mxu0 0.0
    %2536 = vmatprep.subr.mxu0 0.0
    %2537 = vmatpush1.msra.mxu0 0.0
    %2538 = vmatprep.subr.mxu0 0.0
    %2539 = vmatpush1.msra.mxu0 0.0
    %2540 = vmatprep.subr.mxu0 0.0
    %2541 = vmatpush1.msra.mxu0 0.0
    %2542 = vmatprep.subr.mxu0 0.0
    %2543 = vmatpush1.msra.mxu0 0.0
    %2544 = vmatprep.subr.mxu0 0.0
    %2545 = vmatpush1.msra.mxu0 0.0
    %2546 = vmatprep.subr.mxu0 0.0
    %2547 = vmatpush1.msra.mxu0 0.0
    %2548 = vmatprep.subr.mxu0 0.0
    %2549 = vmatpush1.msra.mxu0 0.0
    %2550 = vmatprep.mubr.f32.mxu0 0.0
    %2551 = vmatmul.mubr.f32.gmra.mrb[0].mxu0 %v2414
    %v2552 = vpop.f32.mrb[0].mxu0
    %v2553 = vadd.f32 %v2100, %v2552
    %v2554 = vpop.f32.mrb[0].mxu0
    %2555 = vdwg.mxu0
    %v2556 = vadd.f32 %v2482, %v2333
    %v2557 = vxor.u32 %v2556, 2147483648
    %v2558 = vmul.f32 %v2557, 1.442695
    %v2559 = vpow.pop %v2558
    %v2560 = vadd.f32 %v2559, 1.0
    %v2561 = vrcp.pop %v2560
    %v2562 = vmul.f32 1.0, %v2561
    %v2563 = vadd.f32 %v2484, %v2335
    %v2564 = vxor.u32 %v2563, 2147483648
    %v2565 = vmul.f32 %v2564, 1.442695
    %v2566 = vpow.pop %v2565
    %v2567 = vadd.f32 %v2566, 1.0
    %v2568 = vrcp.pop %v2567
    %v2569 = vmul.f32 1.0, %v2568
    %v2570 = vmul.f32 %v2562, %v2404
    %v2571 = vadd.f32 %v2553, %v2570
    %v2572 = vtanh.pop %v2571
    %v2573 = vsub.f32 1.0, %v2569
    %v2574 = vmul.f32 %v2573, %v2572
    %v2575 = vmul.f32 %v2569, %v2265
    %v2576 = vadd.f32 %v2574, %v2575
    %2577 = vmatprep.subr.mxu0 %v1806
    %2578 = vmatpush1.msra.mxu0 %v1805
    %2579 = vmatprep.subr.mxu0 %v1810
    %2580 = vmatpush1.msra.mxu0 %v1809
    %2581 = vmatprep.subr.mxu0 %v1814
    %2582 = vmatpush1.msra.mxu0 %v1813
    %2583 = vmatprep.subr.mxu0 %v1818
    %2584 = vmatpush1.msra.mxu0 %v1817
    %2585 = vmatprep.subr.mxu0 %v1822
    %2586 = vmatpush1.msra.mxu0 %v1821
    %2587 = vmatprep.subr.mxu0 %v1826
    %2588 = vmatpush1.msra.mxu0 %v1825
    %2589 = vmatprep.subr.mxu0 %v1830
    %2590 = vmatpush1.msra.mxu0 %v1829
    %2591 = vmatprep.subr.mxu0 %v1834
    %2592 = vmatpush1.msra.mxu0 %v1833
    %2593 = vmatprep.subr.mxu0 %v1838
    %2594 = vmatpush1.msra.mxu0 %v1837
    %2595 = vmatprep.subr.mxu0 %v1842
    %2596 = vmatpush1.msra.mxu0 %v1841
    %2597 = vmatprep.subr.mxu0 %v1846
    %2598 = vmatpush1.msra.mxu0 %v1845
    %2599 = vmatprep.subr.mxu0 %v1850
    %2600 = vmatpush1.msra.mxu0 %v1849
    %2601 = vmatprep.subr.mxu0 %v1854
    %2602 = vmatpush1.msra.mxu0 %v1853
    %2603 = vmatprep.subr.mxu0 %v1858
    %2604 = vmatpush1.msra.mxu0 %v1857
    %2605 = vmatprep.subr.mxu0 %v1862
    %2606 = vmatpush1.msra.mxu0 %v1861
    %2607 = vmatprep.subr.mxu0 %v1866
    %2608 = vmatpush1.msra.mxu0 %v1865
    %2609 = vmatprep.subr.mxu0 0.0
    %2610 = vmatpush1.msra.mxu0 0.0
    %2611 = vmatprep.subr.mxu0 0.0
    %2612 = vmatpush1.msra.mxu0 0.0
    %2613 = vmatprep.subr.mxu0 0.0
    %2614 = vmatpush1.msra.mxu0 0.0
    %2615 = vmatprep.subr.mxu0 0.0
    %2616 = vmatpush1.msra.mxu0 0.0
    %2617 = vmatprep.subr.mxu0 0.0
    %2618 = vmatpush1.msra.mxu0 0.0
    %2619 = vmatprep.subr.mxu0 0.0
    %2620 = vmatpush1.msra.mxu0 0.0
    %2621 = vmatprep.subr.mxu0 0.0
    %2622 = vmatpush1.msra.mxu0 0.0
    %2623 = vmatprep.subr.mxu0 0.0
    %2624 = vmatpush1.msra.mxu0 0.0
    %2625 = vmatprep.subr.mxu0 0.0
    %2626 = vmatpush1.msra.mxu0 0.0
    %2627 = vmatprep.subr.mxu0 0.0
    %2628 = vmatpush1.msra.mxu0 0.0
    %2629 = vmatprep.subr.mxu0 0.0
    %2630 = vmatpush1.msra.mxu0 0.0
    %2631 = vmatprep.subr.mxu0 0.0
    %2632 = vmatpush1.msra.mxu0 0.0
    %2633 = vmatprep.subr.mxu0 0.0
    %2634 = vmatpush1.msra.mxu0 0.0
    %2635 = vmatprep.subr.mxu0 0.0
    %2636 = vmatpush1.msra.mxu0 0.0
    %2637 = vmatprep.subr.mxu0 0.0
    %2638 = vmatpush1.msra.mxu0 0.0
    %2639 = vmatprep.subr.mxu0 0.0
    %2640 = vmatpush1.msra.mxu0 0.0
    %2641 = vmatprep.mubr.f32.mxu0 0.0
    %2642 = vmatmul.mubr.f32.gmra.mrb[0].mxu0 %v2576
    %v2643 = vpop.f32.mrb[0].mxu0
    %v2644 = vadd.f32 %v1874, %v2643
    %v2645 = vpop.f32.mrb[0].mxu0
    %v2646 = vadd.f32 %v1878, %v2645
    %2647 = vdwg.mxu0
    %2648 = vmatprep.subr.mxu0 %v1808
    %2649 = vmatpush1.msra.mxu0 %v1807
    %2650 = vmatprep.subr.mxu0 %v1812
    %2651 = vmatpush1.msra.mxu0 %v1811
    %2652 = vmatprep.subr.mxu0 %v1816
    %2653 = vmatpush1.msra.mxu0 %v1815
    %2654 = vmatprep.subr.mxu0 %v1820
    %2655 = vmatpush1.msra.mxu0 %v1819
    %2656 = vmatprep.subr.mxu0 %v1824
    %2657 = vmatpush1.msra.mxu0 %v1823
    %2658 = vmatprep.subr.mxu0 %v1828
    %2659 = vmatpush1.msra.mxu0 %v1827
    %2660 = vmatprep.subr.mxu0 %v1832
    %2661 = vmatpush1.msra.mxu0 %v1831
    %2662 = vmatprep.subr.mxu0 %v1836
    %2663 = vmatpush1.msra.mxu0 %v1835
    %2664 = vmatprep.subr.mxu0 %v1840
    %2665 = vmatpush1.msra.mxu0 %v1839
    %2666 = vmatprep.subr.mxu0 %v1844
    %2667 = vmatpush1.msra.mxu0 %v1843
    %2668 = vmatprep.subr.mxu0 %v1848
    %2669 = vmatpush1.msra.mxu0 %v1847
    %2670 = vmatprep.subr.mxu0 %v1852
    %2671 = vmatpush1.msra.mxu0 %v1851
    %2672 = vmatprep.subr.mxu0 %v1856
    %2673 = vmatpush1.msra.mxu0 %v1855
    %2674 = vmatprep.subr.mxu0 %v1860
    %2675 = vmatpush1.msra.mxu0 %v1859
    %2676 = vmatprep.subr.mxu0 %v1864
    %2677 = vmatpush1.msra.mxu0 %v1863
    %2678 = vmatprep.subr.mxu0 %v1868
    %2679 = vmatpush1.msra.mxu0 %v1867
    %2680 = vmatprep.subr.mxu0 0.0
    %2681 = vmatpush1.msra.mxu0 0.0
    %2682 = vmatprep.subr.mxu0 0.0
    %2683 = vmatpush1.msra.mxu0 0.0
    %2684 = vmatprep.subr.mxu0 0.0
    %2685 = vmatpush1.msra.mxu0 0.0
    %2686 = vmatprep.subr.mxu0 0.0
    %2687 = vmatpush1.msra.mxu0 0.0
    %2688 = vmatprep.subr.mxu0 0.0
    %2689 = vmatpush1.msra.mxu0 0.0
    %2690 = vmatprep.subr.mxu0 0.0
    %2691 = vmatpush1.msra.mxu0 0.0
    %2692 = vmatprep.subr.mxu0 0.0
    %2693 = vmatpush1.msra.mxu0 0.0
    %2694 = vmatprep.subr.mxu0 0.0
    %2695 = vmatpush1.msra.mxu0 0.0
    %2696 = vmatprep.subr.mxu0 0.0
    %2697 = vmatpush1.msra.mxu0 0.0
    %2698 = vmatprep.subr.mxu0 0.0
    %2699 = vmatpush1.msra.mxu0 0.0
    %2700 = vmatprep.subr.mxu0 0.0
    %2701 = vmatpush1.msra.mxu0 0.0
    %2702 = vmatprep.subr.mxu0 0.0
    %2703 = vmatpush1.msra.mxu0 0.0
    %2704 = vmatprep.subr.mxu0 0.0
    %2705 = vmatpush1.msra.mxu0 0.0
    %2706 = vmatprep.subr.mxu0 0.0
    %2707 = vmatpush1.msra.mxu0 0.0
    %2708 = vmatprep.subr.mxu0 0.0
    %2709 = vmatpush1.msra.mxu0 0.0
    %2710 = vmatprep.subr.mxu0 0.0
    %2711 = vmatpush1.msra.mxu0 0.0
    %2712 = vmatprep.mubr.f32.mxu0 0.0
    %2713 = vmatmul.mubr.f32.gmra.mrb[0].mxu0 %v2576
    %v2714 = vpop.f32.mrb[0].mxu0
    %v2715 = vadd.f32 %v1882, %v2714
    %v2716 = vpop.f32.mrb[0].mxu0
    %v2717 = vadd.f32 %v1886, %v2716
    %2718 = vdwg.mxu0
    %v2719 = vsel %vm2408, %v2717, -inf
    %2720 = vmax.index.xlane.f32.xlu0 %v2719
    %v2721 = vpop.xlane.xlu0 %2720
    %vm2722 = vcmp.eq.s32.totalorder %v108, %v2721
    %v2723 = vsel %vm2722, 1, 0
    %v2724 = vcvt.s32.f32 %v2723
    %2725 = vmatprep.subr.mxu0 %v2040
    %2726 = vmatpush1.msra.mxu0 %v2039
    %2727 = vmatprep.subr.mxu0 %v2043
    %2728 = vmatpush1.msra.mxu0 %v2042
    %2729 = vmatprep.subr.mxu0 %v2046
    %2730 = vmatpush1.msra.mxu0 %v2045
    %2731 = vmatprep.subr.mxu0 %v2049
    %2732 = vmatpush1.msra.mxu0 %v2048
    %2733 = vmatprep.subr.mxu0 %v2052
    %2734 = vmatpush1.msra.mxu0 %v2051
    %2735 = vmatprep.subr.mxu0 %v2055
    %2736 = vmatpush1.msra.mxu0 %v2054
    %2737 = vmatprep.subr.mxu0 %v2058
    %2738 = vmatpush1.msra.mxu0 %v2057
    %2739 = vmatprep.subr.mxu0 %v2061
    %2740 = vmatpush1.msra.mxu0 %v2060
    %2741 = vmatprep.subr.mxu0 %v2064
    %2742 = vmatpush1.msra.mxu0 %v2063
    %2743 = vmatprep.subr.mxu0 %v2067
    %2744 = vmatpush1.msra.mxu0 %v2066
    %2745 = vmatprep.subr.mxu0 %v2070
    %2746 = vmatpush1.msra.mxu0 %v2069
    %2747 = vmatprep.subr.mxu0 %v2073
    %2748 = vmatpush1.msra.mxu0 %v2072
    %2749 = vmatprep.subr.mxu0 %v2076
    %2750 = vmatpush1.msra.mxu0 %v2075
    %2751 = vmatprep.subr.mxu0 %v2079
    %2752 = vmatpush1.msra.mxu0 %v2078
    %2753 = vmatprep.subr.mxu0 %v2082
    %2754 = vmatpush1.msra.mxu0 %v2081
    %2755 = vmatprep.subr.mxu0 %v2085
    %2756 = vmatpush1.msra.mxu0 %v2084
    %2757 = vmatprep.subr.mxu0 0.0
    %2758 = vmatpush1.msra.mxu0 0.0
    %2759 = vmatprep.subr.mxu0 0.0
    %2760 = vmatpush1.msra.mxu0 0.0
    %2761 = vmatprep.subr.mxu0 0.0
    %2762 = vmatpush1.msra.mxu0 0.0
    %2763 = vmatprep.subr.mxu0 0.0
    %2764 = vmatpush1.msra.mxu0 0.0
    %2765 = vmatprep.subr.mxu0 0.0
    %2766 = vmatpush1.msra.mxu0 0.0
    %2767 = vmatprep.subr.mxu0 0.0
    %2768 = vmatpush1.msra.mxu0 0.0
    %2769 = vmatprep.subr.mxu0 0.0
    %2770 = vmatpush1.msra.mxu0 0.0
    %2771 = vmatprep.subr.mxu0 0.0
    %2772 = vmatpush1.msra.mxu0 0.0
    %2773 = vmatprep.subr.mxu0 0.0
    %2774 = vmatpush1.msra.mxu0 0.0
    %2775 = vmatprep.subr.mxu0 0.0
    %2776 = vmatpush1.msra.mxu0 0.0
    %2777 = vmatprep.subr.mxu0 0.0
    %2778 = vmatpush1.msra.mxu0 0.0
    %2779 = vmatprep.subr.mxu0 0.0
    %2780 = vmatpush1.msra.mxu0 0.0
    %2781 = vmatprep.subr.mxu0 0.0
    %2782 = vmatpush1.msra.mxu0 0.0
    %2783 = vmatprep.subr.mxu0 0.0
    %2784 = vmatpush1.msra.mxu0 0.0
    %2785 = vmatprep.subr.mxu0 0.0
    %2786 = vmatpush1.msra.mxu0 0.0
    %2787 = vmatprep.subr.mxu0 0.0
    %2788 = vmatpush1.msra.mxu0 0.0
    %2789 = vmatprep.mubr.f32.mxu0 0.0
    %2790 = vmatmul.mubr.f32.gmra.mrb[0].mxu0 %v2724
    %v2791 = vpop.f32.mrb[0].mxu0
    %v2792 = vadd.f32 %v2092, %v2791
    %v2793 = vpop.f32.mrb[0].mxu0
    %v2794 = vadd.f32 %v2096, %v2793
    %2795 = vdwg.mxu0
    %2796 = vmatprep.subr.mxu0 0.0
    %2797 = vmatpush1.msra.mxu0 %v2041
    %2798 = vmatprep.subr.mxu0 0.0
    %2799 = vmatpush1.msra.mxu0 %v2044
    %2800 = vmatprep.subr.mxu0 0.0
    %2801 = vmatpush1.msra.mxu0 %v2047
    %2802 = vmatprep.subr.mxu0 0.0
    %2803 = vmatpush1.msra.mxu0 %v2050
    %2804 = vmatprep.subr.mxu0 0.0
    %2805 = vmatpush1.msra.mxu0 %v2053
    %2806 = vmatprep.subr.mxu0 0.0
    %2807 = vmatpush1.msra.mxu0 %v2056
    %2808 = vmatprep.subr.mxu0 0.0
    %2809 = vmatpush1.msra.mxu0 %v2059
    %2810 = vmatprep.subr.mxu0 0.0
    %2811 = vmatpush1.msra.mxu0 %v2062
    %2812 = vmatprep.subr.mxu0 0.0
    %2813 = vmatpush1.msra.mxu0 %v2065
    %2814 = vmatprep.subr.mxu0 0.0
    %2815 = vmatpush1.msra.mxu0 %v2068
    %2816 = vmatprep.subr.mxu0 0.0
    %2817 = vmatpush1.msra.mxu0 %v2071
    %2818 = vmatprep.subr.mxu0 0.0
    %2819 = vmatpush1.msra.mxu0 %v2074
    %2820 = vmatprep.subr.mxu0 0.0
    %2821 = vmatpush1.msra.mxu0 %v2077
    %2822 = vmatprep.subr.mxu0 0.0
    %2823 = vmatpush1.msra.mxu0 %v2080
    %2824 = vmatprep.subr.mxu0 0.0
    %2825 = vmatpush1.msra.mxu0 %v2083
    %2826 = vmatprep.subr.mxu0 0.0
    %2827 = vmatpush1.msra.mxu0 %v2086
    %2828 = vmatprep.subr.mxu0 0.0
    %2829 = vmatpush1.msra.mxu0 0.0
    %2830 = vmatprep.subr.mxu0 0.0
    %2831 = vmatpush1.msra.mxu0 0.0
    %2832 = vmatprep.subr.mxu0 0.0
    %2833 = vmatpush1.msra.mxu0 0.0
    %2834 = vmatprep.subr.mxu0 0.0
    %2835 = vmatpush1.msra.mxu0 0.0
    %2836 = vmatprep.subr.mxu0 0.0
    %2837 = vmatpush1.msra.mxu0 0.0
    %2838 = vmatprep.subr.mxu0 0.0
    %2839 = vmatpush1.msra.mxu0 0.0
    %2840 = vmatprep.subr.mxu0 0.0
    %2841 = vmatpush1.msra.mxu0 0.0
    %2842 = vmatprep.subr.mxu0 0.0
    %2843 = vmatpush1.msra.mxu0 0.0
    %2844 = vmatprep.subr.mxu0 0.0
    %2845 = vmatpush1.msra.mxu0 0.0
    %2846 = vmatprep.subr.mxu0 0.0
    %2847 = vmatpush1.msra.mxu0 0.0
    %2848 = vmatprep.subr.mxu0 0.0
    %2849 = vmatpush1.msra.mxu0 0.0
    %2850 = vmatprep.subr.mxu0 0.0
    %2851 = vmatpush1.msra.mxu0 0.0
    %2852 = vmatprep.subr.mxu0 0.0
    %2853 = vmatpush1.msra.mxu0 0.0
    %2854 = vmatprep.subr.mxu0 0.0
    %2855 = vmatpush1.msra.mxu0 0.0
    %2856 = vmatprep.subr.mxu0 0.0
    %2857 = vmatpush1.msra.mxu0 0.0
    %2858 = vmatprep.subr.mxu0 0.0
    %2859 = vmatpush1.msra.mxu0 0.0
    %2860 = vmatprep.mubr.f32.mxu0 0.0
    %2861 = vmatmul.mubr.f32.gmra.mrb[0].mxu0 %v2724
    %v2862 = vpop.f32.mrb[0].mxu0
    %v2863 = vadd.f32 %v2100, %v2862
    %v2864 = vpop.f32.mrb[0].mxu0
    %2865 = vdwg.mxu0
    %v2866 = vadd.f32 %v2792, %v2644
    %v2867 = vxor.u32 %v2866, 2147483648
    %v2868 = vmul.f32 %v2867, 1.442695
    %v2869 = vpow.pop %v2868
    %v2870 = vadd.f32 %v2869, 1.0
    %v2871 = vrcp.pop %v2870
    %v2872 = vmul.f32 1.0, %v2871
    %v2873 = vadd.f32 %v2794, %v2646
    %v2874 = vxor.u32 %v2873, 2147483648
    %v2875 = vmul.f32 %v2874, 1.442695
    %v2876 = vpow.pop %v2875
    %v2877 = vadd.f32 %v2876, 1.0
    %v2878 = vrcp.pop %v2877
    %v2879 = vmul.f32 1.0, %v2878
    %v2880 = vmul.f32 %v2872, %v2715
    %v2881 = vadd.f32 %v2863, %v2880
    %v2882 = vtanh.pop %v2881
    %v2883 = vsub.f32 1.0, %v2879
    %v2884 = vmul.f32 %v2883, %v2882
    %v2885 = vmul.f32 %v2879, %v2576
    %v2886 = vadd.f32 %v2884, %v2885
    %2887 = vmatprep.subr.mxu0 %v1806
    %2888 = vmatpush1.msra.mxu0 %v1805
    %2889 = vmatprep.subr.mxu0 %v1810
    %2890 = vmatpush1.msra.mxu0 %v1809
    %2891 = vmatprep.subr.mxu0 %v1814
    %2892 = vmatpush1.msra.mxu0 %v1813
    %2893 = vmatprep.subr.mxu0 %v1818
    %2894 = vmatpush1.msra.mxu0 %v1817
    %2895 = vmatprep.subr.mxu0 %v1822
    %2896 = vmatpush1.msra.mxu0 %v1821
    %2897 = vmatprep.subr.mxu0 %v1826
    %2898 = vmatpush1.msra.mxu0 %v1825
    %2899 = vmatprep.subr.mxu0 %v1830
    %2900 = vmatpush1.msra.mxu0 %v1829
    %2901 = vmatprep.subr.mxu0 %v1834
    %2902 = vmatpush1.msra.mxu0 %v1833
    %2903 = vmatprep.subr.mxu0 %v1838
    %2904 = vmatpush1.msra.mxu0 %v1837
    %2905 = vmatprep.subr.mxu0 %v1842
    %2906 = vmatpush1.msra.mxu0 %v1841
    %2907 = vmatprep.subr.mxu0 %v1846
    %2908 = vmatpush1.msra.mxu0 %v1845
    %2909 = vmatprep.subr.mxu0 %v1850
    %2910 = vmatpush1.msra.mxu0 %v1849
    %2911 = vmatprep.subr.mxu0 %v1854
    %2912 = vmatpush1.msra.mxu0 %v1853
    %2913 = vmatprep.subr.mxu0 %v1858
    %2914 = vmatpush1.msra.mxu0 %v1857
    %2915 = vmatprep.subr.mxu0 %v1862
    %2916 = vmatpush1.msra.mxu0 %v1861
    %2917 = vmatprep.subr.mxu0 %v1866
    %2918 = vmatpush1.msra.mxu0 %v1865
    %2919 = vmatprep.subr.mxu0 0.0
    %2920 = vmatpush1.msra.mxu0 0.0
    %2921 = vmatprep.subr.mxu0 0.0
    %2922 = vmatpush1.msra.mxu0 0.0
    %2923 = vmatprep.subr.mxu0 0.0
    %2924 = vmatpush1.msra.mxu0 0.0
    %2925 = vmatprep.subr.mxu0 0.0
    %2926 = vmatpush1.msra.mxu0 0.0
    %2927 = vmatprep.subr.mxu0 0.0
    %2928 = vmatpush1.msra.mxu0 0.0
    %2929 = vmatprep.subr.mxu0 0.0
    %2930 = vmatpush1.msra.mxu0 0.0
    %2931 = vmatprep.subr.mxu0 0.0
    %2932 = vmatpush1.msra.mxu0 0.0
    %2933 = vmatprep.subr.mxu0 0.0
    %2934 = vmatpush1.msra.mxu0 0.0
    %2935 = vmatprep.subr.mxu0 0.0
    %2936 = vmatpush1.msra.mxu0 0.0
    %2937 = vmatprep.subr.mxu0 0.0
    %2938 = vmatpush1.msra.mxu0 0.0
    %2939 = vmatprep.subr.mxu0 0.0
    %2940 = vmatpush1.msra.mxu0 0.0
    %2941 = vmatprep.subr.mxu0 0.0
    %2942 = vmatpush1.msra.mxu0 0.0
    %2943 = vmatprep.subr.mxu0 0.0
    %2944 = vmatpush1.msra.mxu0 0.0
    %2945 = vmatprep.subr.mxu0 0.0
    %2946 = vmatpush1.msra.mxu0 0.0
    %2947 = vmatprep.subr.mxu0 0.0
    %2948 = vmatpush1.msra.mxu0 0.0
    %2949 = vmatprep.subr.mxu0 0.0
    %2950 = vmatpush1.msra.mxu0 0.0
    %2951 = vmatprep.mubr.f32.mxu0 0.0
    %2952 = vmatmul.mubr.f32.gmra.mrb[0].mxu0 %v2886
    %v2953 = vpop.f32.mrb[0].mxu0
    %v2954 = vadd.f32 %v1874, %v2953
    %v2955 = vpop.f32.mrb[0].mxu0
    %v2956 = vadd.f32 %v1878, %v2955
    %2957 = vdwg.mxu0
    %2958 = vmatprep.subr.mxu0 %v1808
    %2959 = vmatpush1.msra.mxu0 %v1807
    %2960 = vmatprep.subr.mxu0 %v1812
    %2961 = vmatpush1.msra.mxu0 %v1811
    %2962 = vmatprep.subr.mxu0 %v1816
    %2963 = vmatpush1.msra.mxu0 %v1815
    %2964 = vmatprep.subr.mxu0 %v1820
    %2965 = vmatpush1.msra.mxu0 %v1819
    %2966 = vmatprep.subr.mxu0 %v1824
    %2967 = vmatpush1.msra.mxu0 %v1823
    %2968 = vmatprep.subr.mxu0 %v1828
    %2969 = vmatpush1.msra.mxu0 %v1827
    %2970 = vmatprep.subr.mxu0 %v1832
    %2971 = vmatpush1.msra.mxu0 %v1831
    %2972 = vmatprep.subr.mxu0 %v1836
    %2973 = vmatpush1.msra.mxu0 %v1835
    %2974 = vmatprep.subr.mxu0 %v1840
    %2975 = vmatpush1.msra.mxu0 %v1839
    %2976 = vmatprep.subr.mxu0 %v1844
    %2977 = vmatpush1.msra.mxu0 %v1843
    %2978 = vmatprep.subr.mxu0 %v1848
    %2979 = vmatpush1.msra.mxu0 %v1847
    %2980 = vmatprep.subr.mxu0 %v1852
    %2981 = vmatpush1.msra.mxu0 %v1851
    %2982 = vmatprep.subr.mxu0 %v1856
    %2983 = vmatpush1.msra.mxu0 %v1855
    %2984 = vmatprep.subr.mxu0 %v1860
    %2985 = vmatpush1.msra.mxu0 %v1859
    %2986 = vmatprep.subr.mxu0 %v1864
    %2987 = vmatpush1.msra.mxu0 %v1863
    %2988 = vmatprep.subr.mxu0 %v1868
    %2989 = vmatpush1.msra.mxu0 %v1867
    %2990 = vmatprep.subr.mxu0 0.0
    %2991 = vmatpush1.msra.mxu0 0.0
    %2992 = vmatprep.subr.mxu0 0.0
    %2993 = vmatpush1.msra.mxu0 0.0
    %2994 = vmatprep.subr.mxu0 0.0
    %2995 = vmatpush1.msra.mxu0 0.0
    %2996 = vmatprep.subr.mxu0 0.0
    %2997 = vmatpush1.msra.mxu0 0.0
    %2998 = vmatprep.subr.mxu0 0.0
    %2999 = vmatpush1.msra.mxu0 0.0
    %3000 = vmatprep.subr.mxu0 0.0
    %3001 = vmatpush1.msra.mxu0 0.0
    %3002 = vmatprep.subr.mxu0 0.0
    %3003 = vmatpush1.msra.mxu0 0.0
    %3004 = vmatprep.subr.mxu0 0.0
    %3005 = vmatpush1.msra.mxu0 0.0
    %3006 = vmatprep.subr.mxu0 0.0
    %3007 = vmatpush1.msra.mxu0 0.0
    %3008 = vmatprep.subr.mxu0 0.0
    %3009 = vmatpush1.msra.mxu0 0.0
    %3010 = vmatprep.subr.mxu0 0.0
    %3011 = vmatpush1.msra.mxu0 0.0
    %3012 = vmatprep.subr.mxu0 0.0
    %3013 = vmatpush1.msra.mxu0 0.0
    %3014 = vmatprep.subr.mxu0 0.0
    %3015 = vmatpush1.msra.mxu0 0.0
    %3016 = vmatprep.subr.mxu0 0.0
    %3017 = vmatpush1.msra.mxu0 0.0
    %3018 = vmatprep.subr.mxu0 0.0
    %3019 = vmatpush1.msra.mxu0 0.0
    %3020 = vmatprep.subr.mxu0 0.0
    %3021 = vmatpush1.msra.mxu0 0.0
    %3022 = vmatprep.mubr.f32.mxu0 0.0
    %3023 = vmatmul.mubr.f32.gmra.mrb[0].mxu0 %v2886
    %v3024 = vpop.f32.mrb[0].mxu0
    %v3025 = vadd.f32 %v1882, %v3024
    %v3026 = vpop.f32.mrb[0].mxu0
    %v3027 = vadd.f32 %v1886, %v3026
    %3028 = vdwg.mxu0
    %v3029 = vsel %vm2408, %v3027, -inf
    %3030 = vmax.index.xlane.f32.xlu0 %v3029
    %v3031 = vpop.xlane.xlu0 %3030
    %vm3032 = vcmp.eq.s32.totalorder %v108, %v3031
    %v3033 = vsel %vm3032, 1, 0
    %v3034 = vcvt.s32.f32 %v3033
    %3035 = vmatprep.subr.mxu0 %v2040
    %3036 = vmatpush1.msra.mxu0 %v2039
    %3037 = vmatprep.subr.mxu0 %v2043
    %3038 = vmatpush1.msra.mxu0 %v2042
    %3039 = vmatprep.subr.mxu0 %v2046
    %3040 = vmatpush1.msra.mxu0 %v2045
    %3041 = vmatprep.subr.mxu0 %v2049
    %3042 = vmatpush1.msra.mxu0 %v2048
    %3043 = vmatprep.subr.mxu0 %v2052
    %3044 = vmatpush1.msra.mxu0 %v2051
    %3045 = vmatprep.subr.mxu0 %v2055
    %3046 = vmatpush1.msra.mxu0 %v2054
    %3047 = vmatprep.subr.mxu0 %v2058
    %3048 = vmatpush1.msra.mxu0 %v2057
    %3049 = vmatprep.subr.mxu0 %v2061
    %3050 = vmatpush1.msra.mxu0 %v2060
    %3051 = vmatprep.subr.mxu0 %v2064
    %3052 = vmatpush1.msra.mxu0 %v2063
    %3053 = vmatprep.subr.mxu0 %v2067
    %3054 = vmatpush1.msra.mxu0 %v2066
    %3055 = vmatprep.subr.mxu0 %v2070
    %3056 = vmatpush1.msra.mxu0 %v2069
    %3057 = vmatprep.subr.mxu0 %v2073
    %3058 = vmatpush1.msra.mxu0 %v2072
    %3059 = vmatprep.subr.mxu0 %v2076
    %3060 = vmatpush1.msra.mxu0 %v2075
    %3061 = vmatprep.subr.mxu0 %v2079
    %3062 = vmatpush1.msra.mxu0 %v2078
    %3063 = vmatprep.subr.mxu0 %v2082
    %3064 = vmatpush1.msra.mxu0 %v2081
    %3065 = vmatprep.subr.mxu0 %v2085
    %3066 = vmatpush1.msra.mxu0 %v2084
    %3067 = vmatprep.subr.mxu0 0.0
    %3068 = vmatpush1.msra.mxu0 0.0
    %3069 = vmatprep.subr.mxu0 0.0
    %3070 = vmatpush1.msra.mxu0 0.0
    %3071 = vmatprep.subr.mxu0 0.0
    %3072 = vmatpush1.msra.mxu0 0.0
    %3073 = vmatprep.subr.mxu0 0.0
    %3074 = vmatpush1.msra.mxu0 0.0
    %3075 = vmatprep.subr.mxu0 0.0
    %3076 = vmatpush1.msra.mxu0 0.0
    %3077 = vmatprep.subr.mxu0 0.0
    %3078 = vmatpush1.msra.mxu0 0.0
    %3079 = vmatprep.subr.mxu0 0.0
    %3080 = vmatpush1.msra.mxu0 0.0
    %3081 = vmatprep.subr.mxu0 0.0
    %3082 = vmatpush1.msra.mxu0 0.0
    %3083 = vmatprep.subr.mxu0 0.0
    %3084 = vmatpush1.msra.mxu0 0.0
    %3085 = vmatprep.subr.mxu0 0.0
    %3086 = vmatpush1.msra.mxu0 0.0
    %3087 = vmatprep.subr.mxu0 0.0
    %3088 = vmatpush1.msra.mxu0 0.0
    %3089 = vmatprep.subr.mxu0 0.0
    %3090 = vmatpush1.msra.mxu0 0.0
    %3091 = vmatprep.subr.mxu0 0.0
    %3092 = vmatpush1.msra.mxu0 0.0
    %3093 = vmatprep.subr.mxu0 0.0
    %3094 = vmatpush1.msra.mxu0 0.0
    %3095 = vmatprep.subr.mxu0 0.0
    %3096 = vmatpush1.msra.mxu0 0.0
    %3097 = vmatprep.subr.mxu0 0.0
    %3098 = vmatpush1.msra.mxu0 0.0
    %3099 = vmatprep.mubr.f32.mxu0 0.0
    %3100 = vmatmul.mubr.f32.gmra.mrb[0].mxu0 %v3034
    %v3101 = vpop.f32.mrb[0].mxu0
    %v3102 = vadd.f32 %v2092, %v3101
    %v3103 = vpop.f32.mrb[0].mxu0
    %v3104 = vadd.f32 %v2096, %v3103
    %3105 = vdwg.mxu0
    %3106 = vmatprep.subr.mxu0 0.0
    %3107 = vmatpush1.msra.mxu0 %v2041
    %3108 = vmatprep.subr.mxu0 0.0
    %3109 = vmatpush1.msra.mxu0 %v2044
    %3110 = vmatprep.subr.mxu0 0.0
    %3111 = vmatpush1.msra.mxu0 %v2047
    %3112 = vmatprep.subr.mxu0 0.0
    %3113 = vmatpush1.msra.mxu0 %v2050
    %3114 = vmatprep.subr.mxu0 0.0
    %3115 = vmatpush1.msra.mxu0 %v2053
    %3116 = vmatprep.subr.mxu0 0.0
    %3117 = vmatpush1.msra.mxu0 %v2056
    %3118 = vmatprep.subr.mxu0 0.0
    %3119 = vmatpush1.msra.mxu0 %v2059
    %3120 = vmatprep.subr.mxu0 0.0
    %3121 = vmatpush1.msra.mxu0 %v2062
    %3122 = vmatprep.subr.mxu0 0.0
    %3123 = vmatpush1.msra.mxu0 %v2065
    %3124 = vmatprep.subr.mxu0 0.0
    %3125 = vmatpush1.msra.mxu0 %v2068
    %3126 = vmatprep.subr.mxu0 0.0
    %3127 = vmatpush1.msra.mxu0 %v2071
    %3128 = vmatprep.subr.mxu0 0.0
    %3129 = vmatpush1.msra.mxu0 %v2074
    %3130 = vmatprep.subr.mxu0 0.0
    %3131 = vmatpush1.msra.mxu0 %v2077
    %3132 = vmatprep.subr.mxu0 0.0
    %3133 = vmatpush1.msra.mxu0 %v2080
    %3134 = vmatprep.subr.mxu0 0.0
    %3135 = vmatpush1.msra.mxu0 %v2083
    %3136 = vmatprep.subr.mxu0 0.0
    %3137 = vmatpush1.msra.mxu0 %v2086
    %3138 = vmatprep.subr.mxu0 0.0
    %3139 = vmatpush1.msra.mxu0 0.0
    %3140 = vmatprep.subr.mxu0 0.0
    %3141 = vmatpush1.msra.mxu0 0.0
    %3142 = vmatprep.subr.mxu0 0.0
    %3143 = vmatpush1.msra.mxu0 0.0
    %3144 = vmatprep.subr.mxu0 0.0
    %3145 = vmatpush1.msra.mxu0 0.0
    %3146 = vmatprep.subr.mxu0 0.0
    %3147 = vmatpush1.msra.mxu0 0.0
    %3148 = vmatprep.subr.mxu0 0.0
    %3149 = vmatpush1.msra.mxu0 0.0
    %3150 = vmatprep.subr.mxu0 0.0
    %3151 = vmatpush1.msra.mxu0 0.0
    %3152 = vmatprep.subr.mxu0 0.0
    %3153 = vmatpush1.msra.mxu0 0.0
    %3154 = vmatprep.subr.mxu0 0.0
    %3155 = vmatpush1.msra.mxu0 0.0
    %3156 = vmatprep.subr.mxu0 0.0
    %3157 = vmatpush1.msra.mxu0 0.0
    %3158 = vmatprep.subr.mxu0 0.0
    %3159 = vmatpush1.msra.mxu0 0.0
    %3160 = vmatprep.subr.mxu0 0.0
    %3161 = vmatpush1.msra.mxu0 0.0
    %3162 = vmatprep.subr.mxu0 0.0
    %3163 = vmatpush1.msra.mxu0 0.0
    %3164 = vmatprep.subr.mxu0 0.0
    %3165 = vmatpush1.msra.mxu0 0.0
    %3166 = vmatprep.subr.mxu0 0.0
    %3167 = vmatpush1.msra.mxu0 0.0
    %3168 = vmatprep.subr.mxu0 0.0
    %3169 = vmatpush1.msra.mxu0 0.0
    %3170 = vmatprep.mubr.f32.mxu0 0.0
    %3171 = vmatmul.mubr.f32.gmra.mrb[0].mxu0 %v3034
    %v3172 = vpop.f32.mrb[0].mxu0
    %v3173 = vadd.f32 %v2100, %v3172
    %v3174 = vpop.f32.mrb[0].mxu0
    %3175 = vdwg.mxu0
    %v3176 = vadd.f32 %v3102, %v2954
    %v3177 = vxor.u32 %v3176, 2147483648
    %v3178 = vmul.f32 %v3177, 1.442695
    %v3179 = vpow.pop %v3178
    %v3180 = vadd.f32 %v3179, 1.0
    %v3181 = vrcp.pop %v3180
    %v3182 = vmul.f32 1.0, %v3181
    %v3183 = vadd.f32 %v3104, %v2956
    %v3184 = vxor.u32 %v3183, 2147483648
    %v3185 = vmul.f32 %v3184, 1.442695
    %v3186 = vpow.pop %v3185
    %v3187 = vadd.f32 %v3186, 1.0
    %v3188 = vrcp.pop %v3187
    %v3189 = vmul.f32 1.0, %v3188
    %v3190 = vmul.f32 %v3182, %v3025
    %v3191 = vadd.f32 %v3173, %v3190
    %v3192 = vtanh.pop %v3191
    %v3193 = vsub.f32 1.0, %v3189
    %v3194 = vmul.f32 %v3193, %v3192
    %v3195 = vmul.f32 %v3189, %v2886
    %v3196 = vadd.f32 %v3194, %v3195
    %3197 = vmatprep.subr.mxu0 %v1806
    %3198 = vmatpush1.msra.mxu0 %v1805
    %3199 = vmatprep.subr.mxu0 %v1810
    %3200 = vmatpush1.msra.mxu0 %v1809
    %3201 = vmatprep.subr.mxu0 %v1814
    %3202 = vmatpush1.msra.mxu0 %v1813
    %3203 = vmatprep.subr.mxu0 %v1818
    %3204 = vmatpush1.msra.mxu0 %v1817
    %3205 = vmatprep.subr.mxu0 %v1822
    %3206 = vmatpush1.msra.mxu0 %v1821
    %3207 = vmatprep.subr.mxu0 %v1826
    %3208 = vmatpush1.msra.mxu0 %v1825
    %3209 = vmatprep.subr.mxu0 %v1830
    %3210 = vmatpush1.msra.mxu0 %v1829
    %3211 = vmatprep.subr.mxu0 %v1834
    %3212 = vmatpush1.msra.mxu0 %v1833
    %3213 = vmatprep.subr.mxu0 %v1838
    %3214 = vmatpush1.msra.mxu0 %v1837
    %3215 = vmatprep.subr.mxu0 %v1842
    %3216 = vmatpush1.msra.mxu0 %v1841
    %3217 = vmatprep.subr.mxu0 %v1846
    %3218 = vmatpush1.msra.mxu0 %v1845
    %3219 = vmatprep.subr.mxu0 %v1850
    %3220 = vmatpush1.msra.mxu0 %v1849
    %3221 = vmatprep.subr.mxu0 %v1854
    %3222 = vmatpush1.msra.mxu0 %v1853
    %3223 = vmatprep.subr.mxu0 %v1858
    %3224 = vmatpush1.msra.mxu0 %v1857
    %3225 = vmatprep.subr.mxu0 %v1862
    %3226 = vmatpush1.msra.mxu0 %v1861
    %3227 = vmatprep.subr.mxu0 %v1866
    %3228 = vmatpush1.msra.mxu0 %v1865
    %3229 = vmatprep.subr.mxu0 0.0
    %3230 = vmatpush1.msra.mxu0 0.0
    %3231 = vmatprep.subr.mxu0 0.0
    %3232 = vmatpush1.msra.mxu0 0.0
    %3233 = vmatprep.subr.mxu0 0.0
    %3234 = vmatpush1.msra.mxu0 0.0
    %3235 = vmatprep.subr.mxu0 0.0
    %3236 = vmatpush1.msra.mxu0 0.0
    %3237 = vmatprep.subr.mxu0 0.0
    %3238 = vmatpush1.msra.mxu0 0.0
    %3239 = vmatprep.subr.mxu0 0.0
    %3240 = vmatpush1.msra.mxu0 0.0
    %3241 = vmatprep.subr.mxu0 0.0
    %3242 = vmatpush1.msra.mxu0 0.0
    %3243 = vmatprep.subr.mxu0 0.0
    %3244 = vmatpush1.msra.mxu0 0.0
    %3245 = vmatprep.subr.mxu0 0.0
    %3246 = vmatpush1.msra.mxu0 0.0
    %3247 = vmatprep.subr.mxu0 0.0
    %3248 = vmatpush1.msra.mxu0 0.0
    %3249 = vmatprep.subr.mxu0 0.0
    %3250 = vmatpush1.msra.mxu0 0.0
    %3251 = vmatprep.subr.mxu0 0.0
    %3252 = vmatpush1.msra.mxu0 0.0
    %3253 = vmatprep.subr.mxu0 0.0
    %3254 = vmatpush1.msra.mxu0 0.0
    %3255 = vmatprep.subr.mxu0 0.0
    %3256 = vmatpush1.msra.mxu0 0.0
    %3257 = vmatprep.subr.mxu0 0.0
    %3258 = vmatpush1.msra.mxu0 0.0
    %3259 = vmatprep.subr.mxu0 0.0
    %3260 = vmatpush1.msra.mxu0 0.0
    %3261 = vmatprep.mubr.f32.mxu0 0.0
    %3262 = vmatmul.mubr.f32.gmra.mrb[0].mxu0 %v3196
    %v3263 = vpop.f32.mrb[0].mxu0
    %v3264 = vadd.f32 %v1874, %v3263
    %v3265 = vpop.f32.mrb[0].mxu0
    %v3266 = vadd.f32 %v1878, %v3265
    %3267 = vdwg.mxu0
    %3268 = vmatprep.subr.mxu0 %v1808
    %3269 = vmatpush1.msra.mxu0 %v1807
    %3270 = vmatprep.subr.mxu0 %v1812
    %3271 = vmatpush1.msra.mxu0 %v1811
    %3272 = vmatprep.subr.mxu0 %v1816
    %3273 = vmatpush1.msra.mxu0 %v1815
    %3274 = vmatprep.subr.mxu0 %v1820
    %3275 = vmatpush1.msra.mxu0 %v1819
    %3276 = vmatprep.subr.mxu0 %v1824
    %3277 = vmatpush1.msra.mxu0 %v1823
    %3278 = vmatprep.subr.mxu0 %v1828
    %3279 = vmatpush1.msra.mxu0 %v1827
    %3280 = vmatprep.subr.mxu0 %v1832
    %3281 = vmatpush1.msra.mxu0 %v1831
    %3282 = vmatprep.subr.mxu0 %v1836
    %3283 = vmatpush1.msra.mxu0 %v1835
    %3284 = vmatprep.subr.mxu0 %v1840
    %3285 = vmatpush1.msra.mxu0 %v1839
    %3286 = vmatprep.subr.mxu0 %v1844
    %3287 = vmatpush1.msra.mxu0 %v1843
    %3288 = vmatprep.subr.mxu0 %v1848
    %3289 = vmatpush1.msra.mxu0 %v1847
    %3290 = vmatprep.subr.mxu0 %v1852
    %3291 = vmatpush1.msra.mxu0 %v1851
    %3292 = vmatprep.subr.mxu0 %v1856
    %3293 = vmatpush1.msra.mxu0 %v1855
    %3294 = vmatprep.subr.mxu0 %v1860
    %3295 = vmatpush1.msra.mxu0 %v1859
    %3296 = vmatprep.subr.mxu0 %v1864
    %3297 = vmatpush1.msra.mxu0 %v1863
    %3298 = vmatprep.subr.mxu0 %v1868
    %3299 = vmatpush1.msra.mxu0 %v1867
    %3300 = vmatprep.subr.mxu0 0.0
    %3301 = vmatpush1.msra.mxu0 0.0
    %3302 = vmatprep.subr.mxu0 0.0
    %3303 = vmatpush1.msra.mxu0 0.0
    %3304 = vmatprep.subr.mxu0 0.0
    %3305 = vmatpush1.msra.mxu0 0.0
    %3306 = vmatprep.subr.mxu0 0.0
    %3307 = vmatpush1.msra.mxu0 0.0
    %3308 = vmatprep.subr.mxu0 0.0
    %3309 = vmatpush1.msra.mxu0 0.0
    %3310 = vmatprep.subr.mxu0 0.0
    %3311 = vmatpush1.msra.mxu0 0.0
    %3312 = vmatprep.subr.mxu0 0.0
    %3313 = vmatpush1.msra.mxu0 0.0
    %3314 = vmatprep.subr.mxu0 0.0
    %3315 = vmatpush1.msra.mxu0 0.0
    %3316 = vmatprep.subr.mxu0 0.0
    %3317 = vmatpush1.msra.mxu0 0.0
    %3318 = vmatprep.subr.mxu0 0.0
    %3319 = vmatpush1.msra.mxu0 0.0
    %3320 = vmatprep.subr.mxu0 0.0
    %3321 = vmatpush1.msra.mxu0 0.0
    %3322 = vmatprep.subr.mxu0 0.0
    %3323 = vmatpush1.msra.mxu0 0.0
    %3324 = vmatprep.subr.mxu0 0.0
    %3325 = vmatpush1.msra.mxu0 0.0
    %3326 = vmatprep.subr.mxu0 0.0
    %3327 = vmatpush1.msra.mxu0 0.0
    %3328 = vmatprep.subr.mxu0 0.0
    %3329 = vmatpush1.msra.mxu0 0.0
    %3330 = vmatprep.subr.mxu0 0.0
    %3331 = vmatpush1.msra.mxu0 0.0
    %3332 = vmatprep.mubr.f32.mxu0 0.0
    %3333 = vmatmul.mubr.f32.gmra.mrb[0].mxu0 %v3196
    %v3334 = vpop.f32.mrb[0].mxu0
    %v3335 = vadd.f32 %v1882, %v3334
    %v3336 = vpop.f32.mrb[0].mxu0
    %v3337 = vadd.f32 %v1886, %v3336
    %3338 = vdwg.mxu0
    %v3339 = vsel %vm2408, %v3337, -inf
    %3340 = vmax.index.xlane.f32.xlu0 %v3339
    %v3341 = vpop.xlane.xlu0 %3340
    %vm3342 = vcmp.eq.s32.totalorder %v108, %v3341
    %v3343 = vsel %vm3342, 1, 0
    %v3344 = vcvt.s32.f32 %v3343
    %3345 = vmatprep.subr.mxu0 %v2040
    %3346 = vmatpush1.msra.mxu0 %v2039
    %3347 = vmatprep.subr.mxu0 %v2043
    %3348 = vmatpush1.msra.mxu0 %v2042
    %3349 = vmatprep.subr.mxu0 %v2046
    %3350 = vmatpush1.msra.mxu0 %v2045
    %3351 = vmatprep.subr.mxu0 %v2049
    %3352 = vmatpush1.msra.mxu0 %v2048
    %3353 = vmatprep.subr.mxu0 %v2052
    %3354 = vmatpush1.msra.mxu0 %v2051
    %3355 = vmatprep.subr.mxu0 %v2055
    %3356 = vmatpush1.msra.mxu0 %v2054
    %3357 = vmatprep.subr.mxu0 %v2058
    %3358 = vmatpush1.msra.mxu0 %v2057
    %3359 = vmatprep.subr.mxu0 %v2061
    %3360 = vmatpush1.msra.mxu0 %v2060
    %3361 = vmatprep.subr.mxu0 %v2064
    %3362 = vmatpush1.msra.mxu0 %v2063
    %3363 = vmatprep.subr.mxu0 %v2067
    %3364 = vmatpush1.msra.mxu0 %v2066
    %3365 = vmatprep.subr.mxu0 %v2070
    %3366 = vmatpush1.msra.mxu0 %v2069
    %3367 = vmatprep.subr.mxu0 %v2073
    %3368 = vmatpush1.msra.mxu0 %v2072
    %3369 = vmatprep.subr.mxu0 %v2076
    %3370 = vmatpush1.msra.mxu0 %v2075
    %3371 = vmatprep.subr.mxu0 %v2079
    %3372 = vmatpush1.msra.mxu0 %v2078
    %3373 = vmatprep.subr.mxu0 %v2082
    %3374 = vmatpush1.msra.mxu0 %v2081
    %3375 = vmatprep.subr.mxu0 %v2085
    %3376 = vmatpush1.msra.mxu0 %v2084
    %3377 = vmatprep.subr.mxu0 0.0
    %3378 = vmatpush1.msra.mxu0 0.0
    %3379 = vmatprep.subr.mxu0 0.0
    %3380 = vmatpush1.msra.mxu0 0.0
    %3381 = vmatprep.subr.mxu0 0.0
    %3382 = vmatpush1.msra.mxu0 0.0
    %3383 = vmatprep.subr.mxu0 0.0
    %3384 = vmatpush1.msra.mxu0 0.0
    %3385 = vmatprep.subr.mxu0 0.0
    %3386 = vmatpush1.msra.mxu0 0.0
    %3387 = vmatprep.subr.mxu0 0.0
    %3388 = vmatpush1.msra.mxu0 0.0
    %3389 = vmatprep.subr.mxu0 0.0
    %3390 = vmatpush1.msra.mxu0 0.0
    %3391 = vmatprep.subr.mxu0 0.0
    %3392 = vmatpush1.msra.mxu0 0.0
    %3393 = vmatprep.subr.mxu0 0.0
    %3394 = vmatpush1.msra.mxu0 0.0
    %3395 = vmatprep.subr.mxu0 0.0
    %3396 = vmatpush1.msra.mxu0 0.0
    %3397 = vmatprep.subr.mxu0 0.0
    %3398 = vmatpush1.msra.mxu0 0.0
    %3399 = vmatprep.subr.mxu0 0.0
    %3400 = vmatpush1.msra.mxu0 0.0
    %3401 = vmatprep.subr.mxu0 0.0
    %3402 = vmatpush1.msra.mxu0 0.0
    %3403 = vmatprep.subr.mxu0 0.0
    %3404 = vmatpush1.msra.mxu0 0.0
    %3405 = vmatprep.subr.mxu0 0.0
    %3406 = vmatpush1.msra.mxu0 0.0
    %3407 = vmatprep.subr.mxu0 0.0
    %3408 = vmatpush1.msra.mxu0 0.0
    %3409 = vmatprep.mubr.f32.mxu0 0.0
    %3410 = vmatmul.mubr.f32.gmra.mrb[0].mxu0 %v3344
    %v3411 = vpop.f32.mrb[0].mxu0
    %v3412 = vadd.f32 %v2092, %v3411
    %v3413 = vpop.f32.mrb[0].mxu0
    %v3414 = vadd.f32 %v2096, %v3413
    %3415 = vdwg.mxu0
    %3416 = vmatprep.subr.mxu0 0.0
    %3417 = vmatpush1.msra.mxu0 %v2041
    %3418 = vmatprep.subr.mxu0 0.0
    %3419 = vmatpush1.msra.mxu0 %v2044
    %3420 = vmatprep.subr.mxu0 0.0
    %3421 = vmatpush1.msra.mxu0 %v2047
    %3422 = vmatprep.subr.mxu0 0.0
    %3423 = vmatpush1.msra.mxu0 %v2050
    %3424 = vmatprep.subr.mxu0 0.0
    %3425 = vmatpush1.msra.mxu0 %v2053
    %3426 = vmatprep.subr.mxu0 0.0
    %3427 = vmatpush1.msra.mxu0 %v2056
    %3428 = vmatprep.subr.mxu0 0.0
    %3429 = vmatpush1.msra.mxu0 %v2059
    %3430 = vmatprep.subr.mxu0 0.0
    %3431 = vmatpush1.msra.mxu0 %v2062
    %3432 = vmatprep.subr.mxu0 0.0
    %3433 = vmatpush1.msra.mxu0 %v2065
    %3434 = vmatprep.subr.mxu0 0.0
    %3435 = vmatpush1.msra.mxu0 %v2068
    %3436 = vmatprep.subr.mxu0 0.0
    %3437 = vmatpush1.msra.mxu0 %v2071
    %3438 = vmatprep.subr.mxu0 0.0
    %3439 = vmatpush1.msra.mxu0 %v2074
    %3440 = vmatprep.subr.mxu0 0.0
    %3441 = vmatpush1.msra.mxu0 %v2077
    %3442 = vmatprep.subr.mxu0 0.0
    %3443 = vmatpush1.msra.mxu0 %v2080
    %3444 = vmatprep.subr.mxu0 0.0
    %3445 = vmatpush1.msra.mxu0 %v2083
    %3446 = vmatprep.subr.mxu0 0.0
    %3447 = vmatpush1.msra.mxu0 %v2086
    %3448 = vmatprep.subr.mxu0 0.0
    %3449 = vmatpush1.msra.mxu0 0.0
    %3450 = vmatprep.subr.mxu0 0.0
    %3451 = vmatpush1.msra.mxu0 0.0
    %3452 = vmatprep.subr.mxu0 0.0
    %3453 = vmatpush1.msra.mxu0 0.0
    %3454 = vmatprep.subr.mxu0 0.0
    %3455 = vmatpush1.msra.mxu0 0.0
    %3456 = vmatprep.subr.mxu0 0.0
    %3457 = vmatpush1.msra.mxu0 0.0
    %3458 = vmatprep.subr.mxu0 0.0
    %3459 = vmatpush1.msra.mxu0 0.0
    %3460 = vmatprep.subr.mxu0 0.0
    %3461 = vmatpush1.msra.mxu0 0.0
    %3462 = vmatprep.subr.mxu0 0.0
    %3463 = vmatpush1.msra.mxu0 0.0
    %3464 = vmatprep.subr.mxu0 0.0
    %3465 = vmatpush1.msra.mxu0 0.0
    %3466 = vmatprep.subr.mxu0 0.0
    %3467 = vmatpush1.msra.mxu0 0.0
    %3468 = vmatprep.subr.mxu0 0.0
    %3469 = vmatpush1.msra.mxu0 0.0
    %3470 = vmatprep.subr.mxu0 0.0
    %3471 = vmatpush1.msra.mxu0 0.0
    %3472 = vmatprep.subr.mxu0 0.0
    %3473 = vmatpush1.msra.mxu0 0.0
    %3474 = vmatprep.subr.mxu0 0.0
    %3475 = vmatpush1.msra.mxu0 0.0
    %3476 = vmatprep.subr.mxu0 0.0
    %3477 = vmatpush1.msra.mxu0 0.0
    %3478 = vmatprep.subr.mxu0 0.0
    %3479 = vmatpush1.msra.mxu0 0.0
    %3480 = vmatprep.mubr.f32.mxu0 0.0
    %3481 = vmatmul.mubr.f32.gmra.mrb[0].mxu0 %v3344
    %v3482 = vpop.f32.mrb[0].mxu0
    %v3483 = vadd.f32 %v2100, %v3482
    %v3484 = vpop.f32.mrb[0].mxu0
    %3485 = vdwg.mxu0
    %v3486 = vadd.f32 %v3412, %v3264
    %v3487 = vxor.u32 %v3486, 2147483648
    %v3488 = vmul.f32 %v3487, 1.442695
    %v3489 = vpow.pop %v3488
    %v3490 = vadd.f32 %v3489, 1.0
    %v3491 = vrcp.pop %v3490
    %v3492 = vmul.f32 1.0, %v3491
    %v3493 = vadd.f32 %v3414, %v3266
    %v3494 = vxor.u32 %v3493, 2147483648
    %v3495 = vmul.f32 %v3494, 1.442695
    %v3496 = vpow.pop %v3495
    %v3497 = vadd.f32 %v3496, 1.0
    %v3498 = vrcp.pop %v3497
    %v3499 = vmul.f32 1.0, %v3498
    %v3500 = vmul.f32 %v3492, %v3335
    %v3501 = vadd.f32 %v3483, %v3500
    %v3502 = vtanh.pop %v3501
    %v3503 = vsub.f32 1.0, %v3499
    %v3504 = vmul.f32 %v3503, %v3502
    %v3505 = vmul.f32 %v3499, %v3196
    %v3506 = vadd.f32 %v3504, %v3505
    %3507 = vmatprep.subr.mxu0 %v1806
    %3508 = vmatpush1.msra.mxu0 %v1805
    %3509 = vmatprep.subr.mxu0 %v1810
    %3510 = vmatpush1.msra.mxu0 %v1809
    %3511 = vmatprep.subr.mxu0 %v1814
    %3512 = vmatpush1.msra.mxu0 %v1813
    %3513 = vmatprep.subr.mxu0 %v1818
    %3514 = vmatpush1.msra.mxu0 %v1817
    %3515 = vmatprep.subr.mxu0 %v1822
    %3516 = vmatpush1.msra.mxu0 %v1821
    %3517 = vmatprep.subr.mxu0 %v1826
    %3518 = vmatpush1.msra.mxu0 %v1825
    %3519 = vmatprep.subr.mxu0 %v1830
    %3520 = vmatpush1.msra.mxu0 %v1829
    %3521 = vmatprep.subr.mxu0 %v1834
    %3522 = vmatpush1.msra.mxu0 %v1833
    %3523 = vmatprep.subr.mxu0 %v1838
    %3524 = vmatpush1.msra.mxu0 %v1837
    %3525 = vmatprep.subr.mxu0 %v1842
    %3526 = vmatpush1.msra.mxu0 %v1841
    %3527 = vmatprep.subr.mxu0 %v1846
    %3528 = vmatpush1.msra.mxu0 %v1845
    %3529 = vmatprep.subr.mxu0 %v1850
    %3530 = vmatpush1.msra.mxu0 %v1849
    %3531 = vmatprep.subr.mxu0 %v1854
    %3532 = vmatpush1.msra.mxu0 %v1853
    %3533 = vmatprep.subr.mxu0 %v1858
    %3534 = vmatpush1.msra.mxu0 %v1857
    %3535 = vmatprep.subr.mxu0 %v1862
    %3536 = vmatpush1.msra.mxu0 %v1861
    %3537 = vmatprep.subr.mxu0 %v1866
    %3538 = vmatpush1.msra.mxu0 %v1865
    %3539 = vmatprep.subr.mxu0 0.0
    %3540 = vmatpush1.msra.mxu0 0.0
    %3541 = vmatprep.subr.mxu0 0.0
    %3542 = vmatpush1.msra.mxu0 0.0
    %3543 = vmatprep.subr.mxu0 0.0
    %3544 = vmatpush1.msra.mxu0 0.0
    %3545 = vmatprep.subr.mxu0 0.0
    %3546 = vmatpush1.msra.mxu0 0.0
    %3547 = vmatprep.subr.mxu0 0.0
    %3548 = vmatpush1.msra.mxu0 0.0
    %3549 = vmatprep.subr.mxu0 0.0
    %3550 = vmatpush1.msra.mxu0 0.0
    %3551 = vmatprep.subr.mxu0 0.0
    %3552 = vmatpush1.msra.mxu0 0.0
    %3553 = vmatprep.subr.mxu0 0.0
    %3554 = vmatpush1.msra.mxu0 0.0
    %3555 = vmatprep.subr.mxu0 0.0
    %3556 = vmatpush1.msra.mxu0 0.0
    %3557 = vmatprep.subr.mxu0 0.0
    %3558 = vmatpush1.msra.mxu0 0.0
    %3559 = vmatprep.subr.mxu0 0.0
    %3560 = vmatpush1.msra.mxu0 0.0
    %3561 = vmatprep.subr.mxu0 0.0
    %3562 = vmatpush1.msra.mxu0 0.0
    %3563 = vmatprep.subr.mxu0 0.0
    %3564 = vmatpush1.msra.mxu0 0.0
    %3565 = vmatprep.subr.mxu0 0.0
    %3566 = vmatpush1.msra.mxu0 0.0
    %3567 = vmatprep.subr.mxu0 0.0
    %3568 = vmatpush1.msra.mxu0 0.0
    %3569 = vmatprep.subr.mxu0 0.0
    %3570 = vmatpush1.msra.mxu0 0.0
    %3571 = vmatprep.mubr.f32.mxu0 0.0
    %3572 = vmatmul.mubr.f32.gmra.mrb[0].mxu0 %v3506
    %v3573 = vpop.f32.mrb[0].mxu0
    %v3574 = vadd.f32 %v1874, %v3573
    %v3575 = vpop.f32.mrb[0].mxu0
    %v3576 = vadd.f32 %v1878, %v3575
    %3577 = vdwg.mxu0
    %3578 = vmatprep.subr.mxu0 %v1808
    %3579 = vmatpush1.msra.mxu0 %v1807
    %3580 = vmatprep.subr.mxu0 %v1812
    %3581 = vmatpush1.msra.mxu0 %v1811
    %3582 = vmatprep.subr.mxu0 %v1816
    %3583 = vmatpush1.msra.mxu0 %v1815
    %3584 = vmatprep.subr.mxu0 %v1820
    %3585 = vmatpush1.msra.mxu0 %v1819
    %3586 = vmatprep.subr.mxu0 %v1824
    %3587 = vmatpush1.msra.mxu0 %v1823
    %3588 = vmatprep.subr.mxu0 %v1828
    %3589 = vmatpush1.msra.mxu0 %v1827
    %3590 = vmatprep.subr.mxu0 %v1832
    %3591 = vmatpush1.msra.mxu0 %v1831
    %3592 = vmatprep.subr.mxu0 %v1836
    %3593 = vmatpush1.msra.mxu0 %v1835
    %3594 = vmatprep.subr.mxu0 %v1840
    %3595 = vmatpush1.msra.mxu0 %v1839
    %3596 = vmatprep.subr.mxu0 %v1844
    %3597 = vmatpush1.msra.mxu0 %v1843
    %3598 = vmatprep.subr.mxu0 %v1848
    %3599 = vmatpush1.msra.mxu0 %v1847
    %3600 = vmatprep.subr.mxu0 %v1852
    %3601 = vmatpush1.msra.mxu0 %v1851
    %3602 = vmatprep.subr.mxu0 %v1856
    %3603 = vmatpush1.msra.mxu0 %v1855
    %3604 = vmatprep.subr.mxu0 %v1860
    %3605 = vmatpush1.msra.mxu0 %v1859
    %3606 = vmatprep.subr.mxu0 %v1864
    %3607 = vmatpush1.msra.mxu0 %v1863
    %3608 = vmatprep.subr.mxu0 %v1868
    %3609 = vmatpush1.msra.mxu0 %v1867
    %3610 = vmatprep.subr.mxu0 0.0
    %3611 = vmatpush1.msra.mxu0 0.0
    %3612 = vmatprep.subr.mxu0 0.0
    %3613 = vmatpush1.msra.mxu0 0.0
    %3614 = vmatprep.subr.mxu0 0.0
    %3615 = vmatpush1.msra.mxu0 0.0
    %3616 = vmatprep.subr.mxu0 0.0
    %3617 = vmatpush1.msra.mxu0 0.0
    %3618 = vmatprep.subr.mxu0 0.0
    %3619 = vmatpush1.msra.mxu0 0.0
    %3620 = vmatprep.subr.mxu0 0.0
    %3621 = vmatpush1.msra.mxu0 0.0
    %3622 = vmatprep.subr.mxu0 0.0
    %3623 = vmatpush1.msra.mxu0 0.0
    %3624 = vmatprep.subr.mxu0 0.0
    %3625 = vmatpush1.msra.mxu0 0.0
    %3626 = vmatprep.subr.mxu0 0.0
    %3627 = vmatpush1.msra.mxu0 0.0
    %3628 = vmatprep.subr.mxu0 0.0
    %3629 = vmatpush1.msra.mxu0 0.0
    %3630 = vmatprep.subr.mxu0 0.0
    %3631 = vmatpush1.msra.mxu0 0.0
    %3632 = vmatprep.subr.mxu0 0.0
    %3633 = vmatpush1.msra.mxu0 0.0
    %3634 = vmatprep.subr.mxu0 0.0
    %3635 = vmatpush1.msra.mxu0 0.0
    %3636 = vmatprep.subr.mxu0 0.0
    %3637 = vmatpush1.msra.mxu0 0.0
    %3638 = vmatprep.subr.mxu0 0.0
    %3639 = vmatpush1.msra.mxu0 0.0
    %3640 = vmatprep.subr.mxu0 0.0
    %3641 = vmatpush1.msra.mxu0 0.0
    %3642 = vmatprep.mubr.f32.mxu0 0.0
    %3643 = vmatmul.mubr.f32.gmra.mrb[0].mxu0 %v3506
    %v3644 = vpop.f32.mrb[0].mxu0
    %v3645 = vadd.f32 %v1882, %v3644
    %v3646 = vpop.f32.mrb[0].mxu0
    %v3647 = vadd.f32 %v1886, %v3646
    %3648 = vdwg.mxu0
    %v3649 = vsel %vm2408, %v3647, -inf
    %3650 = vmax.index.xlane.f32.xlu0 %v3649
    %v3651 = vpop.xlane.xlu0 %3650
    %vm3652 = vcmp.eq.s32.totalorder %v108, %v3651
    %v3653 = vsel %vm3652, 1, 0
    %v3654 = vcvt.s32.f32 %v3653
    %3655 = vmatprep.subr.mxu0 %v2040
    %3656 = vmatpush1.msra.mxu0 %v2039
    %3657 = vmatprep.subr.mxu0 %v2043
    %3658 = vmatpush1.msra.mxu0 %v2042
    %3659 = vmatprep.subr.mxu0 %v2046
    %3660 = vmatpush1.msra.mxu0 %v2045
    %3661 = vmatprep.subr.mxu0 %v2049
    %3662 = vmatpush1.msra.mxu0 %v2048
    %3663 = vmatprep.subr.mxu0 %v2052
    %3664 = vmatpush1.msra.mxu0 %v2051
    %3665 = vmatprep.subr.mxu0 %v2055
    %3666 = vmatpush1.msra.mxu0 %v2054
    %3667 = vmatprep.subr.mxu0 %v2058
    %3668 = vmatpush1.msra.mxu0 %v2057
    %3669 = vmatprep.subr.mxu0 %v2061
    %3670 = vmatpush1.msra.mxu0 %v2060
    %3671 = vmatprep.subr.mxu0 %v2064
    %3672 = vmatpush1.msra.mxu0 %v2063
    %3673 = vmatprep.subr.mxu0 %v2067
    %3674 = vmatpush1.msra.mxu0 %v2066
    %3675 = vmatprep.subr.mxu0 %v2070
    %3676 = vmatpush1.msra.mxu0 %v2069
    %3677 = vmatprep.subr.mxu0 %v2073
    %3678 = vmatpush1.msra.mxu0 %v2072
    %3679 = vmatprep.subr.mxu0 %v2076
    %3680 = vmatpush1.msra.mxu0 %v2075
    %3681 = vmatprep.subr.mxu0 %v2079
    %3682 = vmatpush1.msra.mxu0 %v2078
    %3683 = vmatprep.subr.mxu0 %v2082
    %3684 = vmatpush1.msra.mxu0 %v2081
    %3685 = vmatprep.subr.mxu0 %v2085
    %3686 = vmatpush1.msra.mxu0 %v2084
    %3687 = vmatprep.subr.mxu0 0.0
    %3688 = vmatpush1.msra.mxu0 0.0
    %3689 = vmatprep.subr.mxu0 0.0
    %3690 = vmatpush1.msra.mxu0 0.0
    %3691 = vmatprep.subr.mxu0 0.0
    %3692 = vmatpush1.msra.mxu0 0.0
    %3693 = vmatprep.subr.mxu0 0.0
    %3694 = vmatpush1.msra.mxu0 0.0
    %3695 = vmatprep.subr.mxu0 0.0
    %3696 = vmatpush1.msra.mxu0 0.0
    %3697 = vmatprep.subr.mxu0 0.0
    %3698 = vmatpush1.msra.mxu0 0.0
    %3699 = vmatprep.subr.mxu0 0.0
    %3700 = vmatpush1.msra.mxu0 0.0
    %3701 = vmatprep.subr.mxu0 0.0
    %3702 = vmatpush1.msra.mxu0 0.0
    %3703 = vmatprep.subr.mxu0 0.0
    %3704 = vmatpush1.msra.mxu0 0.0
    %3705 = vmatprep.subr.mxu0 0.0
    %3706 = vmatpush1.msra.mxu0 0.0
    %3707 = vmatprep.subr.mxu0 0.0
    %3708 = vmatpush1.msra.mxu0 0.0
    %3709 = vmatprep.subr.mxu0 0.0
    %3710 = vmatpush1.msra.mxu0 0.0
    %3711 = vmatprep.subr.mxu0 0.0
    %3712 = vmatpush1.msra.mxu0 0.0
    %3713 = vmatprep.subr.mxu0 0.0
    %3714 = vmatpush1.msra.mxu0 0.0
    %3715 = vmatprep.subr.mxu0 0.0
    %3716 = vmatpush1.msra.mxu0 0.0
    %3717 = vmatprep.subr.mxu0 0.0
    %3718 = vmatpush1.msra.mxu0 0.0
    %3719 = vmatprep.mubr.f32.mxu0 0.0
    %3720 = vmatmul.mubr.f32.gmra.mrb[0].mxu0 %v3654
    %v3721 = vpop.f32.mrb[0].mxu0
    %v3722 = vadd.f32 %v2092, %v3721
    %v3723 = vpop.f32.mrb[0].mxu0
    %v3724 = vadd.f32 %v2096, %v3723
    %3725 = vdwg.mxu0
    %3726 = vmatprep.subr.mxu0 0.0
    %3727 = vmatpush1.msra.mxu0 %v2041
    %3728 = vmatprep.subr.mxu0 0.0
    %3729 = vmatpush1.msra.mxu0 %v2044
    %3730 = vmatprep.subr.mxu0 0.0
    %3731 = vmatpush1.msra.mxu0 %v2047
    %3732 = vmatprep.subr.mxu0 0.0
    %3733 = vmatpush1.msra.mxu0 %v2050
    %3734 = vmatprep.subr.mxu0 0.0
    %3735 = vmatpush1.msra.mxu0 %v2053
    %3736 = vmatprep.subr.mxu0 0.0
    %3737 = vmatpush1.msra.mxu0 %v2056
    %3738 = vmatprep.subr.mxu0 0.0
    %3739 = vmatpush1.msra.mxu0 %v2059
    %3740 = vmatprep.subr.mxu0 0.0
    %3741 = vmatpush1.msra.mxu0 %v2062
    %3742 = vmatprep.subr.mxu0 0.0
    %3743 = vmatpush1.msra.mxu0 %v2065
    %3744 = vmatprep.subr.mxu0 0.0
    %3745 = vmatpush1.msra.mxu0 %v2068
    %3746 = vmatprep.subr.mxu0 0.0
    %3747 = vmatpush1.msra.mxu0 %v2071
    %3748 = vmatprep.subr.mxu0 0.0
    %3749 = vmatpush1.msra.mxu0 %v2074
    %3750 = vmatprep.subr.mxu0 0.0
    %3751 = vmatpush1.msra.mxu0 %v2077
    %3752 = vmatprep.subr.mxu0 0.0
    %3753 = vmatpush1.msra.mxu0 %v2080
    %3754 = vmatprep.subr.mxu0 0.0
    %3755 = vmatpush1.msra.mxu0 %v2083
    %3756 = vmatprep.subr.mxu0 0.0
    %3757 = vmatpush1.msra.mxu0 %v2086
    %3758 = vmatprep.subr.mxu0 0.0
    %3759 = vmatpush1.msra.mxu0 0.0
    %3760 = vmatprep.subr.mxu0 0.0
    %3761 = vmatpush1.msra.mxu0 0.0
    %3762 = vmatprep.subr.mxu0 0.0
    %3763 = vmatpush1.msra.mxu0 0.0
    %3764 = vmatprep.subr.mxu0 0.0
    %3765 = vmatpush1.msra.mxu0 0.0
    %3766 = vmatprep.subr.mxu0 0.0
    %3767 = vmatpush1.msra.mxu0 0.0
    %3768 = vmatprep.subr.mxu0 0.0
    %3769 = vmatpush1.msra.mxu0 0.0
    %3770 = vmatprep.subr.mxu0 0.0
    %3771 = vmatpush1.msra.mxu0 0.0
    %3772 = vmatprep.subr.mxu0 0.0
    %3773 = vmatpush1.msra.mxu0 0.0
    %3774 = vmatprep.subr.mxu0 0.0
    %3775 = vmatpush1.msra.mxu0 0.0
    %3776 = vmatprep.subr.mxu0 0.0
    %3777 = vmatpush1.msra.mxu0 0.0
    %3778 = vmatprep.subr.mxu0 0.0
    %3779 = vmatpush1.msra.mxu0 0.0
    %3780 = vmatprep.subr.mxu0 0.0
    %3781 = vmatpush1.msra.mxu0 0.0
    %3782 = vmatprep.subr.mxu0 0.0
    %3783 = vmatpush1.msra.mxu0 0.0
    %3784 = vmatprep.subr.mxu0 0.0
    %3785 = vmatpush1.msra.mxu0 0.0
    %3786 = vmatprep.subr.mxu0 0.0
    %3787 = vmatpush1.msra.mxu0 0.0
    %3788 = vmatprep.subr.mxu0 0.0
    %3789 = vmatpush1.msra.mxu0 0.0
    %3790 = vmatprep.mubr.f32.mxu0 0.0
    %3791 = vmatmul.mubr.f32.gmra.mrb[0].mxu0 %v3654
    %v3792 = vpop.f32.mrb[0].mxu0
    %v3793 = vadd.f32 %v2100, %v3792
    %v3794 = vpop.f32.mrb[0].mxu0
    %3795 = vdwg.mxu0
    %v3796 = vadd.f32 %v3722, %v3574
    %v3797 = vxor.u32 %v3796, 2147483648
    %v3798 = vmul.f32 %v3797, 1.442695
    %v3799 = vpow.pop %v3798
    %v3800 = vadd.f32 %v3799, 1.0
    %v3801 = vrcp.pop %v3800
    %v3802 = vmul.f32 1.0, %v3801
    %v3803 = vadd.f32 %v3724, %v3576
    %v3804 = vxor.u32 %v3803, 2147483648
    %v3805 = vmul.f32 %v3804, 1.442695
    %v3806 = vpow.pop %v3805
    %v3807 = vadd.f32 %v3806, 1.0
    %v3808 = vrcp.pop %v3807
    %v3809 = vmul.f32 1.0, %v3808
    %v3810 = vmul.f32 %v3802, %v3645
    %v3811 = vadd.f32 %v3793, %v3810
    %v3812 = vtanh.pop %v3811
    %v3813 = vsub.f32 1.0, %v3809
    %v3814 = vmul.f32 %v3813, %v3812
    %v3815 = vmul.f32 %v3809, %v3506
    %v3816 = vadd.f32 %v3814, %v3815
    %3817 = vmatprep.subr.mxu0 %v1806
    %3818 = vmatpush1.msra.mxu0 %v1805
    %3819 = vmatprep.subr.mxu0 %v1810
    %3820 = vmatpush1.msra.mxu0 %v1809
    %3821 = vmatprep.subr.mxu0 %v1814
    %3822 = vmatpush1.msra.mxu0 %v1813
    %3823 = vmatprep.subr.mxu0 %v1818
    %3824 = vmatpush1.msra.mxu0 %v1817
    %3825 = vmatprep.subr.mxu0 %v1822
    %3826 = vmatpush1.msra.mxu0 %v1821
    %3827 = vmatprep.subr.mxu0 %v1826
    %3828 = vmatpush1.msra.mxu0 %v1825
    %3829 = vmatprep.subr.mxu0 %v1830
    %3830 = vmatpush1.msra.mxu0 %v1829
    %3831 = vmatprep.subr.mxu0 %v1834
    %3832 = vmatpush1.msra.mxu0 %v1833
    %3833 = vmatprep.subr.mxu0 %v1838
    %3834 = vmatpush1.msra.mxu0 %v1837
    %3835 = vmatprep.subr.mxu0 %v1842
    %3836 = vmatpush1.msra.mxu0 %v1841
    %3837 = vmatprep.subr.mxu0 %v1846
    %3838 = vmatpush1.msra.mxu0 %v1845
    %3839 = vmatprep.subr.mxu0 %v1850
    %3840 = vmatpush1.msra.mxu0 %v1849
    %3841 = vmatprep.subr.mxu0 %v1854
    %3842 = vmatpush1.msra.mxu0 %v1853
    %3843 = vmatprep.subr.mxu0 %v1858
    %3844 = vmatpush1.msra.mxu0 %v1857
    %3845 = vmatprep.subr.mxu0 %v1862
    %3846 = vmatpush1.msra.mxu0 %v1861
    %3847 = vmatprep.subr.mxu0 %v1866
    %3848 = vmatpush1.msra.mxu0 %v1865
    %3849 = vmatprep.subr.mxu0 0.0
    %3850 = vmatpush1.msra.mxu0 0.0
    %3851 = vmatprep.subr.mxu0 0.0
    %3852 = vmatpush1.msra.mxu0 0.0
    %3853 = vmatprep.subr.mxu0 0.0
    %3854 = vmatpush1.msra.mxu0 0.0
    %3855 = vmatprep.subr.mxu0 0.0
    %3856 = vmatpush1.msra.mxu0 0.0
    %3857 = vmatprep.subr.mxu0 0.0
    %3858 = vmatpush1.msra.mxu0 0.0
    %3859 = vmatprep.subr.mxu0 0.0
    %3860 = vmatpush1.msra.mxu0 0.0
    %3861 = vmatprep.subr.mxu0 0.0
    %3862 = vmatpush1.msra.mxu0 0.0
    %3863 = vmatprep.subr.mxu0 0.0
    %3864 = vmatpush1.msra.mxu0 0.0
    %3865 = vmatprep.subr.mxu0 0.0
    %3866 = vmatpush1.msra.mxu0 0.0
    %3867 = vmatprep.subr.mxu0 0.0
    %3868 = vmatpush1.msra.mxu0 0.0
    %3869 = vmatprep.subr.mxu0 0.0
    %3870 = vmatpush1.msra.mxu0 0.0
    %3871 = vmatprep.subr.mxu0 0.0
    %3872 = vmatpush1.msra.mxu0 0.0
    %3873 = vmatprep.subr.mxu0 0.0
    %3874 = vmatpush1.msra.mxu0 0.0
    %3875 = vmatprep.subr.mxu0 0.0
    %3876 = vmatpush1.msra.mxu0 0.0
    %3877 = vmatprep.subr.mxu0 0.0
    %3878 = vmatpush1.msra.mxu0 0.0
    %3879 = vmatprep.subr.mxu0 0.0
    %3880 = vmatpush1.msra.mxu0 0.0
    %3881 = vmatprep.mubr.f32.mxu0 0.0
    %3882 = vmatmul.mubr.f32.gmra.mrb[0].mxu0 %v3816
    %v3883 = vpop.f32.mrb[0].mxu0
    %v3884 = vadd.f32 %v1874, %v3883
    %v3885 = vpop.f32.mrb[0].mxu0
    %v3886 = vadd.f32 %v1878, %v3885
    %3887 = vdwg.mxu0
    %3888 = vmatprep.subr.mxu0 %v1808
    %3889 = vmatpush1.msra.mxu0 %v1807
    %3890 = vmatprep.subr.mxu0 %v1812
    %3891 = vmatpush1.msra.mxu0 %v1811
    %3892 = vmatprep.subr.mxu0 %v1816
    %3893 = vmatpush1.msra.mxu0 %v1815
    %3894 = vmatprep.subr.mxu0 %v1820
    %3895 = vmatpush1.msra.mxu0 %v1819
    %3896 = vmatprep.subr.mxu0 %v1824
    %3897 = vmatpush1.msra.mxu0 %v1823
    %3898 = vmatprep.subr.mxu0 %v1828
    %3899 = vmatpush1.msra.mxu0 %v1827
    %3900 = vmatprep.subr.mxu0 %v1832
    %3901 = vmatpush1.msra.mxu0 %v1831
    %3902 = vmatprep.subr.mxu0 %v1836
    %3903 = vmatpush1.msra.mxu0 %v1835
    %3904 = vmatprep.subr.mxu0 %v1840
    %3905 = vmatpush1.msra.mxu0 %v1839
    %3906 = vmatprep.subr.mxu0 %v1844
    %3907 = vmatpush1.msra.mxu0 %v1843
    %3908 = vmatprep.subr.mxu0 %v1848
    %3909 = vmatpush1.msra.mxu0 %v1847
    %3910 = vmatprep.subr.mxu0 %v1852
    %3911 = vmatpush1.msra.mxu0 %v1851
    %3912 = vmatprep.subr.mxu0 %v1856
    %3913 = vmatpush1.msra.mxu0 %v1855
    %3914 = vmatprep.subr.mxu0 %v1860
    %3915 = vmatpush1.msra.mxu0 %v1859
    %3916 = vmatprep.subr.mxu0 %v1864
    %3917 = vmatpush1.msra.mxu0 %v1863
    %3918 = vmatprep.subr.mxu0 %v1868
    %3919 = vmatpush1.msra.mxu0 %v1867
    %3920 = vmatprep.subr.mxu0 0.0
    %3921 = vmatpush1.msra.mxu0 0.0
    %3922 = vmatprep.subr.mxu0 0.0
    %3923 = vmatpush1.msra.mxu0 0.0
    %3924 = vmatprep.subr.mxu0 0.0
    %3925 = vmatpush1.msra.mxu0 0.0
    %3926 = vmatprep.subr.mxu0 0.0
    %3927 = vmatpush1.msra.mxu0 0.0
    %3928 = vmatprep.subr.mxu0 0.0
    %3929 = vmatpush1.msra.mxu0 0.0
    %3930 = vmatprep.subr.mxu0 0.0
    %3931 = vmatpush1.msra.mxu0 0.0
    %3932 = vmatprep.subr.mxu0 0.0
    %3933 = vmatpush1.msra.mxu0 0.0
    %3934 = vmatprep.subr.mxu0 0.0
    %3935 = vmatpush1.msra.mxu0 0.0
    %3936 = vmatprep.subr.mxu0 0.0
    %3937 = vmatpush1.msra.mxu0 0.0
    %3938 = vmatprep.subr.mxu0 0.0
    %3939 = vmatpush1.msra.mxu0 0.0
    %3940 = vmatprep.subr.mxu0 0.0
    %3941 = vmatpush1.msra.mxu0 0.0
    %3942 = vmatprep.subr.mxu0 0.0
    %3943 = vmatpush1.msra.mxu0 0.0
    %3944 = vmatprep.subr.mxu0 0.0
    %3945 = vmatpush1.msra.mxu0 0.0
    %3946 = vmatprep.subr.mxu0 0.0
    %3947 = vmatpush1.msra.mxu0 0.0
    %3948 = vmatprep.subr.mxu0 0.0
    %3949 = vmatpush1.msra.mxu0 0.0
    %3950 = vmatprep.subr.mxu0 0.0
    %3951 = vmatpush1.msra.mxu0 0.0
    %3952 = vmatprep.mubr.f32.mxu0 0.0
    %3953 = vmatmul.mubr.f32.gmra.mrb[0].mxu0 %v3816
    %v3954 = vpop.f32.mrb[0].mxu0
    %v3955 = vadd.f32 %v1882, %v3954
    %v3956 = vpop.f32.mrb[0].mxu0
    %v3957 = vadd.f32 %v1886, %v3956
    %3958 = vdwg.mxu0
    %v3959 = vsel %vm2408, %v3957, -inf
    %3960 = vmax.index.xlane.f32.xlu0 %v3959
    %v3961 = vpop.xlane.xlu0 %3960
    %vm3962 = vcmp.eq.s32.totalorder %v108, %v3961
    %v3963 = vsel %vm3962, 1, 0
    %v3964 = vcvt.s32.f32 %v3963
    %3965 = vmatprep.subr.mxu0 %v2040
    %3966 = vmatpush1.msra.mxu0 %v2039
    %3967 = vmatprep.subr.mxu0 %v2043
    %3968 = vmatpush1.msra.mxu0 %v2042
    %3969 = vmatprep.subr.mxu0 %v2046
    %3970 = vmatpush1.msra.mxu0 %v2045
    %3971 = vmatprep.subr.mxu0 %v2049
    %3972 = vmatpush1.msra.mxu0 %v2048
    %3973 = vmatprep.subr.mxu0 %v2052
    %3974 = vmatpush1.msra.mxu0 %v2051
    %3975 = vmatprep.subr.mxu0 %v2055
    %3976 = vmatpush1.msra.mxu0 %v2054
    %3977 = vmatprep.subr.mxu0 %v2058
    %3978 = vmatpush1.msra.mxu0 %v2057
    %3979 = vmatprep.subr.mxu0 %v2061
    %3980 = vmatpush1.msra.mxu0 %v2060
    %3981 = vmatprep.subr.mxu0 %v2064
    %3982 = vmatpush1.msra.mxu0 %v2063
    %3983 = vmatprep.subr.mxu0 %v2067
    %3984 = vmatpush1.msra.mxu0 %v2066
    %3985 = vmatprep.subr.mxu0 %v2070
    %3986 = vmatpush1.msra.mxu0 %v2069
    %3987 = vmatprep.subr.mxu0 %v2073
    %3988 = vmatpush1.msra.mxu0 %v2072
    %3989 = vmatprep.subr.mxu0 %v2076
    %3990 = vmatpush1.msra.mxu0 %v2075
    %3991 = vmatprep.subr.mxu0 %v2079
    %3992 = vmatpush1.msra.mxu0 %v2078
    %3993 = vmatprep.subr.mxu0 %v2082
    %3994 = vmatpush1.msra.mxu0 %v2081
    %3995 = vmatprep.subr.mxu0 %v2085
    %3996 = vmatpush1.msra.mxu0 %v2084
    %3997 = vmatprep.subr.mxu0 0.0
    %3998 = vmatpush1.msra.mxu0 0.0
    %3999 = vmatprep.subr.mxu0 0.0
    %4000 = vmatpush1.msra.mxu0 0.0
    %4001 = vmatprep.subr.mxu0 0.0
    %4002 = vmatpush1.msra.mxu0 0.0
    %4003 = vmatprep.subr.mxu0 0.0
    %4004 = vmatpush1.msra.mxu0 0.0
    %4005 = vmatprep.subr.mxu0 0.0
    %4006 = vmatpush1.msra.mxu0 0.0
    %4007 = vmatprep.subr.mxu0 0.0
    %4008 = vmatpush1.msra.mxu0 0.0
    %4009 = vmatprep.subr.mxu0 0.0
    %4010 = vmatpush1.msra.mxu0 0.0
    %4011 = vmatprep.subr.mxu0 0.0
    %4012 = vmatpush1.msra.mxu0 0.0
    %4013 = vmatprep.subr.mxu0 0.0
    %4014 = vmatpush1.msra.mxu0 0.0
    %4015 = vmatprep.subr.mxu0 0.0
    %4016 = vmatpush1.msra.mxu0 0.0
    %4017 = vmatprep.subr.mxu0 0.0
    %4018 = vmatpush1.msra.mxu0 0.0
    %4019 = vmatprep.subr.mxu0 0.0
    %4020 = vmatpush1.msra.mxu0 0.0
    %4021 = vmatprep.subr.mxu0 0.0
    %4022 = vmatpush1.msra.mxu0 0.0
    %4023 = vmatprep.subr.mxu0 0.0
    %4024 = vmatpush1.msra.mxu0 0.0
    %4025 = vmatprep.subr.mxu0 0.0
    %4026 = vmatpush1.msra.mxu0 0.0
    %4027 = vmatprep.subr.mxu0 0.0
    %4028 = vmatpush1.msra.mxu0 0.0
    %4029 = vmatprep.mubr.f32.mxu0 0.0
    %4030 = vmatmul.mubr.f32.gmra.mrb[0].mxu0 %v3964
    %v4031 = vpop.f32.mrb[0].mxu0
    %v4032 = vadd.f32 %v2092, %v4031
    %v4033 = vpop.f32.mrb[0].mxu0
    %v4034 = vadd.f32 %v2096, %v4033
    %4035 = vdwg.mxu0
    %4036 = vmatprep.subr.mxu0 0.0
    %4037 = vmatpush1.msra.mxu0 %v2041
    %4038 = vmatprep.subr.mxu0 0.0
    %4039 = vmatpush1.msra.mxu0 %v2044
    %4040 = vmatprep.subr.mxu0 0.0
    %4041 = vmatpush1.msra.mxu0 %v2047
    %4042 = vmatprep.subr.mxu0 0.0
    %4043 = vmatpush1.msra.mxu0 %v2050
    %4044 = vmatprep.subr.mxu0 0.0
    %4045 = vmatpush1.msra.mxu0 %v2053
    %4046 = vmatprep.subr.mxu0 0.0
    %4047 = vmatpush1.msra.mxu0 %v2056
    %4048 = vmatprep.subr.mxu0 0.0
    %4049 = vmatpush1.msra.mxu0 %v2059
    %4050 = vmatprep.subr.mxu0 0.0
    %4051 = vmatpush1.msra.mxu0 %v2062
    %4052 = vmatprep.subr.mxu0 0.0
    %4053 = vmatpush1.msra.mxu0 %v2065
    %4054 = vmatprep.subr.mxu0 0.0
    %4055 = vmatpush1.msra.mxu0 %v2068
    %4056 = vmatprep.subr.mxu0 0.0
    %4057 = vmatpush1.msra.mxu0 %v2071
    %4058 = vmatprep.subr.mxu0 0.0
    %4059 = vmatpush1.msra.mxu0 %v2074
    %4060 = vmatprep.subr.mxu0 0.0
    %4061 = vmatpush1.msra.mxu0 %v2077
    %4062 = vmatprep.subr.mxu0 0.0
    %4063 = vmatpush1.msra.mxu0 %v2080
    %4064 = vmatprep.subr.mxu0 0.0
    %4065 = vmatpush1.msra.mxu0 %v2083
    %4066 = vmatprep.subr.mxu0 0.0
    %4067 = vmatpush1.msra.mxu0 %v2086
    %4068 = vmatprep.subr.mxu0 0.0
    %4069 = vmatpush1.msra.mxu0 0.0
    %4070 = vmatprep.subr.mxu0 0.0
    %4071 = vmatpush1.msra.mxu0 0.0
    %4072 = vmatprep.subr.mxu0 0.0
    %4073 = vmatpush1.msra.mxu0 0.0
    %4074 = vmatprep.subr.mxu0 0.0
    %4075 = vmatpush1.msra.mxu0 0.0
    %4076 = vmatprep.subr.mxu0 0.0
    %4077 = vmatpush1.msra.mxu0 0.0
    %4078 = vmatprep.subr.mxu0 0.0
    %4079 = vmatpush1.msra.mxu0 0.0
    %4080 = vmatprep.subr.mxu0 0.0
    %4081 = vmatpush1.msra.mxu0 0.0
    %4082 = vmatprep.subr.mxu0 0.0
    %4083 = vmatpush1.msra.mxu0 0.0
    %4084 = vmatprep.subr.mxu0 0.0
    %4085 = vmatpush1.msra.mxu0 0.0
    %4086 = vmatprep.subr.mxu0 0.0
    %4087 = vmatpush1.msra.mxu0 0.0
    %4088 = vmatprep.subr.mxu0 0.0
    %4089 = vmatpush1.msra.mxu0 0.0
    %4090 = vmatprep.subr.mxu0 0.0
    %4091 = vmatpush1.msra.mxu0 0.0
    %4092 = vmatprep.subr.mxu0 0.0
    %4093 = vmatpush1.msra.mxu0 0.0
    %4094 = vmatprep.subr.mxu0 0.0
    %4095 = vmatpush1.msra.mxu0 0.0
    %4096 = vmatprep.subr.mxu0 0.0
    %4097 = vmatpush1.msra.mxu0 0.0
    %4098 = vmatprep.subr.mxu0 0.0
    %4099 = vmatpush1.msra.mxu0 0.0
    %4100 = vmatprep.mubr.f32.mxu0 0.0
    %4101 = vmatmul.mubr.f32.gmra.mrb[0].mxu0 %v3964
    %v4102 = vpop.f32.mrb[0].mxu0
    %v4103 = vadd.f32 %v2100, %v4102
    %v4104 = vpop.f32.mrb[0].mxu0
    %4105 = vdwg.mxu0
    %v4106 = vadd.f32 %v4032, %v3884
    %v4107 = vxor.u32 %v4106, 2147483648
    %v4108 = vmul.f32 %v4107, 1.442695
    %v4109 = vpow.pop %v4108
    %v4110 = vadd.f32 %v4109, 1.0
    %v4111 = vrcp.pop %v4110
    %v4112 = vmul.f32 1.0, %v4111
    %v4113 = vadd.f32 %v4034, %v3886
    %v4114 = vxor.u32 %v4113, 2147483648
    %v4115 = vmul.f32 %v4114, 1.442695
    %v4116 = vpow.pop %v4115
    %v4117 = vadd.f32 %v4116, 1.0
    %v4118 = vrcp.pop %v4117
    %v4119 = vmul.f32 1.0, %v4118
    %v4120 = vmul.f32 %v4112, %v3955
    %v4121 = vadd.f32 %v4103, %v4120
    %v4122 = vtanh.pop %v4121
    %v4123 = vsub.f32 1.0, %v4119
    %v4124 = vmul.f32 %v4123, %v4122
    %v4125 = vmul.f32 %v4119, %v3816
    %v4126 = vadd.f32 %v4124, %v4125
    %4127 = vmatprep.subr.mxu0 %v1808
    %4128 = vmatpush1.msra.mxu0 %v1807
    %4129 = vmatprep.subr.mxu0 %v1812
    %4130 = vmatpush1.msra.mxu0 %v1811
    %4131 = vmatprep.subr.mxu0 %v1816
    %4132 = vmatpush1.msra.mxu0 %v1815
    %4133 = vmatprep.subr.mxu0 %v1820
    %4134 = vmatpush1.msra.mxu0 %v1819
    %4135 = vmatprep.subr.mxu0 %v1824
    %4136 = vmatpush1.msra.mxu0 %v1823
    %4137 = vmatprep.subr.mxu0 %v1828
    %4138 = vmatpush1.msra.mxu0 %v1827
    %4139 = vmatprep.subr.mxu0 %v1832
    %4140 = vmatpush1.msra.mxu0 %v1831
    %4141 = vmatprep.subr.mxu0 %v1836
    %4142 = vmatpush1.msra.mxu0 %v1835
    %4143 = vmatprep.subr.mxu0 %v1840
    %4144 = vmatpush1.msra.mxu0 %v1839
    %4145 = vmatprep.subr.mxu0 %v1844
    %4146 = vmatpush1.msra.mxu0 %v1843
    %4147 = vmatprep.subr.mxu0 %v1848
    %4148 = vmatpush1.msra.mxu0 %v1847
    %4149 = vmatprep.subr.mxu0 %v1852
    %4150 = vmatpush1.msra.mxu0 %v1851
    %4151 = vmatprep.subr.mxu0 %v1856
    %4152 = vmatpush1.msra.mxu0 %v1855
    %4153 = vmatprep.subr.mxu0 %v1860
    %4154 = vmatpush1.msra.mxu0 %v1859
    %4155 = vmatprep.subr.mxu0 %v1864
    %4156 = vmatpush1.msra.mxu0 %v1863
    %4157 = vmatprep.subr.mxu0 %v1868
    %4158 = vmatpush1.msra.mxu0 %v1867
    %4159 = vmatprep.subr.mxu0 0.0
    %4160 = vmatpush1.msra.mxu0 0.0
    %4161 = vmatprep.subr.mxu0 0.0
    %4162 = vmatpush1.msra.mxu0 0.0
    %4163 = vmatprep.subr.mxu0 0.0
    %4164 = vmatpush1.msra.mxu0 0.0
    %4165 = vmatprep.subr.mxu0 0.0
    %4166 = vmatpush1.msra.mxu0 0.0
    %4167 = vmatprep.subr.mxu0 0.0
    %4168 = vmatpush1.msra.mxu0 0.0
    %4169 = vmatprep.subr.mxu0 0.0
    %4170 = vmatpush1.msra.mxu0 0.0
    %4171 = vmatprep.subr.mxu0 0.0
    %4172 = vmatpush1.msra.mxu0 0.0
    %4173 = vmatprep.subr.mxu0 0.0
    %4174 = vmatpush1.msra.mxu0 0.0
    %4175 = vmatprep.subr.mxu0 0.0
    %4176 = vmatpush1.msra.mxu0 0.0
    %4177 = vmatprep.subr.mxu0 0.0
    %4178 = vmatpush1.msra.mxu0 0.0
    %4179 = vmatprep.subr.mxu0 0.0
    %4180 = vmatpush1.msra.mxu0 0.0
    %4181 = vmatprep.subr.mxu0 0.0
    %4182 = vmatpush1.msra.mxu0 0.0
    %4183 = vmatprep.subr.mxu0 0.0
    %4184 = vmatpush1.msra.mxu0 0.0
    %4185 = vmatprep.subr.mxu0 0.0
    %4186 = vmatpush1.msra.mxu0 0.0
    %4187 = vmatprep.subr.mxu0 0.0
    %4188 = vmatpush1.msra.mxu0 0.0
    %4189 = vmatprep.subr.mxu0 0.0
    %4190 = vmatpush1.msra.mxu0 0.0
    %4191 = vmatprep.mubr.f32.mxu0 0.0
    %4192 = vmatmul.mubr.f32.gmra.mrb[0].mxu0 %v4126
    %v4193 = vpop.f32.mrb[0].mxu0
    %v4194 = vpop.f32.mrb[0].mxu0
    %v4195 = vadd.f32 %v1886, %v4194
    %4196 = vdwg.mxu0
    %v4199 = vunpack.c.l.s4 1966171168
    %v4200 = vunpack.c.0.s8 %v4199
    %v4201 = vlaneseq
    %v4202 = vshrl.u32 %v4201, 7
    %v4203 = vsub.s32 %v4200, %v4202
    %v4204 = vrot.slane %v2406, %v4203
    %v4205 = vcombine.high %v4204, %v4204
    %v4207 = vunpack.c.l.s4 1966171168
    %v4208 = vunpack.c.0.s8 %v4207
    %v4209 = vlaneseq
    %v4210 = vshrl.u32 %v4209, 7
    %v4211 = vsub.s32 %v4208, %v4210
    %v4212 = vrot.slane %v4204, %v4211
    %v4214 = vunpack.c.l.s4 1966171168
    %v4215 = vunpack.c.0.s8 %v4214
    %v4216 = vlaneseq
    %v4217 = vshrl.u32 %v4216, 7
    %v4218 = vsub.s32 %v4215, %v4217
    %v4219 = vrot.slane %v4205, %v4218
    %v4222 = vunpack.c.l.s4 1966171168
    %v4223 = vunpack.c.0.s8 %v4222
    %v4224 = vlaneseq
    %v4225 = vshrl.u32 %v4224, 7
    %v4226 = vsub.s32 %v4223, %v4225
    %v4227 = vrot.slane %v2717, %v4226
    %v4228 = vcombine.high %v4227, %v4227
    %v4230 = vunpack.c.l.s4 1966171168
    %v4231 = vunpack.c.0.s8 %v4230
    %v4232 = vlaneseq
    %v4233 = vshrl.u32 %v4232, 7
    %v4234 = vsub.s32 %v4231, %v4233
    %v4235 = vrot.slane %v4227, %v4234
    %v4237 = vunpack.c.l.s4 1966171168
    %v4238 = vunpack.c.0.s8 %v4237
    %v4239 = vlaneseq
    %v4240 = vshrl.u32 %v4239, 7
    %v4241 = vsub.s32 %v4238, %v4240
    %v4242 = vrot.slane %v4228, %v4241
    %v4245 = vunpack.c.l.s4 1966171168
    %v4246 = vunpack.c.0.s8 %v4245
    %v4247 = vlaneseq
    %v4248 = vshrl.u32 %v4247, 7
    %v4249 = vsub.s32 %v4246, %v4248
    %v4250 = vrot.slane %v3027, %v4249
    %v4251 = vcombine.high %v4250, %v4250
    %v4253 = vunpack.c.l.s4 1966171168
    %v4254 = vunpack.c.0.s8 %v4253
    %v4255 = vlaneseq
    %v4256 = vshrl.u32 %v4255, 7
    %v4257 = vsub.s32 %v4254, %v4256
    %v4258 = vrot.slane %v4250, %v4257
    %v4260 = vunpack.c.l.s4 1966171168
    %v4261 = vunpack.c.0.s8 %v4260
    %v4262 = vlaneseq
    %v4263 = vshrl.u32 %v4262, 7
    %v4264 = vsub.s32 %v4261, %v4263
    %v4265 = vrot.slane %v4251, %v4264
    %v4268 = vunpack.c.l.s4 1966171168
    %v4269 = vunpack.c.0.s8 %v4268
    %v4270 = vlaneseq
    %v4271 = vshrl.u32 %v4270, 7
    %v4272 = vsub.s32 %v4269, %v4271
    %v4273 = vrot.slane %v3337, %v4272
    %v4274 = vcombine.high %v4273, %v4273
    %v4276 = vunpack.c.l.s4 1966171168
    %v4277 = vunpack.c.0.s8 %v4276
    %v4278 = vlaneseq
    %v4279 = vshrl.u32 %v4278, 7
    %v4280 = vsub.s32 %v4277, %v4279
    %v4281 = vrot.slane %v4273, %v4280
    %v4283 = vunpack.c.l.s4 1966171168
    %v4284 = vunpack.c.0.s8 %v4283
    %v4285 = vlaneseq
    %v4286 = vshrl.u32 %v4285, 7
    %v4287 = vsub.s32 %v4284, %v4286
    %v4288 = vrot.slane %v4274, %v4287
    %v4291 = vunpack.c.l.s4 1966171168
    %v4292 = vunpack.c.0.s8 %v4291
    %v4293 = vlaneseq
    %v4294 = vshrl.u32 %v4293, 7
    %v4295 = vsub.s32 %v4292, %v4294
    %v4296 = vrot.slane %v3647, %v4295
    %v4297 = vcombine.high %v4296, %v4296
    %v4299 = vunpack.c.l.s4 1966171168
    %v4300 = vunpack.c.0.s8 %v4299
    %v4301 = vlaneseq
    %v4302 = vshrl.u32 %v4301, 7
    %v4303 = vsub.s32 %v4300, %v4302
    %v4304 = vrot.slane %v4296, %v4303
    %v4306 = vunpack.c.l.s4 1966171168
    %v4307 = vunpack.c.0.s8 %v4306
    %v4308 = vlaneseq
    %v4309 = vshrl.u32 %v4308, 7
    %v4310 = vsub.s32 %v4307, %v4309
    %v4311 = vrot.slane %v4297, %v4310
    %v4314 = vunpack.c.l.s4 1966171168
    %v4315 = vunpack.c.0.s8 %v4314
    %v4316 = vlaneseq
    %v4317 = vshrl.u32 %v4316, 7
    %v4318 = vsub.s32 %v4315, %v4317
    %v4319 = vrot.slane %v3957, %v4318
    %v4320 = vcombine.high %v4319, %v4319
    %v4322 = vunpack.c.l.s4 1966171168
    %v4323 = vunpack.c.0.s8 %v4322
    %v4324 = vlaneseq
    %v4325 = vshrl.u32 %v4324, 7
    %v4326 = vsub.s32 %v4323, %v4325
    %v4327 = vrot.slane %v4319, %v4326
    %v4329 = vunpack.c.l.s4 1966171168
    %v4330 = vunpack.c.0.s8 %v4329
    %v4331 = vlaneseq
    %v4332 = vshrl.u32 %v4331, 7
    %v4333 = vsub.s32 %v4330, %v4332
    %v4334 = vrot.slane %v4320, %v4333
    %v4337 = vunpack.c.l.s4 1966171168
    %v4338 = vunpack.c.0.s8 %v4337
    %v4339 = vlaneseq
    %v4340 = vshrl.u32 %v4339, 7
    %v4341 = vsub.s32 %v4338, %v4340
    %v4342 = vrot.slane %v4195, %v4341
    %v4343 = vcombine.high %v4342, %v4342
    %v4345 = vunpack.c.l.s4 1966171168
    %v4346 = vunpack.c.0.s8 %v4345
    %v4347 = vlaneseq
    %v4348 = vshrl.u32 %v4347, 7
    %v4349 = vsub.s32 %v4346, %v4348
    %v4350 = vrot.slane %v4342, %v4349
    %v4352 = vunpack.c.l.s4 1966171168
    %v4353 = vunpack.c.0.s8 %v4352
    %v4354 = vlaneseq
    %v4355 = vshrl.u32 %v4354, 7
    %v4356 = vsub.s32 %v4353, %v4355
    %v4357 = vrot.slane %v4343, %v4356
    %v4358 = vlaneseq
    %v4359 = vshrl.u32 %v4358, 7
    %v4360 = vsub.s32 0, %v4359
    %v4361 = vrot.slane %v4212, %v4360
    %v4362 = vlaneseq
    %v4363 = vshrl.u32 %v4362, 7
    %v4364 = vsub.s32 0, %v4363
    %v4365 = vrot.slane %v4219, %v4364
    %v4368 = vlaneseq
    %v4369 = vshrl.u32 %v4368, 7
    %v4370 = vsub.s32 0, %v4369
    %v4371 = vrot.slane %v4235, %v4370
    %v4372 = vlaneseq
    %v4373 = vshrl.u32 %v4372, 7
    %v4374 = vsub.s32 0, %v4373
    %v4375 = vrot.slane %v4242, %v4374
    %v4378 = vlaneseq
    %v4379 = vshrl.u32 %v4378, 7
    %v4380 = vsub.s32 0, %v4379
    %v4381 = vrot.slane %v4258, %v4380
    %v4382 = vlaneseq
    %v4383 = vshrl.u32 %v4382, 7
    %v4384 = vsub.s32 0, %v4383
    %v4385 = vrot.slane %v4265, %v4384
    %v4388 = vlaneseq
    %v4389 = vshrl.u32 %v4388, 7
    %v4390 = vsub.s32 0, %v4389
    %v4391 = vrot.slane %v4281, %v4390
    %v4392 = vlaneseq
    %v4393 = vshrl.u32 %v4392, 7
    %v4394 = vsub.s32 0, %v4393
    %v4395 = vrot.slane %v4288, %v4394
    %v4398 = vlaneseq
    %v4399 = vshrl.u32 %v4398, 7
    %v4400 = vsub.s32 0, %v4399
    %v4401 = vrot.slane %v4304, %v4400
    %v4402 = vlaneseq
    %v4403 = vshrl.u32 %v4402, 7
    %v4404 = vsub.s32 0, %v4403
    %v4405 = vrot.slane %v4311, %v4404
    %v4408 = vlaneseq
    %v4409 = vshrl.u32 %v4408, 7
    %v4410 = vsub.s32 0, %v4409
    %v4411 = vrot.slane %v4327, %v4410
    %v4412 = vlaneseq
    %v4413 = vshrl.u32 %v4412, 7
    %v4414 = vsub.s32 0, %v4413
    %v4415 = vrot.slane %v4334, %v4414
    %v4418 = vlaneseq
    %v4419 = vshrl.u32 %v4418, 7
    %v4420 = vsub.s32 0, %v4419
    %v4421 = vrot.slane %v4350, %v4420
    %v4422 = vlaneseq
    %v4423 = vshrl.u32 %v4422, 7
    %v4424 = vsub.s32 0, %v4423
    %v4425 = vrot.slane %v4357, %v4424
    %vm4428 = vcmask 1040384
    %v4429 = vsel %vm4428, 0.0, %v4361
    %v4430 = vsel %vm4428, 0.0, %v4365
    %v4431 = vsel %vm2408, %v4429, %v4371
    %v4432 = vsel %vm2408, %v4430, %v4375
    %vm4433 = vcmask 1042432
    %v4434 = vsel %vm4433, %v4431, %v4381
    %v4435 = vsel %vm4433, %v4432, %v4385
    %vm4436 = vcmask 1043456
    %v4437 = vsel %vm4436, %v4434, %v4391
    %v4438 = vsel %vm4436, %v4435, %v4395
    %vm4439 = vcmask 1044480
    %v4440 = vsel %vm4439, %v4437, %v4401
    %v4441 = vsel %vm4439, %v4438, %v4405
    %vm4442 = vcmask 1045504
    %v4443 = vsel %vm4442, %v4440, %v4411
    %v4444 = vsel %vm4442, %v4441, %v4415
    %vm4445 = vcmask 1046528
    %v4446 = vsel %vm4445, %v4443, %v4421
    %v4447 = vsel %vm4445, %v4444, %v4425
    %4448 = vst [vmem:[#allocation11] sm:$0xff] %v4446
    %4449 = vst [vmem:[#allocation11 + $0x8] sm:$0xff] %v4447
    // Predicated region
    $region66: #{tpu_custom_call.1} parent=1 // pred_check
      _
    $region67: #{tpu_custom_call.1} parent=1 // pred_check_branch
      %4451 = sbr.rel (0) target = $region69
    $region68: #{tpu_custom_call.1} parent=1 // pred_region
      %s4453 = ssub.s32 256, 256
      %4454 = vsyncadd [#allocation4], %s4453
      %s4455 = sshll.u32 [#allocation11], 4
      %s4456 = int_to_ptr.vmem [resolvable:$true] %s4455
      %4461 = dma.vmem_to_hbm [thread:$0]  %s4456, 256, %s11, [#allocation4], 128, 128, 8
    $region69: #{tpu_custom_call.1} parent=1 // pred_fallthru
      _
    // Predicated region
    $region70: #{tpu_custom_call.1} parent=1 // pred_check
      _
    $region71: #{tpu_custom_call.1} parent=1 // pred_check_branch
      %4463 = sbr.rel (0) target = $region73
    $region72: #{tpu_custom_call.1} parent=1 // pred_region
      %4464 = dma.done [#allocation4], 256
    $region73: #{tpu_custom_call.1} parent=1 // pred_fallthru
      _
    %4465 = vsyncpa [#allocation3], 1
    %4466 = vsyncpa [#allocation6], 1
    %4467 = vsyncpa [#allocation9], 1
    %4468 = vsyncpa [#allocation4], 1

</llo_original>
